<compile_context>
chip_gen: v5e
topology: v5e:2x2
jax: 0.10.0
libtpu: 0.0.40
codegen_flags: <defaults>
</compile_context>

<pallas_src>
import math

import numpy as np
import jax
import jax.numpy as jnp
from jax.experimental import pallas as pl
from jax.experimental.pallas import tpu as pltpu

# ----------------------- module configuration ------------------------------
WIDTH = 32               # width (channels)
NUM_BASIS = 8            # num_basis
PATCH = (4, 4)           # patch_size
NUM_TOKEN = 4            # num_token
HEAD = 8                 # fixed in the PyTorch module
CH = WIDTH // HEAD       # channels per head
L = PATCH[0] * PATCH[1]  # tokens per patch
GROUP = 4                # patches packed along the lane axis
GC = GROUP * WIDTH       # packed lane width = 128


# ----------------------------- Pallas kernel --------------------------------
def _nsb_kernel(x_ref, wqs_ref, bqs_ref, wv_ref, bv_ref, wq2_ref, bq2_ref,
                lat_ref, wsin_ref, wcos_ref, eenc_ref, ered_ref, eexp_ref,
                out_ref):
    Lp, BPG, GCl = x_ref.shape           # tokens/patch, patch-groups, packed lanes
    N = Lp * BPG
    T = lat_ref.shape[0]
    NB = wsin_ref.shape[0]
    f32 = jnp.float32

    x3 = x_ref[...]                      # (Lp, BPG, GC), lane = g*C + c
    x2 = x3.reshape(N, GCl)

    # ---- fused 1x1-conv projections (all heads, all packed patches) ----
    s_enc = jnp.dot(x2, wqs_ref[...], preferred_element_type=f32) + bqs_ref[...]
    v2 = jnp.dot(x2, wv_ref[...], preferred_element_type=f32) + bv_ref[...]
    q2 = jnp.dot(x2, wq2_ref[...], preferred_element_type=f32) + bq2_ref[...]

    # ---- latent encoder attention: softmax over the Lp tokens (axis 0) ----
    s3 = s_enc.reshape(Lp, BPG, GCl)                     # lane = g*T*H + t*H + h
    e1 = jnp.exp(s3 - jnp.max(s3, axis=0, keepdims=True))
    r1 = pl.reciprocal(jnp.sum(e1, axis=0, keepdims=True), approx=True)
    attn1 = (e1 * r1).reshape(N, GCl)

    v3 = v2.reshape(Lp, BPG, GCl)
    eenc = eenc_ref[...]                                 # (T, GC, GC) static 0/1
    lt_parts = []
    for t in range(T):
        # select token t's head scores and expand heads -> channels (0/1 MXU matmul)
        sel = jnp.dot(attn1, eenc[t], preferred_element_type=f32)
        lt_parts.append(jnp.sum(sel.reshape(Lp, BPG, GCl) * v3, axis=0))
    lt = jnp.stack(lt_parts, axis=0) + lat_ref[...]      # (T, BPG, GC) + latent residual

    # ---- neural spectral basis (angle-addition recurrence) + compl_mul2d ----
    wsin = wsin_ref[...]                                 # (NB, 1, GC), loaded once
    wcos = wcos_ref[...]
    theta = lt * (math.pi / NB)
    s1 = jnp.sin(theta)
    c1 = jnp.cos(theta)
    acc = wcos[0] + s1 * wsin[1] + c1 * wcos[1]          # m=0: sin=0, cos=1
    sm, cm = s1, c1
    for m in range(2, NB):
        sm, cm = sm * c1 + cm * s1, cm * c1 - sm * s1
        acc = acc + sm * wsin[m] + cm * wcos[m]
    z = lt + acc                                         # (T, BPG, GC)

    # ---- latent decoder attention: softmax over the T latent tokens (axis 0) ----
    q4 = q2.reshape(1, Lp, BPG, GCl)
    qz = (q4 * z[:, None]).reshape(T * N, GCl)           # broadcast, no tiles/concat
    s_all = jnp.dot(qz, ered_ref[...], preferred_element_type=f32)   # (T*N, G*H)
    GH = s_all.shape[-1]
    s_all = s_all.reshape(T, N, GH)
    e2 = jnp.exp(s_all - jnp.max(s_all, axis=0, keepdims=True))
    r2 = pl.reciprocal(jnp.sum(e2, axis=0, keepdims=True), approx=True)
    attn2 = (e2 * r2).reshape(T * N, GH)
    a_exp = jnp.dot(attn2, eexp_ref[...], preferred_element_type=f32)  # (T*N, GC)
    a_exp = a_exp.reshape(T, Lp, BPG, GCl)
    y = x3 + jnp.sum(a_exp * z[:, None], axis=0)         # residual + value mix

    out_ref[...] = y.astype(out_ref.dtype)               # lane-dense (.., 128) store


# ------------------------------ wrapper --------------------------------------
def _default_tiling():
    """Returns (patch-groups per grid step, vmem limit bytes, prefer >=2 steps)."""
    try:
        kind = jax.devices()[0].device_kind.lower()
    except Exception:
        kind = ""
    if ("v5" in kind) or ("v6" in kind):
        # 128 MiB VMEM, single TensorCore: biggest block that comfortably fits.
        return 128, 64 * 1024 * 1024, False      # 512 patches / block
    # v7x (64 MiB VMEM / TC, 2 TCs) and unknown chips: conservative block size
    # and keep >=2 grid steps so the parallel axis shards across both cores.
    return 64, 48 * 1024 * 1024, True            # 256 patches / block


def neural_spectral_block(x, kparams, *, bp_block=None, vmem_limit_bytes=None):
    """x: (B, C, H, W) float32 (NCHW like the PyTorch module)."""
    B, C, H, W = x.shape
    assert C == WIDTH
    p0, p1 = PATCH
    assert H % p0 == 0 and W % p1 == 0
    Hp, Wp = H // p0, W // p1
    Bp = B * Hp * Wp
    Gp = GROUP

    # patchify (exactly like the PyTorch forward) into token-major (L, Bp, C)
    xp = x.reshape(B, C, Hp, p0, Wp, p1)
    x_lbc = xp.transpose(3, 5, 0, 2, 4, 1).reshape(L, Bp, C)

    # tiling heuristic (patch-groups per grid step; lanes are GROUP*C = 128 wide)
    if bp_block is None:
        bpg_block, default_vmem, prefer_two = _default_tiling()
    else:
        bpg_block = max(8, (((max(bp_block, Gp) + Gp - 1) // Gp + 7) // 8) * 8)
        default_vmem, prefer_two = 48 * 1024 * 1024, True
    if vmem_limit_bytes is None:
        vmem_limit_bytes = default_vmem

    Bpg = -(-Bp // Gp)                                   # patch groups (ceil)
    full_groups = ((Bpg + 7) // 8) * 8
    bpg_block = min(bpg_block, full_groups)
    if prefer_two and Bpg > 8 and Bpg <= 2 * bpg_block:
        bpg_block = max(8, (((Bpg + 1) // 2) + 7) // 8 * 8)
    Bpg_pad = ((Bpg + bpg_block - 1) // bpg_block) * bpg_block
    Bp_tot = Bpg_pad * Gp
    if Bp_tot != Bp:
        x_lbc = jnp.pad(x_lbc, ((0, 0), (0, Bp_tot - Bp), (0, 0)))
    # pack GROUP patches' channels into the lane axis -> (L, groups, 128)
    x_pack = x_lbc.reshape(L, Bpg_pad, Gp * C)

    def const_spec(a):
        return pl.BlockSpec(a.shape, lambda i, _n=a.ndim: (0,) * _n)

    y = pl.pallas_call(
        _nsb_kernel,
        out_shape=jax.ShapeDtypeStruct((L, Bpg_pad, Gp * C), jnp.float32),
        grid=(Bpg_pad // bpg_block,),
        in_specs=[pl.BlockSpec((L, bpg_block, Gp * C), lambda i: (0, i, 0))]
                 + [const_spec(a) for a in kparams],
        out_specs=pl.BlockSpec((L, bpg_block, Gp * C), lambda i: (0, i, 0)),
        compiler_params=pltpu.CompilerParams(
            dimension_semantics=("parallel",),
            vmem_limit_bytes=int(vmem_limit_bytes),
        ),
    )(x_pack, *kparams)

    # un-pack lanes and un-patchify (exactly like the PyTorch forward)
    y = y.reshape(L, Bpg_pad * Gp, C)[:, :Bp, :]
    y = y.reshape(p0, p1, B, Hp, Wp, C).transpose(2, 5, 3, 0, 4, 1).reshape(B, C, H, W)
    return y


# -------------------------- parameter handling --------------------------------
def init_raw_params(key):
    k1, k2, k3, k4, k5, k6 = jax.random.split(key, 6)
    wspec = (1.0 / WIDTH) * jax.random.uniform(k1, (WIDTH, NUM_BASIS * 2), jnp.float32)
    latent = (1.0 / WIDTH) * jax.random.uniform(k2, (HEAD, NUM_TOKEN, CH), jnp.float32)
    bound = 1.0 / math.sqrt(WIDTH)
    enc_w = jax.random.uniform(k3, (2 * WIDTH, WIDTH), jnp.float32, -bound, bound)
    enc_b = jax.random.uniform(k4, (2 * WIDTH,), jnp.float32, -bound, bound)
    dec_w = jax.random.uniform(k5, (WIDTH, WIDTH), jnp.float32, -bound, bound)
    dec_b = jax.random.uniform(k6, (WIDTH,), jnp.float32, -bound, bound)
    return dict(wspec=wspec, latent=latent, enc_w=enc_w, enc_b=enc_b,
                dec_w=dec_w, dec_b=dec_b)


def kernel_params(raw, group=GROUP):
    C, nb, T, Hh, ch, Gp = WIDTH, NUM_BASIS, NUM_TOKEN, HEAD, CH, group
    # encoder conv out-channel layout: oc = h*(CH*2) + d*2 + s  (s=0 -> K, s=1 -> V)
    enc_w = raw["enc_w"].reshape(Hh, ch, 2, C)      # [h, d, {K,V}, c_in]
    enc_b = raw["enc_b"].reshape(Hh, ch, 2)
    latent = raw["latent"]                          # [h, t, d]

    wk, wv = enc_w[:, :, 0, :], enc_w[:, :, 1, :]   # [h, d, c_in]
    bk, bv = enc_b[:, :, 0], enc_b[:, :, 1]         # [h, d]

    # fold the K projection with the latent queries: scores = x @ w_qs + b_qs,
    # score column j = t*HEAD + h.
    w_qs = jnp.einsum("hdc,htd->cth", wk, latent,
                      precision="highest").reshape(C, T * Hh)
    b_qs = jnp.einsum("hd,htd->th", bk, latent,
                      precision="highest").reshape(1, T * Hh)

    # fused V projection and decoder-Q projection, out channel = h*CH + d.
    w_v = jnp.transpose(wv, (2, 0, 1)).reshape(C, C)
    b_v = bv.reshape(1, C)
    w_q2 = jnp.transpose(raw["dec_w"])
    b_q2 = raw["dec_b"].reshape(1, C)

    # latent residual rows / spectral weights, channel c = h*CH + d
    lat_rows = jnp.transpose(latent, (1, 0, 2)).reshape(T, 1, C)
    wsin = jnp.transpose(raw["wspec"][:, :nb]).reshape(nb, 1, C)
    wcos = jnp.transpose(raw["wspec"][:, nb:]).reshape(nb, 1, C)

    # static 0/1 head-structure matrices (unpacked)
    emat = np.kron(np.eye(Hh, dtype=np.float32), np.ones((1, ch), np.float32))  # (H, C)
    eenc = np.zeros((T, T * Hh, C), np.float32)
    for t in range(T):
        eenc[t, t * Hh:(t + 1) * Hh, :] = emat

    # ---- lane packing: kron with I_G so GROUP patches share one 128-lane vreg ----
    eye = jnp.eye(Gp, dtype=jnp.float32)
    eye_np = np.eye(Gp, dtype=np.float32)
    pack_w = lambda w: jnp.kron(eye, w)              # block-diagonal (G*K, G*N)
    pack_b = lambda b: jnp.tile(b, (1, Gp))          # (1, G*N)
    pack_last = lambda a: jnp.tile(a, (1, 1, Gp))    # tile last dim over groups

    kparams = (
        pack_w(w_qs), pack_b(b_qs),                  # (128,128), (1,128)
        pack_w(w_v), pack_b(b_v),
        pack_w(w_q2), pack_b(b_q2),
        pack_last(lat_rows),                         # (T, 1, 128)
        pack_last(wsin), pack_last(wcos),            # (NB, 1, 128)
        jnp.asarray(np.stack([np.kron(eye_np, eenc[t]) for t in range(T)])),  # (T,128,128)
        jnp.asarray(np.kron(eye_np, emat.T)),        # (128, G*H)  channel -> head
        jnp.asarray(np.kron(eye_np, emat)),          # (G*H, 128)  head -> channel
    )
    return kparams


# ------------------------ pure-JAX reference (torch semantics) ----------------
def reference(x, raw):
    B, C, H, W = x.shape
    p0, p1 = PATCH
    Hp, Wp = H // p0, W // p1
    Bp, Ltok = B * Hp * Wp, p0 * p1
    hp = lambda *a, **k: jnp.einsum(*a, precision="highest", **k)

    xp = x.reshape(B, C, Hp, p0, Wp, p1).transpose(0, 2, 4, 1, 3, 5)
    xp = xp.reshape(Bp, C, p0, p1)
    xf = xp.reshape(Bp, C, Ltok)

    # latent_encoder_attn
    enc = hp("oc,bcl->bol", raw["enc_w"], xf) + raw["enc_b"][None, :, None]
    x_tmp = enc.transpose(0, 2, 1).reshape(Bp, Ltok, HEAD, CH, 2).transpose(4, 0, 2, 1, 3)
    k, v = x_tmp[0], x_tmp[1]
    q = jnp.broadcast_to(raw["latent"][None], (Bp, HEAD, NUM_TOKEN, CH))
    attn = jax.nn.softmax(hp("bhlc,bhsc->bhls", q, k), axis=-1)
    lt = hp("bhls,bhsc->bhlc", attn, v) + q
    lt = lt.transpose(0, 1, 3, 2).reshape(Bp, C, NUM_TOKEN)

    # get_basis + compl_mul2d
    modes = jnp.arange(NUM_BASIS, dtype=jnp.float32) / float(NUM_BASIS)
    arg = modes[None, None, None, :] * lt[:, :, :, None] * math.pi
    basis = jnp.concatenate([jnp.sin(arg), jnp.cos(arg)], axis=-1)
    lt = hp("bilm,im->bil", basis, raw["wspec"]) + lt

    # latent_decoder_attn
    ltd = lt.reshape(Bp, HEAD, CH, NUM_TOKEN).transpose(0, 1, 3, 2)
    dec = hp("oc,bcl->bol", raw["dec_w"], xf) + raw["dec_b"][None, :, None]
    xq = dec.transpose(0, 2, 1).reshape(Bp, Ltok, HEAD, CH).transpose(0, 2, 1, 3)
    attn2 = jax.nn.softmax(hp("bhlc,bhsc->bhls", xq, ltd), axis=-1)
    xo = hp("bhls,bhsc->bhlc", attn2, ltd)
    xo = xo.transpose(0, 1, 3, 2).reshape(Bp, C, p0, p1) + xp

    out = xo.reshape(B, Hp, Wp, C, p0, p1).transpose(0, 3, 1, 4, 2, 5).reshape(B, C, H, W)
    return out


# ------------------------------------ main ------------------------------------
if __name__ == "__main__":
    key = jax.random.PRNGKey(0)
    kx, kp = jax.random.split(key)
    B, H, W = 2, 16, 16
    x = jax.random.normal(kx, (B, WIDTH, H, W), jnp.float32)   # NCHW like PyTorch

    raw = init_raw_params(kp)
    kparams = kernel_params(raw)

    out = jax.block_until_ready(neural_spectral_block(x, kparams))
    ref = jax.block_until_ready(reference(x, raw))

    assert out.shape == (B, WIDTH, H, W)
    err = float(jnp.max(jnp.abs(out - ref)))
    assert jnp.allclose(out, ref, atol=2e-3, rtol=2e-3), err

    print("KERNEL_OK")
</pallas_src>

<mosaic_0001>
module attributes {stable_mosaic.version = 11 : i64} {
  func.func @_nsb_kernel(%arg0: i32, %arg1: memref<16x8x128xf32, #tpu.memory_space<vmem>>, %arg2: memref<128x128xf32, #tpu.memory_space<vmem>>, %arg3: memref<1x128xf32, #tpu.memory_space<vmem>>, %arg4: memref<128x128xf32, #tpu.memory_space<vmem>>, %arg5: memref<1x128xf32, #tpu.memory_space<vmem>>, %arg6: memref<128x128xf32, #tpu.memory_space<vmem>>, %arg7: memref<1x128xf32, #tpu.memory_space<vmem>>, %arg8: memref<4x1x128xf32, #tpu.memory_space<vmem>>, %arg9: memref<8x1x128xf32, #tpu.memory_space<vmem>>, %arg10: memref<8x1x128xf32, #tpu.memory_space<vmem>>, %arg11: memref<4x128x128xf32, #tpu.memory_space<vmem>>, %arg12: memref<128x32xf32, #tpu.memory_space<vmem>>, %arg13: memref<32x128xf32, #tpu.memory_space<vmem>>, %arg14: memref<16x8x128xf32, #tpu.memory_space<vmem>>) attributes {dimension_semantics = [#tpu.dimension_semantics<parallel>], iteration_bounds = array<i64: 1>, scalar_prefetch = 0 : i64, scratch_operands = 0 : i64, tpu.core_type = #tpu.core_type<tc>, window_params = [{transform_indices = @transform_0, window_bounds = array<i64: 16, 8, 128>}, {pipeline_mode = #tpu.pipeline_mode<synchronous>, transform_indices = @transform_1, window_bounds = array<i64: 128, 128>}, {pipeline_mode = #tpu.pipeline_mode<synchronous>, transform_indices = @transform_2, window_bounds = array<i64: 1, 128>}, {pipeline_mode = #tpu.pipeline_mode<synchronous>, transform_indices = @transform_3, window_bounds = array<i64: 128, 128>}, {pipeline_mode = #tpu.pipeline_mode<synchronous>, transform_indices = @transform_4, window_bounds = array<i64: 1, 128>}, {pipeline_mode = #tpu.pipeline_mode<synchronous>, transform_indices = @transform_5, window_bounds = array<i64: 128, 128>}, {pipeline_mode = #tpu.pipeline_mode<synchronous>, transform_indices = @transform_6, window_bounds = array<i64: 1, 128>}, {pipeline_mode = #tpu.pipeline_mode<synchronous>, transform_indices = @transform_7, window_bounds = array<i64: 4, 1, 128>}, {pipeline_mode = #tpu.pipeline_mode<synchronous>, transform_indices = @transform_8, window_bounds = array<i64: 8, 1, 128>}, {pipeline_mode = #tpu.pipeline_mode<synchronous>, transform_indices = @transform_9, window_bounds = array<i64: 8, 1, 128>}, {pipeline_mode = #tpu.pipeline_mode<synchronous>, transform_indices = @transform_10, window_bounds = array<i64: 4, 128, 128>}, {pipeline_mode = #tpu.pipeline_mode<synchronous>, transform_indices = @transform_11, window_bounds = array<i64: 128, 32>}, {pipeline_mode = #tpu.pipeline_mode<synchronous>, transform_indices = @transform_12, window_bounds = array<i64: 32, 128>}, {transform_indices = @transform_13, window_bounds = array<i64: 16, 8, 128>}]} {
    %c0 = arith.constant 0 : index
    %c0_0 = arith.constant 0 : index
    %c0_1 = arith.constant 0 : index
    %0 = vector.load %arg1[%c0, %c0_0, %c0_1] : memref<16x8x128xf32, #tpu.memory_space<vmem>>, vector<16x8x128xf32>
    %1 = vector.shape_cast %0 : vector<16x8x128xf32> to vector<128x128xf32>
    %c0_2 = arith.constant 0 : index
    %c0_3 = arith.constant 0 : index
    %2 = vector.load %arg2[%c0_2, %c0_3] : memref<128x128xf32, #tpu.memory_space<vmem>>, vector<128x128xf32>
    %cst = arith.constant dense<0.000000e+00> : vector<128x128xf32>
    %3 = tpu.matmul %1, %2, %cst {dimension_numbers = #tpu.dot_dimension_numbers<[1], [0], [0], [1], [0, 0, 1, 1], [], []>} : vector<128x128xf32>, vector<128x128xf32>, vector<128x128xf32> -> vector<128x128xf32>
    %c0_4 = arith.constant 0 : index
    %c0_5 = arith.constant 0 : index
    %4 = vector.load %arg3[%c0_4, %c0_5] : memref<1x128xf32, #tpu.memory_space<vmem>>, vector<1x128xf32>
    %5 = vector.broadcast %4 : vector<1x128xf32> to vector<128x128xf32>
    %6 = arith.addf %3, %5 : vector<128x128xf32>
    %c0_6 = arith.constant 0 : index
    %c0_7 = arith.constant 0 : index
    %7 = vector.load %arg4[%c0_6, %c0_7] : memref<128x128xf32, #tpu.memory_space<vmem>>, vector<128x128xf32>
    %cst_8 = arith.constant dense<0.000000e+00> : vector<128x128xf32>
    %8 = tpu.matmul %1, %7, %cst_8 {dimension_numbers = #tpu.dot_dimension_numbers<[1], [0], [0], [1], [0, 0, 1, 1], [], []>} : vector<128x128xf32>, vector<128x128xf32>, vector<128x128xf32> -> vector<128x128xf32>
    %c0_9 = arith.constant 0 : index
    %c0_10 = arith.constant 0 : index
    %9 = vector.load %arg5[%c0_9, %c0_10] : memref<1x128xf32, #tpu.memory_space<vmem>>, vector<1x128xf32>
    %10 = vector.broadcast %9 : vector<1x128xf32> to vector<128x128xf32>
    %11 = arith.addf %8, %10 : vector<128x128xf32>
    %c0_11 = arith.constant 0 : index
    %c0_12 = arith.constant 0 : index
    %12 = vector.load %arg6[%c0_11, %c0_12] : memref<128x128xf32, #tpu.memory_space<vmem>>, vector<128x128xf32>
    %cst_13 = arith.constant dense<0.000000e+00> : vector<128x128xf32>
    %13 = tpu.matmul %1, %12, %cst_13 {dimension_numbers = #tpu.dot_dimension_numbers<[1], [0], [0], [1], [0, 0, 1, 1], [], []>} : vector<128x128xf32>, vector<128x128xf32>, vector<128x128xf32> -> vector<128x128xf32>
    %c0_14 = arith.constant 0 : index
    %c0_15 = arith.constant 0 : index
    %14 = vector.load %arg7[%c0_14, %c0_15] : memref<1x128xf32, #tpu.memory_space<vmem>>, vector<1x128xf32>
    %15 = vector.broadcast %14 : vector<1x128xf32> to vector<128x128xf32>
    %16 = arith.addf %13, %15 : vector<128x128xf32>
    %17 = vector.shape_cast %6 : vector<128x128xf32> to vector<16x8x128xf32>
    %cst_16 = arith.constant dense<0xFF800000> : vector<8x128xf32>
    %18 = vector.multi_reduction <maximumf>, %17, %cst_16 [0] : vector<16x8x128xf32> to vector<8x128xf32>
    %19 = vector.shape_cast %18 : vector<8x128xf32> to vector<1x8x128xf32>
    %20 = vector.broadcast %19 : vector<1x8x128xf32> to vector<16x8x128xf32>
    %21 = arith.subf %17, %20 : vector<16x8x128xf32>
    %22 = math.exp %21 : vector<16x8x128xf32>
    %cst_17 = arith.constant dense<0.000000e+00> : vector<8x128xf32>
    %23 = vector.multi_reduction <add>, %22, %cst_17 [0] : vector<16x8x128xf32> to vector<8x128xf32>
    %24 = vector.shape_cast %23 : vector<8x128xf32> to vector<1x8x128xf32>
    %25 = tpu.reciprocal %24 {approx = true} : vector<1x8x128xf32> -> vector<1x8x128xf32>
    %26 = vector.broadcast %25 : vector<1x8x128xf32> to vector<16x8x128xf32>
    %27 = arith.mulf %22, %26 : vector<16x8x128xf32>
    %28 = vector.shape_cast %27 : vector<16x8x128xf32> to vector<128x128xf32>
    %29 = vector.shape_cast %11 : vector<128x128xf32> to vector<16x8x128xf32>
    %c0_18 = arith.constant 0 : index
    %c0_19 = arith.constant 0 : index
    %c0_20 = arith.constant 0 : index
    %30 = vector.load %arg11[%c0_18, %c0_19, %c0_20] : memref<4x128x128xf32, #tpu.memory_space<vmem>>, vector<4x128x128xf32>
    %31 = vector.extract_strided_slice %30 {offsets = [0, 0, 0], sizes = [1, 128, 128], strides = [1, 1, 1]} : vector<4x128x128xf32> to vector<1x128x128xf32>
    %32 = vector.shape_cast %31 : vector<1x128x128xf32> to vector<128x128xf32>
    %cst_21 = arith.constant dense<0.000000e+00> : vector<128x128xf32>
    %33 = tpu.matmul %28, %32, %cst_21 {dimension_numbers = #tpu.dot_dimension_numbers<[1], [0], [0], [1], [0, 0, 1, 1], [], []>} : vector<128x128xf32>, vector<128x128xf32>, vector<128x128xf32> -> vector<128x128xf32>
    %34 = vector.shape_cast %33 : vector<128x128xf32> to vector<16x8x128xf32>
    %35 = arith.mulf %34, %29 : vector<16x8x128xf32>
    %cst_22 = arith.constant dense<0.000000e+00> : vector<8x128xf32>
    %36 = vector.multi_reduction <add>, %35, %cst_22 [0] : vector<16x8x128xf32> to vector<8x128xf32>
    %37 = vector.extract_strided_slice %30 {offsets = [1, 0, 0], sizes = [1, 128, 128], strides = [1, 1, 1]} : vector<4x128x128xf32> to vector<1x128x128xf32>
    %38 = vector.shape_cast %37 : vector<1x128x128xf32> to vector<128x128xf32>
    %cst_23 = arith.constant dense<0.000000e+00> : vector<128x128xf32>
    %39 = tpu.matmul %28, %38, %cst_23 {dimension_numbers = #tpu.dot_dimension_numbers<[1], [0], [0], [1], [0, 0, 1, 1], [], []>} : vector<128x128xf32>, vector<128x128xf32>, vector<128x128xf32> -> vector<128x128xf32>
    %40 = vector.shape_cast %39 : vector<128x128xf32> to vector<16x8x128xf32>
    %41 = arith.mulf %40, %29 : vector<16x8x128xf32>
    %cst_24 = arith.constant dense<0.000000e+00> : vector<8x128xf32>
    %42 = vector.multi_reduction <add>, %41, %cst_24 [0] : vector<16x8x128xf32> to vector<8x128xf32>
    %43 = vector.extract_strided_slice %30 {offsets = [2, 0, 0], sizes = [1, 128, 128], strides = [1, 1, 1]} : vector<4x128x128xf32> to vector<1x128x128xf32>
    %44 = vector.shape_cast %43 : vector<1x128x128xf32> to vector<128x128xf32>
    %cst_25 = arith.constant dense<0.000000e+00> : vector<128x128xf32>
    %45 = tpu.matmul %28, %44, %cst_25 {dimension_numbers = #tpu.dot_dimension_numbers<[1], [0], [0], [1], [0, 0, 1, 1], [], []>} : vector<128x128xf32>, vector<128x128xf32>, vector<128x128xf32> -> vector<128x128xf32>
    %46 = vector.shape_cast %45 : vector<128x128xf32> to vector<16x8x128xf32>
    %47 = arith.mulf %46, %29 : vector<16x8x128xf32>
    %cst_26 = arith.constant dense<0.000000e+00> : vector<8x128xf32>
    %48 = vector.multi_reduction <add>, %47, %cst_26 [0] : vector<16x8x128xf32> to vector<8x128xf32>
    %49 = vector.extract_strided_slice %30 {offsets = [3, 0, 0], sizes = [1, 128, 128], strides = [1, 1, 1]} : vector<4x128x128xf32> to vector<1x128x128xf32>
    %50 = vector.shape_cast %49 : vector<1x128x128xf32> to vector<128x128xf32>
    %cst_27 = arith.constant dense<0.000000e+00> : vector<128x128xf32>
    %51 = tpu.matmul %28, %50, %cst_27 {dimension_numbers = #tpu.dot_dimension_numbers<[1], [0], [0], [1], [0, 0, 1, 1], [], []>} : vector<128x128xf32>, vector<128x128xf32>, vector<128x128xf32> -> vector<128x128xf32>
    %52 = vector.shape_cast %51 : vector<128x128xf32> to vector<16x8x128xf32>
    %53 = arith.mulf %52, %29 : vector<16x8x128xf32>
    %cst_28 = arith.constant dense<0.000000e+00> : vector<8x128xf32>
    %54 = vector.multi_reduction <add>, %53, %cst_28 [0] : vector<16x8x128xf32> to vector<8x128xf32>
    %55 = vector.shape_cast %36 : vector<8x128xf32> to vector<1x8x128xf32>
    %56 = vector.shape_cast %42 : vector<8x128xf32> to vector<1x8x128xf32>
    %57 = vector.shape_cast %48 : vector<8x128xf32> to vector<1x8x128xf32>
    %58 = vector.shape_cast %54 : vector<8x128xf32> to vector<1x8x128xf32>
    %59 = tpu.concatenate %55, %56, %57, %58 in 0 : vector<1x8x128xf32>, vector<1x8x128xf32>, vector<1x8x128xf32>, vector<1x8x128xf32> -> vector<4x8x128xf32>
    %c0_29 = arith.constant 0 : index
    %c0_30 = arith.constant 0 : index
    %c0_31 = arith.constant 0 : index
    %60 = vector.load %arg8[%c0_29, %c0_30, %c0_31] : memref<4x1x128xf32, #tpu.memory_space<vmem>>, vector<4x1x128xf32>
    %61 = vector.broadcast %60 : vector<4x1x128xf32> to vector<4x8x128xf32>
    %62 = arith.addf %59, %61 : vector<4x8x128xf32>
    %c0_32 = arith.constant 0 : index
    %c0_33 = arith.constant 0 : index
    %c0_34 = arith.constant 0 : index
    %63 = vector.load %arg9[%c0_32, %c0_33, %c0_34] : memref<8x1x128xf32, #tpu.memory_space<vmem>>, vector<8x1x128xf32>
    %c0_35 = arith.constant 0 : index
    %c0_36 = arith.constant 0 : index
    %c0_37 = arith.constant 0 : index
    %64 = vector.load %arg10[%c0_35, %c0_36, %c0_37] : memref<8x1x128xf32, #tpu.memory_space<vmem>>, vector<8x1x128xf32>
    %cst_38 = arith.constant 0.392699093 : f32
    %65 = vector.broadcast %cst_38 : f32 to vector<4x8x128xf32>
    %66 = arith.mulf %62, %65 : vector<4x8x128xf32>
    %67 = math.sin %66 : vector<4x8x128xf32>
    %68 = math.cos %66 : vector<4x8x128xf32>
    %69 = vector.extract_strided_slice %64 {offsets = [0, 0, 0], sizes = [1, 1, 128], strides = [1, 1, 1]} : vector<8x1x128xf32> to vector<1x1x128xf32>
    %70 = vector.shape_cast %69 : vector<1x1x128xf32> to vector<1x128xf32>
    %71 = vector.extract_strided_slice %63 {offsets = [1, 0, 0], sizes = [1, 1, 128], strides = [1, 1, 1]} : vector<8x1x128xf32> to vector<1x1x128xf32>
    %72 = vector.shape_cast %71 : vector<1x1x128xf32> to vector<1x128xf32>
    %73 = vector.shape_cast %72 : vector<1x128xf32> to vector<1x1x128xf32>
    %74 = vector.broadcast %73 : vector<1x1x128xf32> to vector<4x8x128xf32>
    %75 = arith.mulf %67, %74 : vector<4x8x128xf32>
    %76 = vector.shape_cast %70 : vector<1x128xf32> to vector<1x1x128xf32>
    %77 = vector.broadcast %76 : vector<1x1x128xf32> to vector<4x8x128xf32>
    %78 = arith.addf %77, %75 : vector<4x8x128xf32>
    %79 = vector.extract_strided_slice %64 {offsets = [1, 0, 0], sizes = [1, 1, 128], strides = [1, 1, 1]} : vector<8x1x128xf32> to vector<1x1x128xf32>
    %80 = vector.shape_cast %79 : vector<1x1x128xf32> to vector<1x128xf32>
    %81 = vector.shape_cast %80 : vector<1x128xf32> to vector<1x1x128xf32>
    %82 = vector.broadcast %81 : vector<1x1x128xf32> to vector<4x8x128xf32>
    %83 = arith.mulf %68, %82 : vector<4x8x128xf32>
    %84 = arith.addf %78, %83 : vector<4x8x128xf32>
    %85 = arith.mulf %67, %68 : vector<4x8x128xf32>
    %86 = arith.mulf %68, %67 : vector<4x8x128xf32>
    %87 = arith.addf %85, %86 : vector<4x8x128xf32>
    %88 = arith.mulf %68, %68 : vector<4x8x128xf32>
    %89 = arith.mulf %67, %67 : vector<4x8x128xf32>
    %90 = arith.subf %88, %89 : vector<4x8x128xf32>
    %91 = vector.extract_strided_slice %63 {offsets = [2, 0, 0], sizes = [1, 1, 128], strides = [1, 1, 1]} : vector<8x1x128xf32> to vector<1x1x128xf32>
    %92 = vector.shape_cast %91 : vector<1x1x128xf32> to vector<1x128xf32>
    %93 = vector.shape_cast %92 : vector<1x128xf32> to vector<1x1x128xf32>
    %94 = vector.broadcast %93 : vector<1x1x128xf32> to vector<4x8x128xf32>
    %95 = arith.mulf %87, %94 : vector<4x8x128xf32>
    %96 = arith.addf %84, %95 : vector<4x8x128xf32>
    %97 = vector.extract_strided_slice %64 {offsets = [2, 0, 0], sizes = [1, 1, 128], strides = [1, 1, 1]} : vector<8x1x128xf32> to vector<1x1x128xf32>
    %98 = vector.shape_cast %97 : vector<1x1x128xf32> to vector<1x128xf32>
    %99 = vector.shape_cast %98 : vector<1x128xf32> to vector<1x1x128xf32>
    %100 = vector.broadcast %99 : vector<1x1x128xf32> to vector<4x8x128xf32>
    %101 = arith.mulf %90, %100 : vector<4x8x128xf32>
    %102 = arith.addf %96, %101 : vector<4x8x128xf32>
    %103 = arith.mulf %87, %68 : vector<4x8x128xf32>
    %104 = arith.mulf %90, %67 : vector<4x8x128xf32>
    %105 = arith.addf %103, %104 : vector<4x8x128xf32>
    %106 = arith.mulf %90, %68 : vector<4x8x128xf32>
    %107 = arith.mulf %87, %67 : vector<4x8x128xf32>
    %108 = arith.subf %106, %107 : vector<4x8x128xf32>
    %109 = vector.extract_strided_slice %63 {offsets = [3, 0, 0], sizes = [1, 1, 128], strides = [1, 1, 1]} : vector<8x1x128xf32> to vector<1x1x128xf32>
    %110 = vector.shape_cast %109 : vector<1x1x128xf32> to vector<1x128xf32>
    %111 = vector.shape_cast %110 : vector<1x128xf32> to vector<1x1x128xf32>
    %112 = vector.broadcast %111 : vector<1x1x128xf32> to vector<4x8x128xf32>
    %113 = arith.mulf %105, %112 : vector<4x8x128xf32>
    %114 = arith.addf %102, %113 : vector<4x8x128xf32>
    %115 = vector.extract_strided_slice %64 {offsets = [3, 0, 0], sizes = [1, 1, 128], strides = [1, 1, 1]} : vector<8x1x128xf32> to vector<1x1x128xf32>
    %116 = vector.shape_cast %115 : vector<1x1x128xf32> to vector<1x128xf32>
    %117 = vector.shape_cast %116 : vector<1x128xf32> to vector<1x1x128xf32>
    %118 = vector.broadcast %117 : vector<1x1x128xf32> to vector<4x8x128xf32>
    %119 = arith.mulf %108, %118 : vector<4x8x128xf32>
    %120 = arith.addf %114, %119 : vector<4x8x128xf32>
    %121 = arith.mulf %105, %68 : vector<4x8x128xf32>
    %122 = arith.mulf %108, %67 : vector<4x8x128xf32>
    %123 = arith.addf %121, %122 : vector<4x8x128xf32>
    %124 = arith.mulf %108, %68 : vector<4x8x128xf32>
    %125 = arith.mulf %105, %67 : vector<4x8x128xf32>
    %126 = arith.subf %124, %125 : vector<4x8x128xf32>
    %127 = vector.extract_strided_slice %63 {offsets = [4, 0, 0], sizes = [1, 1, 128], strides = [1, 1, 1]} : vector<8x1x128xf32> to vector<1x1x128xf32>
    %128 = vector.shape_cast %127 : vector<1x1x128xf32> to vector<1x128xf32>
    %129 = vector.shape_cast %128 : vector<1x128xf32> to vector<1x1x128xf32>
    %130 = vector.broadcast %129 : vector<1x1x128xf32> to vector<4x8x128xf32>
    %131 = arith.mulf %123, %130 : vector<4x8x128xf32>
    %132 = arith.addf %120, %131 : vector<4x8x128xf32>
    %133 = vector.extract_strided_slice %64 {offsets = [4, 0, 0], sizes = [1, 1, 128], strides = [1, 1, 1]} : vector<8x1x128xf32> to vector<1x1x128xf32>
    %134 = vector.shape_cast %133 : vector<1x1x128xf32> to vector<1x128xf32>
    %135 = vector.shape_cast %134 : vector<1x128xf32> to vector<1x1x128xf32>
    %136 = vector.broadcast %135 : vector<1x1x128xf32> to vector<4x8x128xf32>
    %137 = arith.mulf %126, %136 : vector<4x8x128xf32>
    %138 = arith.addf %132, %137 : vector<4x8x128xf32>
    %139 = arith.mulf %123, %68 : vector<4x8x128xf32>
    %140 = arith.mulf %126, %67 : vector<4x8x128xf32>
    %141 = arith.addf %139, %140 : vector<4x8x128xf32>
    %142 = arith.mulf %126, %68 : vector<4x8x128xf32>
    %143 = arith.mulf %123, %67 : vector<4x8x128xf32>
    %144 = arith.subf %142, %143 : vector<4x8x128xf32>
    %145 = vector.extract_strided_slice %63 {offsets = [5, 0, 0], sizes = [1, 1, 128], strides = [1, 1, 1]} : vector<8x1x128xf32> to vector<1x1x128xf32>
    %146 = vector.shape_cast %145 : vector<1x1x128xf32> to vector<1x128xf32>
    %147 = vector.shape_cast %146 : vector<1x128xf32> to vector<1x1x128xf32>
    %148 = vector.broadcast %147 : vector<1x1x128xf32> to vector<4x8x128xf32>
    %149 = arith.mulf %141, %148 : vector<4x8x128xf32>
    %150 = arith.addf %138, %149 : vector<4x8x128xf32>
    %151 = vector.extract_strided_slice %64 {offsets = [5, 0, 0], sizes = [1, 1, 128], strides = [1, 1, 1]} : vector<8x1x128xf32> to vector<1x1x128xf32>
    %152 = vector.shape_cast %151 : vector<1x1x128xf32> to vector<1x128xf32>
    %153 = vector.shape_cast %152 : vector<1x128xf32> to vector<1x1x128xf32>
    %154 = vector.broadcast %153 : vector<1x1x128xf32> to vector<4x8x128xf32>
    %155 = arith.mulf %144, %154 : vector<4x8x128xf32>
    %156 = arith.addf %150, %155 : vector<4x8x128xf32>
    %157 = arith.mulf %141, %68 : vector<4x8x128xf32>
    %158 = arith.mulf %144, %67 : vector<4x8x128xf32>
    %159 = arith.addf %157, %158 : vector<4x8x128xf32>
    %160 = arith.mulf %144, %68 : vector<4x8x128xf32>
    %161 = arith.mulf %141, %67 : vector<4x8x128xf32>
    %162 = arith.subf %160, %161 : vector<4x8x128xf32>
    %163 = vector.extract_strided_slice %63 {offsets = [6, 0, 0], sizes = [1, 1, 128], strides = [1, 1, 1]} : vector<8x1x128xf32> to vector<1x1x128xf32>
    %164 = vector.shape_cast %163 : vector<1x1x128xf32> to vector<1x128xf32>
    %165 = vector.shape_cast %164 : vector<1x128xf32> to vector<1x1x128xf32>
    %166 = vector.broadcast %165 : vector<1x1x128xf32> to vector<4x8x128xf32>
    %167 = arith.mulf %159, %166 : vector<4x8x128xf32>
    %168 = arith.addf %156, %167 : vector<4x8x128xf32>
    %169 = vector.extract_strided_slice %64 {offsets = [6, 0, 0], sizes = [1, 1, 128], strides = [1, 1, 1]} : vector<8x1x128xf32> to vector<1x1x128xf32>
    %170 = vector.shape_cast %169 : vector<1x1x128xf32> to vector<1x128xf32>
    %171 = vector.shape_cast %170 : vector<1x128xf32> to vector<1x1x128xf32>
    %172 = vector.broadcast %171 : vector<1x1x128xf32> to vector<4x8x128xf32>
    %173 = arith.mulf %162, %172 : vector<4x8x128xf32>
    %174 = arith.addf %168, %173 : vector<4x8x128xf32>
    %175 = arith.mulf %159, %68 : vector<4x8x128xf32>
    %176 = arith.mulf %162, %67 : vector<4x8x128xf32>
    %177 = arith.addf %175, %176 : vector<4x8x128xf32>
    %178 = arith.mulf %162, %68 : vector<4x8x128xf32>
    %179 = arith.mulf %159, %67 : vector<4x8x128xf32>
    %180 = arith.subf %178, %179 : vector<4x8x128xf32>
    %181 = vector.extract_strided_slice %63 {offsets = [7, 0, 0], sizes = [1, 1, 128], strides = [1, 1, 1]} : vector<8x1x128xf32> to vector<1x1x128xf32>
    %182 = vector.shape_cast %181 : vector<1x1x128xf32> to vector<1x128xf32>
    %183 = vector.shape_cast %182 : vector<1x128xf32> to vector<1x1x128xf32>
    %184 = vector.broadcast %183 : vector<1x1x128xf32> to vector<4x8x128xf32>
    %185 = arith.mulf %177, %184 : vector<4x8x128xf32>
    %186 = arith.addf %174, %185 : vector<4x8x128xf32>
    %187 = vector.extract_strided_slice %64 {offsets = [7, 0, 0], sizes = [1, 1, 128], strides = [1, 1, 1]} : vector<8x1x128xf32> to vector<1x1x128xf32>
    %188 = vector.shape_cast %187 : vector<1x1x128xf32> to vector<1x128xf32>
    %189 = vector.shape_cast %188 : vector<1x128xf32> to vector<1x1x128xf32>
    %190 = vector.broadcast %189 : vector<1x1x128xf32> to vector<4x8x128xf32>
    %191 = arith.mulf %180, %190 : vector<4x8x128xf32>
    %192 = arith.addf %186, %191 : vector<4x8x128xf32>
    %193 = arith.addf %62, %192 : vector<4x8x128xf32>
    %194 = vector.shape_cast %16 : vector<128x128xf32> to vector<1x16x8x128xf32>
    %195 = vector.shape_cast %193 : vector<4x8x128xf32> to vector<4x1x8x128xf32>
    %196 = vector.broadcast %194 : vector<1x16x8x128xf32> to vector<4x16x8x128xf32>
    %197 = vector.broadcast %195 : vector<4x1x8x128xf32> to vector<4x16x8x128xf32>
    %198 = arith.mulf %196, %197 : vector<4x16x8x128xf32>
    %199 = vector.shape_cast %198 : vector<4x16x8x128xf32> to vector<512x128xf32>
    %c0_39 = arith.constant 0 : index
    %c0_40 = arith.constant 0 : index
    %200 = vector.load %arg12[%c0_39, %c0_40] : memref<128x32xf32, #tpu.memory_space<vmem>>, vector<128x32xf32>
    %cst_41 = arith.constant dense<0.000000e+00> : vector<512x32xf32>
    %201 = tpu.matmul %199, %200, %cst_41 {dimension_numbers = #tpu.dot_dimension_numbers<[1], [0], [0], [1], [0, 0, 1, 1], [], []>} : vector<512x128xf32>, vector<128x32xf32>, vector<512x32xf32> -> vector<512x32xf32>
    %202 = vector.shape_cast %201 : vector<512x32xf32> to vector<4x128x32xf32>
    %cst_42 = arith.constant dense<0xFF800000> : vector<128x32xf32>
    %203 = vector.multi_reduction <maximumf>, %202, %cst_42 [0] : vector<4x128x32xf32> to vector<128x32xf32>
    %204 = vector.shape_cast %203 : vector<128x32xf32> to vector<1x128x32xf32>
    %205 = vector.broadcast %204 : vector<1x128x32xf32> to vector<4x128x32xf32>
    %206 = arith.subf %202, %205 : vector<4x128x32xf32>
    %207 = math.exp %206 : vector<4x128x32xf32>
    %cst_43 = arith.constant dense<0.000000e+00> : vector<128x32xf32>
    %208 = vector.multi_reduction <add>, %207, %cst_43 [0] : vector<4x128x32xf32> to vector<128x32xf32>
    %209 = vector.shape_cast %208 : vector<128x32xf32> to vector<1x128x32xf32>
    %210 = tpu.reciprocal %209 {approx = true} : vector<1x128x32xf32> -> vector<1x128x32xf32>
    %211 = vector.broadcast %210 : vector<1x128x32xf32> to vector<4x128x32xf32>
    %212 = arith.mulf %207, %211 : vector<4x128x32xf32>
    %213 = vector.shape_cast %212 : vector<4x128x32xf32> to vector<512x32xf32>
    %c0_44 = arith.constant 0 : index
    %c0_45 = arith.constant 0 : index
    %214 = vector.load %arg13[%c0_44, %c0_45] : memref<32x128xf32, #tpu.memory_space<vmem>>, vector<32x128xf32>
    %cst_46 = arith.constant dense<0.000000e+00> : vector<512x128xf32>
    %215 = tpu.matmul %213, %214, %cst_46 {dimension_numbers = #tpu.dot_dimension_numbers<[1], [0], [0], [1], [0, 0, 1, 1], [], []>} : vector<512x32xf32>, vector<32x128xf32>, vector<512x128xf32> -> vector<512x128xf32>
    %216 = vector.shape_cast %215 : vector<512x128xf32> to vector<4x16x8x128xf32>
    %217 = vector.shape_cast %193 : vector<4x8x128xf32> to vector<4x1x8x128xf32>
    %218 = vector.broadcast %217 : vector<4x1x8x128xf32> to vector<4x16x8x128xf32>
    %219 = arith.mulf %216, %218 : vector<4x16x8x128xf32>
    %cst_47 = arith.constant dense<0.000000e+00> : vector<16x8x128xf32>
    %220 = vector.multi_reduction <add>, %219, %cst_47 [0] : vector<4x16x8x128xf32> to vector<16x8x128xf32>
    %221 = arith.addf %0, %220 : vector<16x8x128xf32>
    %c0_48 = arith.constant 0 : index
    %c0_49 = arith.constant 0 : index
    %c0_50 = arith.constant 0 : index
    %222 = vector.load %arg14[%c0_48, %c0_49, %c0_50] : memref<16x8x128xf32, #tpu.memory_space<vmem>>, vector<16x8x128xf32>
    tpu.vector_store %arg14[%c0_48, %c0_49, %c0_50], %221 {strides = array<i32>} : memref<16x8x128xf32, #tpu.memory_space<vmem>>, vector<16x8x128xf32>,
    return
  }
  func.func @transform_0(%arg0: i32) -> (i32, i32, i32) {
    %c0_i32 = arith.constant 0 : i32
    %c0_i32_0 = arith.constant 0 : i32
    %c0_i32_1 = arith.constant 0 : i32
    return %c0_i32, %arg0, %c0_i32_0 : i32, i32, i32
  }
  func.func @transform_1(%arg0: i32) -> (i32, i32) {
    %c0_i32 = arith.constant 0 : i32
    %c0_i32_0 = arith.constant 0 : i32
    %c0_i32_1 = arith.constant 0 : i32
    return %c0_i32, %c0_i32_0 : i32, i32
  }
  func.func @transform_2(%arg0: i32) -> (i32, i32) {
    %c0_i32 = arith.constant 0 : i32
    %c0_i32_0 = arith.constant 0 : i32
    %c0_i32_1 = arith.constant 0 : i32
    return %c0_i32, %c0_i32_0 : i32, i32
  }
  func.func @transform_3(%arg0: i32) -> (i32, i32) {
    %c0_i32 = arith.constant 0 : i32
    %c0_i32_0 = arith.constant 0 : i32
    %c0_i32_1 = arith.constant 0 : i32
    return %c0_i32, %c0_i32_0 : i32, i32
  }
  func.func @transform_4(%arg0: i32) -> (i32, i32) {
    %c0_i32 = arith.constant 0 : i32
    %c0_i32_0 = arith.constant 0 : i32
    %c0_i32_1 = arith.constant 0 : i32
    return %c0_i32, %c0_i32_0 : i32, i32
  }
  func.func @transform_5(%arg0: i32) -> (i32, i32) {
    %c0_i32 = arith.constant 0 : i32
    %c0_i32_0 = arith.constant 0 : i32
    %c0_i32_1 = arith.constant 0 : i32
    return %c0_i32, %c0_i32_0 : i32, i32
  }
  func.func @transform_6(%arg0: i32) -> (i32, i32) {
    %c0_i32 = arith.constant 0 : i32
    %c0_i32_0 = arith.constant 0 : i32
    %c0_i32_1 = arith.constant 0 : i32
    return %c0_i32, %c0_i32_0 : i32, i32
  }
  func.func @transform_7(%arg0: i32) -> (i32, i32, i32) {
    %c0_i32 = arith.constant 0 : i32
    %c0_i32_0 = arith.constant 0 : i32
    %c0_i32_1 = arith.constant 0 : i32
    %c0_i32_2 = arith.constant 0 : i32
    return %c0_i32, %c0_i32_0, %c0_i32_1 : i32, i32, i32
  }
  func.func @transform_8(%arg0: i32) -> (i32, i32, i32) {
    %c0_i32 = arith.constant 0 : i32
    %c0_i32_0 = arith.constant 0 : i32
    %c0_i32_1 = arith.constant 0 : i32
    %c0_i32_2 = arith.constant 0 : i32
    return %c0_i32, %c0_i32_0, %c0_i32_1 : i32, i32, i32
  }
  func.func @transform_9(%arg0: i32) -> (i32, i32, i32) {
    %c0_i32 = arith.constant 0 : i32
    %c0_i32_0 = arith.constant 0 : i32
    %c0_i32_1 = arith.constant 0 : i32
    %c0_i32_2 = arith.constant 0 : i32
    return %c0_i32, %c0_i32_0, %c0_i32_1 : i32, i32, i32
  }
  func.func @transform_10(%arg0: i32) -> (i32, i32, i32) {
    %c0_i32 = arith.constant 0 : i32
    %c0_i32_0 = arith.constant 0 : i32
    %c0_i32_1 = arith.constant 0 : i32
    %c0_i32_2 = arith.constant 0 : i32
    return %c0_i32, %c0_i32_0, %c0_i32_1 : i32, i32, i32
  }
  func.func @transform_11(%arg0: i32) -> (i32, i32) {
    %c0_i32 = arith.constant 0 : i32
    %c0_i32_0 = arith.constant 0 : i32
    %c0_i32_1 = arith.constant 0 : i32
    return %c0_i32, %c0_i32_0 : i32, i32
  }
  func.func @transform_12(%arg0: i32) -> (i32, i32) {
    %c0_i32 = arith.constant 0 : i32
    %c0_i32_0 = arith.constant 0 : i32
    %c0_i32_1 = arith.constant 0 : i32
    return %c0_i32, %c0_i32_0 : i32, i32
  }
  func.func @transform_13(%arg0: i32) -> (i32, i32, i32) {
    %c0_i32 = arith.constant 0 : i32
    %c0_i32_0 = arith.constant 0 : i32
    %c0_i32_1 = arith.constant 0 : i32
    return %c0_i32, %arg0, %c0_i32_0 : i32, i32, i32
  }
}

</mosaic_0001>

<llo_original>
// kernel: tpu_custom_call.1
$region0: #{tpu_custom_call.1}
  #allocation0 [shape = 'u32[]', space=smem, size = 0x4, offset = 0x4, fixed_abs, tag = 'smem constant byte address 0x4 - core index']
  #allocation1 [shape = 'u32[72,128]{1,0:T(1,128)}', space=vmem, size = 0x9000, scoped, tag = 'internal scratch']
  %s0 = inlined_call_operand.vmem [shape: f32[16,8,128], index: 0, kind: input, shape index: {}]
  %s1 = inlined_call_operand.hbm [shape: f32[128,128], index: 1, kind: input, shape index: {}]
  %s2 = inlined_call_operand.vmem [shape: f32[1,128], index: 2, kind: input, shape index: {}]
  %s3 = inlined_call_operand.hbm [shape: f32[128,128], index: 3, kind: input, shape index: {}]
  %s4 = inlined_call_operand.hbm [shape: f32[1,128], index: 4, kind: input, shape index: {}]
  %s5 = inlined_call_operand.hbm [shape: f32[128,128], index: 5, kind: input, shape index: {}]
  %s6 = inlined_call_operand.hbm [shape: f32[1,128], index: 6, kind: input, shape index: {}]
  %s7 = inlined_call_operand.vmem [shape: f32[4,1,128], index: 7, kind: input, shape index: {}]
  %s8 = inlined_call_operand.hbm [shape: f32[8,1,128], index: 8, kind: input, shape index: {}]
  %s9 = inlined_call_operand.hbm [shape: f32[8,1,128], index: 9, kind: input, shape index: {}]
  %s10 = inlined_call_operand.hbm [shape: f32[4,128,128], index: 10, kind: input, shape index: {}]
  %s11 = inlined_call_operand.vmem [shape: f32[128,32], index: 11, kind: input, shape index: {}]
  %s12 = inlined_call_operand.vmem [shape: f32[32,128], index: 12, kind: input, shape index: {}]
  %s13 = inlined_call_operand.hbm [shape: f32[16,8,128], index: 13, kind: output, shape index: {}]
  %s14 = sld [smem:[#allocation0]]
  $region94: #{tpu_custom_call.1} parent=0
    _
  %s16 = ssub.s32 1, %s14
  %s17 = scalar_select 0, %s16, %s14
  $region1: #{tpu_custom_call.1} parent=0
    #allocation2 [shape = 'u8[65536]{0}', space=vmem, size = 0x10000, scoped, tag = 'input window, operand 1, single buffered']
    #allocation3 [shape = 's32[1]{0}', space=sflag, size = 0x4, scoped, tag = 'scoped memory for tpu_custom_call.1']
    #allocation4 [shape = 's32[1]{0}', space=sflag, size = 0x4, scoped, tag = 'scoped memory for tpu_custom_call.1']
    #allocation5 [shape = 'u8[65536]{0}', space=vmem, size = 0x10000, scoped, tag = 'input window, operand 3, single buffered']
    #allocation6 [shape = 's32[1]{0}', space=sflag, size = 0x4, scoped, tag = 'scoped memory for tpu_custom_call.1']
    #allocation7 [shape = 'u8[512]{0}', space=vmem, size = 0x400, scoped, tag = 'input window, operand 4, single buffered']
    #allocation8 [shape = 'u8[65536]{0}', space=vmem, size = 0x10000, scoped, tag = 'input window, operand 5, single buffered']
    #allocation9 [shape = 's32[1]{0}', space=sflag, size = 0x4, scoped, tag = 'scoped memory for tpu_custom_call.1']
    #allocation10 [shape = 'u8[512]{0}', space=vmem, size = 0x400, scoped, tag = 'input window, operand 6, single buffered']
    #allocation11 [shape = 'u8[4096]{0}', space=vmem, size = 0x1000, scoped, tag = 'input window, operand 8, single buffered']
    #allocation12 [shape = 's32[1]{0}', space=sflag, size = 0x4, scoped, tag = 'scoped memory for tpu_custom_call.1']
    #allocation13 [shape = 'u8[4096]{0}', space=vmem, size = 0x1000, scoped, tag = 'input window, operand 9, single buffered']
    #allocation14 [shape = 'u8[262144]{0}', space=vmem, size = 0x40000, scoped, tag = 'input window, operand 10, single buffered']
    #allocation15 [shape = 's32[1]{0}', space=sflag, size = 0x4, scoped, tag = 'scoped memory for tpu_custom_call.1']
    #allocation16 [shape = 'u8[65536]{0}', space=vmem, size = 0x10000, scoped, tag = 'output window, operand 0, single buffered']
    %18 = vsyncpa [#allocation3], 0
    %19 = vsyncpa [#allocation6], 0
    %20 = vsyncpa [#allocation9], 0
    %21 = vsyncpa [#allocation12], 0
    %22 = vsyncpa [#allocation15], 0
    %23 = vsyncpa [#allocation4], 0
    // Predicated region
    $region2: #{tpu_custom_call.1} parent=1 // pred_check
      _
    $region3: #{tpu_custom_call.1} parent=1 // pred_check_branch
      %25 = sbr.rel (0) target = $region5
    $region4: #{tpu_custom_call.1} parent=1 // pred_region
      _
    $region5: #{tpu_custom_call.1} parent=1 // pred_fallthru
      _
    // Predicated region
    $region6: #{tpu_custom_call.1} parent=1 // pred_check
      _
    $region7: #{tpu_custom_call.1} parent=1 // pred_check_branch
      %27 = sbr.rel (0) target = $region9
    $region8: #{tpu_custom_call.1} parent=1 // pred_region
      %29 = vsyncadd [#allocation3], 0
      %s30 = sshll.u32 %s1, 4
      %s31 = int_to_ptr.hbm [resolvable:$true] %s30
      %s32 = sshll.u32 [#allocation2], 4
      %s33 = int_to_ptr.vmem [resolvable:$true] %s32
      %38 = dma.hbm_to_vmem [thread:$0]  %s31, 2048, %s33, [#allocation3], 128, 128, 8
    $region9: #{tpu_custom_call.1} parent=1 // pred_fallthru
      _
    // Predicated region
    $region10: #{tpu_custom_call.1} parent=1 // pred_check
      _
    $region11: #{tpu_custom_call.1} parent=1 // pred_check_branch
      %40 = sbr.rel (0) target = $region13
    $region12: #{tpu_custom_call.1} parent=1 // pred_region
      _
    $region13: #{tpu_custom_call.1} parent=1 // pred_fallthru
      _
    // Predicated region
    $region14: #{tpu_custom_call.1} parent=1 // pred_check
      _
    $region15: #{tpu_custom_call.1} parent=1 // pred_check_branch
      %42 = sbr.rel (0) target = $region17
    $region16: #{tpu_custom_call.1} parent=1 // pred_region
      %44 = vsyncadd [#allocation6], 0
      %s45 = sshll.u32 %s3, 4
      %s46 = int_to_ptr.hbm [resolvable:$true] %s45
      %s47 = sshll.u32 [#allocation5], 4
      %s48 = int_to_ptr.vmem [resolvable:$true] %s47
      %53 = dma.hbm_to_vmem [thread:$0]  %s46, 2048, %s48, [#allocation6], 128, 128, 8
    $region17: #{tpu_custom_call.1} parent=1 // pred_fallthru
      _
    // Predicated region
    $region18: #{tpu_custom_call.1} parent=1 // pred_check
      _
    $region19: #{tpu_custom_call.1} parent=1 // pred_check_branch
      %55 = sbr.rel (0) target = $region21
    $region20: #{tpu_custom_call.1} parent=1 // pred_region
      %57 = vsyncadd [#allocation6], 0
      %s59 = sshll.u32 %s4, 4
      %s60 = int_to_ptr.hbm [resolvable:$true] %s59
      %s61 = sshll.u32 [#allocation7], 4
      %s62 = int_to_ptr.vmem [resolvable:$true] %s61
      %64 = dma.hbm_to_vmem [thread:$0]  %s60, 16, %s62, [#allocation6]
    $region21: #{tpu_custom_call.1} parent=1 // pred_fallthru
      _
    // Predicated region
    $region22: #{tpu_custom_call.1} parent=1 // pred_check
      _
    $region23: #{tpu_custom_call.1} parent=1 // pred_check_branch
      %66 = sbr.rel (0) target = $region25
    $region24: #{tpu_custom_call.1} parent=1 // pred_region
      %68 = vsyncadd [#allocation9], 0
      %s69 = sshll.u32 %s5, 4
      %s70 = int_to_ptr.hbm [resolvable:$true] %s69
      %s71 = sshll.u32 [#allocation8], 4
      %s72 = int_to_ptr.vmem [resolvable:$true] %s71
      %77 = dma.hbm_to_vmem [thread:$0]  %s70, 2048, %s72, [#allocation9], 128, 128, 8
    $region25: #{tpu_custom_call.1} parent=1 // pred_fallthru
      _
    // Predicated region
    $region26: #{tpu_custom_call.1} parent=1 // pred_check
      _
    $region27: #{tpu_custom_call.1} parent=1 // pred_check_branch
      %79 = sbr.rel (0) target = $region29
    $region28: #{tpu_custom_call.1} parent=1 // pred_region
      %81 = vsyncadd [#allocation9], 0
      %s83 = sshll.u32 %s6, 4
      %s84 = int_to_ptr.hbm [resolvable:$true] %s83
      %s85 = sshll.u32 [#allocation10], 4
      %s86 = int_to_ptr.vmem [resolvable:$true] %s85
      %88 = dma.hbm_to_vmem [thread:$0]  %s84, 16, %s86, [#allocation9]
    $region29: #{tpu_custom_call.1} parent=1 // pred_fallthru
      _
    // Predicated region
    $region30: #{tpu_custom_call.1} parent=1 // pred_check
      _
    $region31: #{tpu_custom_call.1} parent=1 // pred_check_branch
      %90 = sbr.rel (0) target = $region33
    $region32: #{tpu_custom_call.1} parent=1 // pred_region
      _
    $region33: #{tpu_custom_call.1} parent=1 // pred_fallthru
      _
    // Predicated region
    $region34: #{tpu_custom_call.1} parent=1 // pred_check
      _
    $region35: #{tpu_custom_call.1} parent=1 // pred_check_branch
      %92 = sbr.rel (0) target = $region37
    $region36: #{tpu_custom_call.1} parent=1 // pred_region
      %94 = vsyncadd [#allocation12], 0
      %s95 = sshll.u32 %s8, 4
      %s96 = int_to_ptr.hbm [resolvable:$true] %s95
      %s97 = sshll.u32 [#allocation11], 4
      %s98 = int_to_ptr.vmem [resolvable:$true] %s97
      %103 = dma.hbm_to_vmem [thread:$0]  %s96, 128, %s98, [#allocation12], 16, 16, 1
    $region37: #{tpu_custom_call.1} parent=1 // pred_fallthru
      _
    // Predicated region
    $region38: #{tpu_custom_call.1} parent=1 // pred_check
      _
    $region39: #{tpu_custom_call.1} parent=1 // pred_check_branch
      %105 = sbr.rel (0) target = $region41
    $region40: #{tpu_custom_call.1} parent=1 // pred_region
      %107 = vsyncadd [#allocation12], 0
      %s108 = sshll.u32 %s9, 4
      %s109 = int_to_ptr.hbm [resolvable:$true] %s108
      %s110 = sshll.u32 [#allocation13], 4
      %s111 = int_to_ptr.vmem [resolvable:$true] %s110
      %116 = dma.hbm_to_vmem [thread:$0]  %s109, 128, %s111, [#allocation12], 16, 16, 1
    $region41: #{tpu_custom_call.1} parent=1 // pred_fallthru
      _
    // Predicated region
    $region42: #{tpu_custom_call.1} parent=1 // pred_check
      _
    $region43: #{tpu_custom_call.1} parent=1 // pred_check_branch
      %118 = sbr.rel (0) target = $region45
    $region44: #{tpu_custom_call.1} parent=1 // pred_region
      %120 = vsyncadd [#allocation15], 0
      %s121 = sshll.u32 %s10, 4
      %s122 = int_to_ptr.hbm [resolvable:$true] %s121
      %s123 = sshll.u32 [#allocation14], 4
      %s124 = int_to_ptr.vmem [resolvable:$true] %s123
      %129 = dma.hbm_to_vmem [thread:$0]  %s122, 8192, %s124, [#allocation15], 128, 128, 8
    $region45: #{tpu_custom_call.1} parent=1 // pred_fallthru
      _
    // Predicated region
    $region46: #{tpu_custom_call.1} parent=1 // pred_check
      _
    $region47: #{tpu_custom_call.1} parent=1 // pred_check_branch
      %131 = sbr.rel (0) target = $region49
    $region48: #{tpu_custom_call.1} parent=1 // pred_region
      _
    $region49: #{tpu_custom_call.1} parent=1 // pred_fallthru
      _
    // Predicated region
    $region50: #{tpu_custom_call.1} parent=1 // pred_check
      _
    $region51: #{tpu_custom_call.1} parent=1 // pred_check_branch
      %133 = sbr.rel (0) target = $region53
    $region52: #{tpu_custom_call.1} parent=1 // pred_region
      _
    $region53: #{tpu_custom_call.1} parent=1 // pred_fallthru
      _
    // Predicated region
    $region54: #{tpu_custom_call.1} parent=1 // pred_check
      _
    $region55: #{tpu_custom_call.1} parent=1 // pred_check_branch
      %135 = sbr.rel (0) target = $region57
    $region56: #{tpu_custom_call.1} parent=1 // pred_region
      %137 = dma.done [#allocation3], 2048
    $region57: #{tpu_custom_call.1} parent=1 // pred_fallthru
      _
    // Predicated region
    $region58: #{tpu_custom_call.1} parent=1 // pred_check
      _
    $region59: #{tpu_custom_call.1} parent=1 // pred_check_branch
      %139 = sbr.rel (0) target = $region61
    $region60: #{tpu_custom_call.1} parent=1 // pred_region
      %141 = dma.done [#allocation6], 2048
    $region61: #{tpu_custom_call.1} parent=1 // pred_fallthru
      _
    // Predicated region
    $region62: #{tpu_custom_call.1} parent=1 // pred_check
      _
    $region63: #{tpu_custom_call.1} parent=1 // pred_check_branch
      %143 = sbr.rel (0) target = $region65
    $region64: #{tpu_custom_call.1} parent=1 // pred_region
      %145 = dma.done [#allocation6], 16
    $region65: #{tpu_custom_call.1} parent=1 // pred_fallthru
      _
    // Predicated region
    $region66: #{tpu_custom_call.1} parent=1 // pred_check
      _
    $region67: #{tpu_custom_call.1} parent=1 // pred_check_branch
      %147 = sbr.rel (0) target = $region69
    $region68: #{tpu_custom_call.1} parent=1 // pred_region
      %149 = dma.done [#allocation9], 2048
    $region69: #{tpu_custom_call.1} parent=1 // pred_fallthru
      _
    // Predicated region
    $region70: #{tpu_custom_call.1} parent=1 // pred_check
      _
    $region71: #{tpu_custom_call.1} parent=1 // pred_check_branch
      %151 = sbr.rel (0) target = $region73
    $region72: #{tpu_custom_call.1} parent=1 // pred_region
      %153 = dma.done [#allocation9], 16
    $region73: #{tpu_custom_call.1} parent=1 // pred_fallthru
      _
    // Predicated region
    $region74: #{tpu_custom_call.1} parent=1 // pred_check
      _
    $region75: #{tpu_custom_call.1} parent=1 // pred_check_branch
      %155 = sbr.rel (0) target = $region77
    $region76: #{tpu_custom_call.1} parent=1 // pred_region
      %157 = dma.done [#allocation12], 128
    $region77: #{tpu_custom_call.1} parent=1 // pred_fallthru
      _
    // Predicated region
    $region78: #{tpu_custom_call.1} parent=1 // pred_check
      _
    $region79: #{tpu_custom_call.1} parent=1 // pred_check_branch
      %159 = sbr.rel (0) target = $region81
    $region80: #{tpu_custom_call.1} parent=1 // pred_region
      %161 = dma.done [#allocation12], 128
    $region81: #{tpu_custom_call.1} parent=1 // pred_fallthru
      _
    // Predicated region
    $region82: #{tpu_custom_call.1} parent=1 // pred_check
      _
    $region83: #{tpu_custom_call.1} parent=1 // pred_check_branch
      %163 = sbr.rel (0) target = $region85
    $region84: #{tpu_custom_call.1} parent=1 // pred_region
      %165 = dma.done [#allocation15], 8192
    $region85: #{tpu_custom_call.1} parent=1 // pred_fallthru
      _
    %v166 = vld [vmem:[%s0] sm:$0xff]
    %v167 = vld [vmem:[%s0 + $0x8] sm:$0xff]
    %v168 = vld [vmem:[%s0 + $0x10] sm:$0xff]
    %v169 = vld [vmem:[%s0 + $0x18] sm:$0xff]
    %v170 = vld [vmem:[%s0 + $0x20] sm:$0xff]
    %v171 = vld [vmem:[%s0 + $0x28] sm:$0xff]
    %v172 = vld [vmem:[%s0 + $0x30] sm:$0xff]
    %v173 = vld [vmem:[%s0 + $0x38] sm:$0xff]
    %v174 = vld [vmem:[%s0 + $0x40] sm:$0xff]
    %v175 = vld [vmem:[%s0 + $0x48] sm:$0xff]
    %v176 = vld [vmem:[%s0 + $0x50] sm:$0xff]
    %v177 = vld [vmem:[%s0 + $0x58] sm:$0xff]
    %v178 = vld [vmem:[%s0 + $0x60] sm:$0xff]
    %v179 = vld [vmem:[%s0 + $0x68] sm:$0xff]
    %v180 = vld [vmem:[%s0 + $0x70] sm:$0xff]
    %v181 = vld [vmem:[%s0 + $0x78] sm:$0xff]
    %v182 = vld [vmem:[#allocation2] sm:$0xff]
    %v183 = vld [vmem:[#allocation2 + $0x8] sm:$0xff]
    %v184 = vld [vmem:[#allocation2 + $0x10] sm:$0xff]
    %v185 = vld [vmem:[#allocation2 + $0x18] sm:$0xff]
    %v186 = vld [vmem:[#allocation2 + $0x20] sm:$0xff]
    %v187 = vld [vmem:[#allocation2 + $0x28] sm:$0xff]
    %v188 = vld [vmem:[#allocation2 + $0x30] sm:$0xff]
    %v189 = vld [vmem:[#allocation2 + $0x38] sm:$0xff]
    %v190 = vld [vmem:[#allocation2 + $0x40] sm:$0xff]
    %v191 = vld [vmem:[#allocation2 + $0x48] sm:$0xff]
    %v192 = vld [vmem:[#allocation2 + $0x50] sm:$0xff]
    %v193 = vld [vmem:[#allocation2 + $0x58] sm:$0xff]
    %v194 = vld [vmem:[#allocation2 + $0x60] sm:$0xff]
    %v195 = vld [vmem:[#allocation2 + $0x68] sm:$0xff]
    %v196 = vld [vmem:[#allocation2 + $0x70] sm:$0xff]
    %v197 = vld [vmem:[#allocation2 + $0x78] sm:$0xff]
    %v198 = vld [vmem:[%s2] sm:$0x1]
    %v200 = vperm.slane %v198, 0
    %202 = vmatpush.msra.mxu0 %v197
    %203 = vmatpush.msra.mxu0 %v196
    %204 = vmatpush.msra.mxu0 %v195
    %205 = vmatpush.msra.mxu0 %v194
    %206 = vmatpush.msra.mxu0 %v193
    %207 = vmatpush.msra.mxu0 %v192
    %208 = vmatpush.msra.mxu0 %v191
    %209 = vmatpush.msra.mxu0 %v190
    %210 = vmatpush.msra.mxu0 %v189
    %211 = vmatpush.msra.mxu0 %v188
    %212 = vmatpush.msra.mxu0 %v187
    %213 = vmatpush.msra.mxu0 %v186
    %214 = vmatpush.msra.mxu0 %v185
    %215 = vmatpush.msra.mxu0 %v184
    %216 = vmatpush.msra.mxu0 %v183
    %217 = vmatpush.msra.mxu0 %v182
    %218 = vmatmul.f32.gmra.mxu0 %v166
    %v219 = vpop.f32.mrf.mxu0
    %v220 = vadd.f32 %v200, %v219
    %221 = vmatmul.f32.gmra.mxu0 %v167
    %v222 = vpop.f32.mrf.mxu0
    %v223 = vadd.f32 %v200, %v222
    %224 = vmatmul.f32.gmra.mxu0 %v168
    %v225 = vpop.f32.mrf.mxu0
    %v226 = vadd.f32 %v200, %v225
    %227 = vmatmul.f32.gmra.mxu0 %v169
    %v228 = vpop.f32.mrf.mxu0
    %v229 = vadd.f32 %v200, %v228
    %230 = vmatmul.f32.gmra.mxu0 %v170
    %v231 = vpop.f32.mrf.mxu0
    %v232 = vadd.f32 %v200, %v231
    %233 = vmatmul.f32.gmra.mxu0 %v171
    %v234 = vpop.f32.mrf.mxu0
    %v235 = vadd.f32 %v200, %v234
    %236 = vmatmul.f32.gmra.mxu0 %v172
    %v237 = vpop.f32.mrf.mxu0
    %v238 = vadd.f32 %v200, %v237
    %239 = vmatmul.f32.gmra.mxu0 %v173
    %v240 = vpop.f32.mrf.mxu0
    %v241 = vadd.f32 %v200, %v240
    %242 = vmatmul.f32.gmra.mxu0 %v174
    %v243 = vpop.f32.mrf.mxu0
    %v244 = vadd.f32 %v200, %v243
    %245 = vmatmul.f32.gmra.mxu0 %v175
    %v246 = vpop.f32.mrf.mxu0
    %v247 = vadd.f32 %v200, %v246
    %248 = vmatmul.f32.gmra.mxu0 %v176
    %v249 = vpop.f32.mrf.mxu0
    %v250 = vadd.f32 %v200, %v249
    %251 = vmatmul.f32.gmra.mxu0 %v177
    %v252 = vpop.f32.mrf.mxu0
    %v253 = vadd.f32 %v200, %v252
    %254 = vmatmul.f32.gmra.mxu0 %v178
    %v255 = vpop.f32.mrf.mxu0
    %v256 = vadd.f32 %v200, %v255
    %257 = vmatmul.f32.gmra.mxu0 %v179
    %v258 = vpop.f32.mrf.mxu0
    %v259 = vadd.f32 %v200, %v258
    %260 = vmatmul.f32.gmra.mxu0 %v180
    %v261 = vpop.f32.mrf.mxu0
    %v262 = vadd.f32 %v200, %v261
    %263 = vmatmul.f32.gmra.mxu0 %v181
    %v264 = vpop.f32.mrf.mxu0
    %v265 = vadd.f32 %v200, %v264
    %266 = vdwg.mxu0
    %v267 = vld [vmem:[#allocation5] sm:$0xff]
    %v268 = vld [vmem:[#allocation5 + $0x8] sm:$0xff]
    %v269 = vld [vmem:[#allocation5 + $0x10] sm:$0xff]
    %v270 = vld [vmem:[#allocation5 + $0x18] sm:$0xff]
    %v271 = vld [vmem:[#allocation5 + $0x20] sm:$0xff]
    %v272 = vld [vmem:[#allocation5 + $0x28] sm:$0xff]
    %v273 = vld [vmem:[#allocation5 + $0x30] sm:$0xff]
    %v274 = vld [vmem:[#allocation5 + $0x38] sm:$0xff]
    %v275 = vld [vmem:[#allocation5 + $0x40] sm:$0xff]
    %v276 = vld [vmem:[#allocation5 + $0x48] sm:$0xff]
    %v277 = vld [vmem:[#allocation5 + $0x50] sm:$0xff]
    %v278 = vld [vmem:[#allocation5 + $0x58] sm:$0xff]
    %v279 = vld [vmem:[#allocation5 + $0x60] sm:$0xff]
    %v280 = vld [vmem:[#allocation5 + $0x68] sm:$0xff]
    %v281 = vld [vmem:[#allocation5 + $0x70] sm:$0xff]
    %v282 = vld [vmem:[#allocation5 + $0x78] sm:$0xff]
    %v283 = vld [vmem:[#allocation7] sm:$0x1]
    %v285 = vperm.slane %v283, 0
    %287 = vmatpush.msra.mxu0 %v282
    %288 = vmatpush.msra.mxu0 %v281
    %289 = vmatpush.msra.mxu0 %v280
    %290 = vmatpush.msra.mxu0 %v279
    %291 = vmatpush.msra.mxu0 %v278
    %292 = vmatpush.msra.mxu0 %v277
    %293 = vmatpush.msra.mxu0 %v276
    %294 = vmatpush.msra.mxu0 %v275
    %295 = vmatpush.msra.mxu0 %v274
    %296 = vmatpush.msra.mxu0 %v273
    %297 = vmatpush.msra.mxu0 %v272
    %298 = vmatpush.msra.mxu0 %v271
    %299 = vmatpush.msra.mxu0 %v270
    %300 = vmatpush.msra.mxu0 %v269
    %301 = vmatpush.msra.mxu0 %v268
    %302 = vmatpush.msra.mxu0 %v267
    %303 = vmatmul.f32.gmra.mxu0 %v166
    %v304 = vpop.f32.mrf.mxu0
    %v305 = vadd.f32 %v285, %v304
    %306 = vmatmul.f32.gmra.mxu0 %v167
    %v307 = vpop.f32.mrf.mxu0
    %v308 = vadd.f32 %v285, %v307
    %309 = vmatmul.f32.gmra.mxu0 %v168
    %v310 = vpop.f32.mrf.mxu0
    %v311 = vadd.f32 %v285, %v310
    %312 = vmatmul.f32.gmra.mxu0 %v169
    %v313 = vpop.f32.mrf.mxu0
    %v314 = vadd.f32 %v285, %v313
    %315 = vmatmul.f32.gmra.mxu0 %v170
    %v316 = vpop.f32.mrf.mxu0
    %v317 = vadd.f32 %v285, %v316
    %318 = vmatmul.f32.gmra.mxu0 %v171
    %v319 = vpop.f32.mrf.mxu0
    %v320 = vadd.f32 %v285, %v319
    %321 = vmatmul.f32.gmra.mxu0 %v172
    %v322 = vpop.f32.mrf.mxu0
    %v323 = vadd.f32 %v285, %v322
    %324 = vmatmul.f32.gmra.mxu0 %v173
    %v325 = vpop.f32.mrf.mxu0
    %v326 = vadd.f32 %v285, %v325
    %327 = vmatmul.f32.gmra.mxu0 %v174
    %v328 = vpop.f32.mrf.mxu0
    %v329 = vadd.f32 %v285, %v328
    %330 = vmatmul.f32.gmra.mxu0 %v175
    %v331 = vpop.f32.mrf.mxu0
    %v332 = vadd.f32 %v285, %v331
    %333 = vmatmul.f32.gmra.mxu0 %v176
    %v334 = vpop.f32.mrf.mxu0
    %v335 = vadd.f32 %v285, %v334
    %336 = vmatmul.f32.gmra.mxu0 %v177
    %v337 = vpop.f32.mrf.mxu0
    %v338 = vadd.f32 %v285, %v337
    %339 = vmatmul.f32.gmra.mxu0 %v178
    %v340 = vpop.f32.mrf.mxu0
    %v341 = vadd.f32 %v285, %v340
    %342 = vmatmul.f32.gmra.mxu0 %v179
    %v343 = vpop.f32.mrf.mxu0
    %v344 = vadd.f32 %v285, %v343
    %345 = vmatmul.f32.gmra.mxu0 %v180
    %v346 = vpop.f32.mrf.mxu0
    %v347 = vadd.f32 %v285, %v346
    %348 = vmatmul.f32.gmra.mxu0 %v181
    %v349 = vpop.f32.mrf.mxu0
    %v350 = vadd.f32 %v285, %v349
    %351 = vdwg.mxu0
    %v352 = vld [vmem:[#allocation8] sm:$0xff]
    %v353 = vld [vmem:[#allocation8 + $0x8] sm:$0xff]
    %v354 = vld [vmem:[#allocation8 + $0x10] sm:$0xff]
    %v355 = vld [vmem:[#allocation8 + $0x18] sm:$0xff]
    %v356 = vld [vmem:[#allocation8 + $0x20] sm:$0xff]
    %v357 = vld [vmem:[#allocation8 + $0x28] sm:$0xff]
    %v358 = vld [vmem:[#allocation8 + $0x30] sm:$0xff]
    %v359 = vld [vmem:[#allocation8 + $0x38] sm:$0xff]
    %v360 = vld [vmem:[#allocation8 + $0x40] sm:$0xff]
    %v361 = vld [vmem:[#allocation8 + $0x48] sm:$0xff]
    %v362 = vld [vmem:[#allocation8 + $0x50] sm:$0xff]
    %v363 = vld [vmem:[#allocation8 + $0x58] sm:$0xff]
    %v364 = vld [vmem:[#allocation8 + $0x60] sm:$0xff]
    %v365 = vld [vmem:[#allocation8 + $0x68] sm:$0xff]
    %v366 = vld [vmem:[#allocation8 + $0x70] sm:$0xff]
    %v367 = vld [vmem:[#allocation8 + $0x78] sm:$0xff]
    %v368 = vld [vmem:[#allocation10] sm:$0x1]
    %v370 = vperm.slane %v368, 0
    %372 = vmatpush.msra.mxu0 %v367
    %373 = vmatpush.msra.mxu0 %v366
    %374 = vmatpush.msra.mxu0 %v365
    %375 = vmatpush.msra.mxu0 %v364
    %376 = vmatpush.msra.mxu0 %v363
    %377 = vmatpush.msra.mxu0 %v362
    %378 = vmatpush.msra.mxu0 %v361
    %379 = vmatpush.msra.mxu0 %v360
    %380 = vmatpush.msra.mxu0 %v359
    %381 = vmatpush.msra.mxu0 %v358
    %382 = vmatpush.msra.mxu0 %v357
    %383 = vmatpush.msra.mxu0 %v356
    %384 = vmatpush.msra.mxu0 %v355
    %385 = vmatpush.msra.mxu0 %v354
    %386 = vmatpush.msra.mxu0 %v353
    %387 = vmatpush.msra.mxu0 %v352
    %388 = vmatmul.f32.gmra.mxu0 %v166
    %v389 = vpop.f32.mrf.mxu0
    %v390 = vadd.f32 %v370, %v389
    %391 = vmatmul.f32.gmra.mxu0 %v167
    %v392 = vpop.f32.mrf.mxu0
    %v393 = vadd.f32 %v370, %v392
    %394 = vmatmul.f32.gmra.mxu0 %v168
    %v395 = vpop.f32.mrf.mxu0
    %v396 = vadd.f32 %v370, %v395
    %397 = vmatmul.f32.gmra.mxu0 %v169
    %v398 = vpop.f32.mrf.mxu0
    %v399 = vadd.f32 %v370, %v398
    %400 = vmatmul.f32.gmra.mxu0 %v170
    %v401 = vpop.f32.mrf.mxu0
    %v402 = vadd.f32 %v370, %v401
    %403 = vmatmul.f32.gmra.mxu0 %v171
    %v404 = vpop.f32.mrf.mxu0
    %v405 = vadd.f32 %v370, %v404
    %406 = vmatmul.f32.gmra.mxu0 %v172
    %v407 = vpop.f32.mrf.mxu0
    %v408 = vadd.f32 %v370, %v407
    %409 = vmatmul.f32.gmra.mxu0 %v173
    %v410 = vpop.f32.mrf.mxu0
    %v411 = vadd.f32 %v370, %v410
    %412 = vmatmul.f32.gmra.mxu0 %v174
    %v413 = vpop.f32.mrf.mxu0
    %v414 = vadd.f32 %v370, %v413
    %415 = vmatmul.f32.gmra.mxu0 %v175
    %v416 = vpop.f32.mrf.mxu0
    %v417 = vadd.f32 %v370, %v416
    %418 = vmatmul.f32.gmra.mxu0 %v176
    %v419 = vpop.f32.mrf.mxu0
    %v420 = vadd.f32 %v370, %v419
    %421 = vmatmul.f32.gmra.mxu0 %v177
    %v422 = vpop.f32.mrf.mxu0
    %v423 = vadd.f32 %v370, %v422
    %424 = vmatmul.f32.gmra.mxu0 %v178
    %v425 = vpop.f32.mrf.mxu0
    %v426 = vadd.f32 %v370, %v425
    %427 = vmatmul.f32.gmra.mxu0 %v179
    %v428 = vpop.f32.mrf.mxu0
    %v429 = vadd.f32 %v370, %v428
    %430 = vmatmul.f32.gmra.mxu0 %v180
    %v431 = vpop.f32.mrf.mxu0
    %v432 = vadd.f32 %v370, %v431
    %433 = vmatmul.f32.gmra.mxu0 %v181
    %v434 = vpop.f32.mrf.mxu0
    %v435 = vadd.f32 %v370, %v434
    %436 = vdwg.mxu0
    %v437 = vmax.f32 %v220, %v232
    %v438 = vmax.f32 %v223, %v235
    %v439 = vmax.f32 %v226, %v238
    %v440 = vmax.f32 %v229, %v241
    %v441 = vmax.f32 %v437, %v244
    %v442 = vmax.f32 %v438, %v247
    %v443 = vmax.f32 %v439, %v250
    %v444 = vmax.f32 %v440, %v253
    %v445 = vmax.f32 %v441, %v256
    %v446 = vmax.f32 %v442, %v259
    %v447 = vmax.f32 %v443, %v262
    %v448 = vmax.f32 %v444, %v265
    %v449 = vmax.f32 %v445, %v446
    %v450 = vmax.f32 %v447, %v448
    %v451 = vmax.f32 %v449, %v450
    %v452 = vsub.f32 %v220, %v451
    %v453 = vsub.f32 %v223, %v451
    %v454 = vsub.f32 %v226, %v451
    %v455 = vsub.f32 %v229, %v451
    %v456 = vsub.f32 %v232, %v451
    %v457 = vsub.f32 %v235, %v451
    %v458 = vsub.f32 %v238, %v451
    %v459 = vsub.f32 %v241, %v451
    %v460 = vsub.f32 %v244, %v451
    %v461 = vsub.f32 %v247, %v451
    %v462 = vsub.f32 %v250, %v451
    %v463 = vsub.f32 %v253, %v451
    %v464 = vsub.f32 %v256, %v451
    %v465 = vsub.f32 %v259, %v451
    %v466 = vsub.f32 %v262, %v451
    %v467 = vsub.f32 %v265, %v451
    %v468 = vmul.f32 %v452, 1.442695
    %v469 = vpow.pop %v468
    %v470 = vmul.f32 %v453, 1.442695
    %v471 = vpow.pop %v470
    %v472 = vmul.f32 %v454, 1.442695
    %v473 = vpow.pop %v472
    %v474 = vmul.f32 %v455, 1.442695
    %v475 = vpow.pop %v474
    %v476 = vmul.f32 %v456, 1.442695
    %v477 = vpow.pop %v476
    %v478 = vmul.f32 %v457, 1.442695
    %v479 = vpow.pop %v478
    %v480 = vmul.f32 %v458, 1.442695
    %v481 = vpow.pop %v480
    %v482 = vmul.f32 %v459, 1.442695
    %v483 = vpow.pop %v482
    %v484 = vmul.f32 %v460, 1.442695
    %v485 = vpow.pop %v484
    %v486 = vmul.f32 %v461, 1.442695
    %v487 = vpow.pop %v486
    %v488 = vmul.f32 %v462, 1.442695
    %v489 = vpow.pop %v488
    %v490 = vmul.f32 %v463, 1.442695
    %v491 = vpow.pop %v490
    %v492 = vmul.f32 %v464, 1.442695
    %v493 = vpow.pop %v492
    %v494 = vmul.f32 %v465, 1.442695
    %v495 = vpow.pop %v494
    %v496 = vmul.f32 %v466, 1.442695
    %v497 = vpow.pop %v496
    %v498 = vmul.f32 %v467, 1.442695
    %v499 = vpow.pop %v498
    %v500 = vadd.f32 %v469, %v471
    %v501 = vadd.f32 %v500, %v473
    %v502 = vadd.f32 %v501, %v475
    %v503 = vadd.f32 %v502, %v477
    %v504 = vadd.f32 %v503, %v479
    %v505 = vadd.f32 %v504, %v481
    %v506 = vadd.f32 %v505, %v483
    %v507 = vadd.f32 %v506, %v485
    %v508 = vadd.f32 %v507, %v487
    %v509 = vadd.f32 %v508, %v489
    %v510 = vadd.f32 %v509, %v491
    %v511 = vadd.f32 %v510, %v493
    %v512 = vadd.f32 %v511, %v495
    %v513 = vadd.f32 %v512, %v497
    %v514 = vadd.f32 %v513, %v499
    %v515 = vrcp.pop %v514
    %v516 = vmul.f32 %v469, %v515
    %v517 = vmul.f32 %v471, %v515
    %v518 = vmul.f32 %v473, %v515
    %v519 = vmul.f32 %v475, %v515
    %v520 = vmul.f32 %v477, %v515
    %v521 = vmul.f32 %v479, %v515
    %v522 = vmul.f32 %v481, %v515
    %v523 = vmul.f32 %v483, %v515
    %v524 = vmul.f32 %v485, %v515
    %v525 = vmul.f32 %v487, %v515
    %v526 = vmul.f32 %v489, %v515
    %v527 = vmul.f32 %v491, %v515
    %v528 = vmul.f32 %v493, %v515
    %v529 = vmul.f32 %v495, %v515
    %v530 = vmul.f32 %v497, %v515
    %v531 = vmul.f32 %v499, %v515
    %v532 = vld [vmem:[#allocation14] sm:$0xff]
    %v533 = vld [vmem:[#allocation14 + $0x8] sm:$0xff]
    %v534 = vld [vmem:[#allocation14 + $0x10] sm:$0xff]
    %v535 = vld [vmem:[#allocation14 + $0x18] sm:$0xff]
    %v536 = vld [vmem:[#allocation14 + $0x20] sm:$0xff]
    %v537 = vld [vmem:[#allocation14 + $0x28] sm:$0xff]
    %v538 = vld [vmem:[#allocation14 + $0x30] sm:$0xff]
    %v539 = vld [vmem:[#allocation14 + $0x38] sm:$0xff]
    %v540 = vld [vmem:[#allocation14 + $0x40] sm:$0xff]
    %v541 = vld [vmem:[#allocation14 + $0x48] sm:$0xff]
    %v542 = vld [vmem:[#allocation14 + $0x50] sm:$0xff]
    %v543 = vld [vmem:[#allocation14 + $0x58] sm:$0xff]
    %v544 = vld [vmem:[#allocation14 + $0x60] sm:$0xff]
    %v545 = vld [vmem:[#allocation14 + $0x68] sm:$0xff]
    %v546 = vld [vmem:[#allocation14 + $0x70] sm:$0xff]
    %v547 = vld [vmem:[#allocation14 + $0x78] sm:$0xff]
    %v548 = vld [vmem:[#allocation14 + $0x80] sm:$0xff]
    %v549 = vld [vmem:[#allocation14 + $0x88] sm:$0xff]
    %v550 = vld [vmem:[#allocation14 + $0x90] sm:$0xff]
    %v551 = vld [vmem:[#allocation14 + $0x98] sm:$0xff]
    %v552 = vld [vmem:[#allocation14 + $0xa0] sm:$0xff]
    %v553 = vld [vmem:[#allocation14 + $0xa8] sm:$0xff]
    %v554 = vld [vmem:[#allocation14 + $0xb0] sm:$0xff]
    %v555 = vld [vmem:[#allocation14 + $0xb8] sm:$0xff]
    %v556 = vld [vmem:[#allocation14 + $0xc0] sm:$0xff]
    %v557 = vld [vmem:[#allocation14 + $0xc8] sm:$0xff]
    %v558 = vld [vmem:[#allocation14 + $0xd0] sm:$0xff]
    %v559 = vld [vmem:[#allocation14 + $0xd8] sm:$0xff]
    %v560 = vld [vmem:[#allocation14 + $0xe0] sm:$0xff]
    %v561 = vld [vmem:[#allocation14 + $0xe8] sm:$0xff]
    %v562 = vld [vmem:[#allocation14 + $0xf0] sm:$0xff]
    %v563 = vld [vmem:[#allocation14 + $0xf8] sm:$0xff]
    %v564 = vld [vmem:[#allocation14 + $0x100] sm:$0xff]
    %v565 = vld [vmem:[#allocation14 + $0x108] sm:$0xff]
    %v566 = vld [vmem:[#allocation14 + $0x110] sm:$0xff]
    %v567 = vld [vmem:[#allocation14 + $0x118] sm:$0xff]
    %v568 = vld [vmem:[#allocation14 + $0x120] sm:$0xff]
    %v569 = vld [vmem:[#allocation14 + $0x128] sm:$0xff]
    %v570 = vld [vmem:[#allocation14 + $0x130] sm:$0xff]
    %v571 = vld [vmem:[#allocation14 + $0x138] sm:$0xff]
    %v572 = vld [vmem:[#allocation14 + $0x140] sm:$0xff]
    %v573 = vld [vmem:[#allocation14 + $0x148] sm:$0xff]
    %v574 = vld [vmem:[#allocation14 + $0x150] sm:$0xff]
    %v575 = vld [vmem:[#allocation14 + $0x158] sm:$0xff]
    %v576 = vld [vmem:[#allocation14 + $0x160] sm:$0xff]
    %v577 = vld [vmem:[#allocation14 + $0x168] sm:$0xff]
    %v578 = vld [vmem:[#allocation14 + $0x170] sm:$0xff]
    %v579 = vld [vmem:[#allocation14 + $0x178] sm:$0xff]
    %v580 = vld [vmem:[#allocation14 + $0x180] sm:$0xff]
    %v581 = vld [vmem:[#allocation14 + $0x188] sm:$0xff]
    %v582 = vld [vmem:[#allocation14 + $0x190] sm:$0xff]
    %v583 = vld [vmem:[#allocation14 + $0x198] sm:$0xff]
    %v584 = vld [vmem:[#allocation14 + $0x1a0] sm:$0xff]
    %v585 = vld [vmem:[#allocation14 + $0x1a8] sm:$0xff]
    %v586 = vld [vmem:[#allocation14 + $0x1b0] sm:$0xff]
    %v587 = vld [vmem:[#allocation14 + $0x1b8] sm:$0xff]
    %v588 = vld [vmem:[#allocation14 + $0x1c0] sm:$0xff]
    %v589 = vld [vmem:[#allocation14 + $0x1c8] sm:$0xff]
    %v590 = vld [vmem:[#allocation14 + $0x1d0] sm:$0xff]
    %v591 = vld [vmem:[#allocation14 + $0x1d8] sm:$0xff]
    %v592 = vld [vmem:[#allocation14 + $0x1e0] sm:$0xff]
    %v593 = vld [vmem:[#allocation14 + $0x1e8] sm:$0xff]
    %v594 = vld [vmem:[#allocation14 + $0x1f0] sm:$0xff]
    %v595 = vld [vmem:[#allocation14 + $0x1f8] sm:$0xff]
    %596 = vmatpush.msra.mxu0 %v547
    %597 = vmatpush.msra.mxu0 %v546
    %598 = vmatpush.msra.mxu0 %v545
    %599 = vmatpush.msra.mxu0 %v544
    %600 = vmatpush.msra.mxu0 %v543
    %601 = vmatpush.msra.mxu0 %v542
    %602 = vmatpush.msra.mxu0 %v541
    %603 = vmatpush.msra.mxu0 %v540
    %604 = vmatpush.msra.mxu0 %v539
    %605 = vmatpush.msra.mxu0 %v538
    %606 = vmatpush.msra.mxu0 %v537
    %607 = vmatpush.msra.mxu0 %v536
    %608 = vmatpush.msra.mxu0 %v535
    %609 = vmatpush.msra.mxu0 %v534
    %610 = vmatpush.msra.mxu0 %v533
    %611 = vmatpush.msra.mxu0 %v532
    %612 = vmatmul.f32.gmra.mxu0 %v516
    %v613 = vpop.f32.mrf.mxu0
    %v614 = vadd.f32 0.0, %v613
    %615 = vmatmul.f32.gmra.mxu0 %v517
    %v616 = vpop.f32.mrf.mxu0
    %v617 = vadd.f32 0.0, %v616
    %618 = vmatmul.f32.gmra.mxu0 %v518
    %v619 = vpop.f32.mrf.mxu0
    %v620 = vadd.f32 0.0, %v619
    %621 = vmatmul.f32.gmra.mxu0 %v519
    %v622 = vpop.f32.mrf.mxu0
    %v623 = vadd.f32 0.0, %v622
    %624 = vmatmul.f32.gmra.mxu0 %v520
    %v625 = vpop.f32.mrf.mxu0
    %v626 = vadd.f32 0.0, %v625
    %627 = vmatmul.f32.gmra.mxu0 %v521
    %v628 = vpop.f32.mrf.mxu0
    %v629 = vadd.f32 0.0, %v628
    %630 = vmatmul.f32.gmra.mxu0 %v522
    %v631 = vpop.f32.mrf.mxu0
    %v632 = vadd.f32 0.0, %v631
    %633 = vmatmul.f32.gmra.mxu0 %v523
    %v634 = vpop.f32.mrf.mxu0
    %v635 = vadd.f32 0.0, %v634
    %636 = vmatmul.f32.gmra.mxu0 %v524
    %v637 = vpop.f32.mrf.mxu0
    %v638 = vadd.f32 0.0, %v637
    %639 = vmatmul.f32.gmra.mxu0 %v525
    %v640 = vpop.f32.mrf.mxu0
    %v641 = vadd.f32 0.0, %v640
    %642 = vmatmul.f32.gmra.mxu0 %v526
    %v643 = vpop.f32.mrf.mxu0
    %v644 = vadd.f32 0.0, %v643
    %645 = vmatmul.f32.gmra.mxu0 %v527
    %v646 = vpop.f32.mrf.mxu0
    %v647 = vadd.f32 0.0, %v646
    %648 = vmatmul.f32.gmra.mxu0 %v528
    %v649 = vpop.f32.mrf.mxu0
    %v650 = vadd.f32 0.0, %v649
    %651 = vmatmul.f32.gmra.mxu0 %v529
    %v652 = vpop.f32.mrf.mxu0
    %v653 = vadd.f32 0.0, %v652
    %654 = vmatmul.f32.gmra.mxu0 %v530
    %v655 = vpop.f32.mrf.mxu0
    %v656 = vadd.f32 0.0, %v655
    %657 = vmatmul.f32.gmra.mxu0 %v531
    %v658 = vpop.f32.mrf.mxu0
    %v659 = vadd.f32 0.0, %v658
    %660 = vdwg.mxu0
    %v661 = vmul.f32 %v614, %v305
    %v662 = vmul.f32 %v617, %v308
    %v663 = vmul.f32 %v620, %v311
    %v664 = vmul.f32 %v623, %v314
    %v665 = vmul.f32 %v626, %v317
    %v666 = vmul.f32 %v629, %v320
    %v667 = vmul.f32 %v632, %v323
    %v668 = vmul.f32 %v635, %v326
    %v669 = vmul.f32 %v638, %v329
    %v670 = vmul.f32 %v641, %v332
    %v671 = vmul.f32 %v644, %v335
    %v672 = vmul.f32 %v647, %v338
    %v673 = vmul.f32 %v650, %v341
    %v674 = vmul.f32 %v653, %v344
    %v675 = vmul.f32 %v656, %v347
    %v676 = vmul.f32 %v659, %v350
    %v677 = vadd.f32 %v661, %v662
    %v678 = vadd.f32 %v677, %v663
    %v679 = vadd.f32 %v678, %v664
    %v680 = vadd.f32 %v679, %v665
    %v681 = vadd.f32 %v680, %v666
    %v682 = vadd.f32 %v681, %v667
    %v683 = vadd.f32 %v682, %v668
    %v684 = vadd.f32 %v683, %v669
    %v685 = vadd.f32 %v684, %v670
    %v686 = vadd.f32 %v685, %v671
    %v687 = vadd.f32 %v686, %v672
    %v688 = vadd.f32 %v687, %v673
    %v689 = vadd.f32 %v688, %v674
    %v690 = vadd.f32 %v689, %v675
    %v691 = vadd.f32 %v690, %v676
    %692 = vmatpush.msra.mxu0 %v563
    %693 = vmatpush.msra.mxu0 %v562
    %694 = vmatpush.msra.mxu0 %v561
    %695 = vmatpush.msra.mxu0 %v560
    %696 = vmatpush.msra.mxu0 %v559
    %697 = vmatpush.msra.mxu0 %v558
    %698 = vmatpush.msra.mxu0 %v557
    %699 = vmatpush.msra.mxu0 %v556
    %700 = vmatpush.msra.mxu0 %v555
    %701 = vmatpush.msra.mxu0 %v554
    %702 = vmatpush.msra.mxu0 %v553
    %703 = vmatpush.msra.mxu0 %v552
    %704 = vmatpush.msra.mxu0 %v551
    %705 = vmatpush.msra.mxu0 %v550
    %706 = vmatpush.msra.mxu0 %v549
    %707 = vmatpush.msra.mxu0 %v548
    %708 = vmatmul.f32.gmra.mxu0 %v516
    %v709 = vpop.f32.mrf.mxu0
    %v710 = vadd.f32 0.0, %v709
    %711 = vmatmul.f32.gmra.mxu0 %v517
    %v712 = vpop.f32.mrf.mxu0
    %v713 = vadd.f32 0.0, %v712
    %714 = vmatmul.f32.gmra.mxu0 %v518
    %v715 = vpop.f32.mrf.mxu0
    %v716 = vadd.f32 0.0, %v715
    %717 = vmatmul.f32.gmra.mxu0 %v519
    %v718 = vpop.f32.mrf.mxu0
    %v719 = vadd.f32 0.0, %v718
    %720 = vmatmul.f32.gmra.mxu0 %v520
    %v721 = vpop.f32.mrf.mxu0
    %v722 = vadd.f32 0.0, %v721
    %723 = vmatmul.f32.gmra.mxu0 %v521
    %v724 = vpop.f32.mrf.mxu0
    %v725 = vadd.f32 0.0, %v724
    %726 = vmatmul.f32.gmra.mxu0 %v522
    %v727 = vpop.f32.mrf.mxu0
    %v728 = vadd.f32 0.0, %v727
    %729 = vmatmul.f32.gmra.mxu0 %v523
    %v730 = vpop.f32.mrf.mxu0
    %v731 = vadd.f32 0.0, %v730
    %732 = vmatmul.f32.gmra.mxu0 %v524
    %v733 = vpop.f32.mrf.mxu0
    %v734 = vadd.f32 0.0, %v733
    %735 = vmatmul.f32.gmra.mxu0 %v525
    %v736 = vpop.f32.mrf.mxu0
    %v737 = vadd.f32 0.0, %v736
    %738 = vmatmul.f32.gmra.mxu0 %v526
    %v739 = vpop.f32.mrf.mxu0
    %v740 = vadd.f32 0.0, %v739
    %741 = vmatmul.f32.gmra.mxu0 %v527
    %v742 = vpop.f32.mrf.mxu0
    %v743 = vadd.f32 0.0, %v742
    %744 = vmatmul.f32.gmra.mxu0 %v528
    %v745 = vpop.f32.mrf.mxu0
    %v746 = vadd.f32 0.0, %v745
    %747 = vmatmul.f32.gmra.mxu0 %v529
    %v748 = vpop.f32.mrf.mxu0
    %v749 = vadd.f32 0.0, %v748
    %750 = vmatmul.f32.gmra.mxu0 %v530
    %v751 = vpop.f32.mrf.mxu0
    %v752 = vadd.f32 0.0, %v751
    %753 = vmatmul.f32.gmra.mxu0 %v531
    %v754 = vpop.f32.mrf.mxu0
    %v755 = vadd.f32 0.0, %v754
    %756 = vdwg.mxu0
    %v757 = vmul.f32 %v710, %v305
    %v758 = vmul.f32 %v713, %v308
    %v759 = vmul.f32 %v716, %v311
    %v760 = vmul.f32 %v719, %v314
    %v761 = vmul.f32 %v722, %v317
    %v762 = vmul.f32 %v725, %v320
    %v763 = vmul.f32 %v728, %v323
    %v764 = vmul.f32 %v731, %v326
    %v765 = vmul.f32 %v734, %v329
    %v766 = vmul.f32 %v737, %v332
    %v767 = vmul.f32 %v740, %v335
    %v768 = vmul.f32 %v743, %v338
    %v769 = vmul.f32 %v746, %v341
    %v770 = vmul.f32 %v749, %v344
    %v771 = vmul.f32 %v752, %v347
    %v772 = vmul.f32 %v755, %v350
    %v773 = vadd.f32 %v757, %v758
    %v774 = vadd.f32 %v773, %v759
    %v775 = vadd.f32 %v774, %v760
    %v776 = vadd.f32 %v775, %v761
    %v777 = vadd.f32 %v776, %v762
    %v778 = vadd.f32 %v777, %v763
    %v779 = vadd.f32 %v778, %v764
    %v780 = vadd.f32 %v779, %v765
    %v781 = vadd.f32 %v780, %v766
    %v782 = vadd.f32 %v781, %v767
    %v783 = vadd.f32 %v782, %v768
    %v784 = vadd.f32 %v783, %v769
    %v785 = vadd.f32 %v784, %v770
    %v786 = vadd.f32 %v785, %v771
    %v787 = vadd.f32 %v786, %v772
    %788 = vmatpush.msra.mxu0 %v579
    %789 = vmatpush.msra.mxu0 %v578
    %790 = vmatpush.msra.mxu0 %v577
    %791 = vmatpush.msra.mxu0 %v576
    %792 = vmatpush.msra.mxu0 %v575
    %793 = vmatpush.msra.mxu0 %v574
    %794 = vmatpush.msra.mxu0 %v573
    %795 = vmatpush.msra.mxu0 %v572
    %796 = vmatpush.msra.mxu0 %v571
    %797 = vmatpush.msra.mxu0 %v570
    %798 = vmatpush.msra.mxu0 %v569
    %799 = vmatpush.msra.mxu0 %v568
    %800 = vmatpush.msra.mxu0 %v567
    %801 = vmatpush.msra.mxu0 %v566
    %802 = vmatpush.msra.mxu0 %v565
    %803 = vmatpush.msra.mxu0 %v564
    %804 = vmatmul.f32.gmra.mxu0 %v516
    %v805 = vpop.f32.mrf.mxu0
    %v806 = vadd.f32 0.0, %v805
    %807 = vmatmul.f32.gmra.mxu0 %v517
    %v808 = vpop.f32.mrf.mxu0
    %v809 = vadd.f32 0.0, %v808
    %810 = vmatmul.f32.gmra.mxu0 %v518
    %v811 = vpop.f32.mrf.mxu0
    %v812 = vadd.f32 0.0, %v811
    %813 = vmatmul.f32.gmra.mxu0 %v519
    %v814 = vpop.f32.mrf.mxu0
    %v815 = vadd.f32 0.0, %v814
    %816 = vmatmul.f32.gmra.mxu0 %v520
    %v817 = vpop.f32.mrf.mxu0
    %v818 = vadd.f32 0.0, %v817
    %819 = vmatmul.f32.gmra.mxu0 %v521
    %v820 = vpop.f32.mrf.mxu0
    %v821 = vadd.f32 0.0, %v820
    %822 = vmatmul.f32.gmra.mxu0 %v522
    %v823 = vpop.f32.mrf.mxu0
    %v824 = vadd.f32 0.0, %v823
    %825 = vmatmul.f32.gmra.mxu0 %v523
    %v826 = vpop.f32.mrf.mxu0
    %v827 = vadd.f32 0.0, %v826
    %828 = vmatmul.f32.gmra.mxu0 %v524
    %v829 = vpop.f32.mrf.mxu0
    %v830 = vadd.f32 0.0, %v829
    %831 = vmatmul.f32.gmra.mxu0 %v525
    %v832 = vpop.f32.mrf.mxu0
    %v833 = vadd.f32 0.0, %v832
    %834 = vmatmul.f32.gmra.mxu0 %v526
    %v835 = vpop.f32.mrf.mxu0
    %v836 = vadd.f32 0.0, %v835
    %837 = vmatmul.f32.gmra.mxu0 %v527
    %v838 = vpop.f32.mrf.mxu0
    %v839 = vadd.f32 0.0, %v838
    %840 = vmatmul.f32.gmra.mxu0 %v528
    %v841 = vpop.f32.mrf.mxu0
    %v842 = vadd.f32 0.0, %v841
    %843 = vmatmul.f32.gmra.mxu0 %v529
    %v844 = vpop.f32.mrf.mxu0
    %v845 = vadd.f32 0.0, %v844
    %846 = vmatmul.f32.gmra.mxu0 %v530
    %v847 = vpop.f32.mrf.mxu0
    %v848 = vadd.f32 0.0, %v847
    %849 = vmatmul.f32.gmra.mxu0 %v531
    %v850 = vpop.f32.mrf.mxu0
    %v851 = vadd.f32 0.0, %v850
    %852 = vdwg.mxu0
    %v853 = vmul.f32 %v806, %v305
    %v854 = vmul.f32 %v809, %v308
    %v855 = vmul.f32 %v812, %v311
    %v856 = vmul.f32 %v815, %v314
    %v857 = vmul.f32 %v818, %v317
    %v858 = vmul.f32 %v821, %v320
    %v859 = vmul.f32 %v824, %v323
    %v860 = vmul.f32 %v827, %v326
    %v861 = vmul.f32 %v830, %v329
    %v862 = vmul.f32 %v833, %v332
    %v863 = vmul.f32 %v836, %v335
    %v864 = vmul.f32 %v839, %v338
    %v865 = vmul.f32 %v842, %v341
    %v866 = vmul.f32 %v845, %v344
    %v867 = vmul.f32 %v848, %v347
    %v868 = vmul.f32 %v851, %v350
    %v869 = vadd.f32 %v853, %v854
    %v870 = vadd.f32 %v869, %v855
    %v871 = vadd.f32 %v870, %v856
    %v872 = vadd.f32 %v871, %v857
    %v873 = vadd.f32 %v872, %v858
    %v874 = vadd.f32 %v873, %v859
    %v875 = vadd.f32 %v874, %v860
    %v876 = vadd.f32 %v875, %v861
    %v877 = vadd.f32 %v876, %v862
    %v878 = vadd.f32 %v877, %v863
    %v879 = vadd.f32 %v878, %v864
    %v880 = vadd.f32 %v879, %v865
    %v881 = vadd.f32 %v880, %v866
    %v882 = vadd.f32 %v881, %v867
    %v883 = vadd.f32 %v882, %v868
    %884 = vmatpush.msra.mxu0 %v595
    %885 = vmatpush.msra.mxu0 %v594
    %886 = vmatpush.msra.mxu0 %v593
    %887 = vmatpush.msra.mxu0 %v592
    %888 = vmatpush.msra.mxu0 %v591
    %889 = vmatpush.msra.mxu0 %v590
    %890 = vmatpush.msra.mxu0 %v589
    %891 = vmatpush.msra.mxu0 %v588
    %892 = vmatpush.msra.mxu0 %v587
    %893 = vmatpush.msra.mxu0 %v586
    %894 = vmatpush.msra.mxu0 %v585
    %895 = vmatpush.msra.mxu0 %v584
    %896 = vmatpush.msra.mxu0 %v583
    %897 = vmatpush.msra.mxu0 %v582
    %898 = vmatpush.msra.mxu0 %v581
    %899 = vmatpush.msra.mxu0 %v580
    %900 = vmatmul.f32.gmra.mxu0 %v516
    %v901 = vpop.f32.mrf.mxu0
    %v902 = vadd.f32 0.0, %v901
    %903 = vmatmul.f32.gmra.mxu0 %v517
    %v904 = vpop.f32.mrf.mxu0
    %v905 = vadd.f32 0.0, %v904
    %906 = vmatmul.f32.gmra.mxu0 %v518
    %v907 = vpop.f32.mrf.mxu0
    %v908 = vadd.f32 0.0, %v907
    %909 = vmatmul.f32.gmra.mxu0 %v519
    %v910 = vpop.f32.mrf.mxu0
    %v911 = vadd.f32 0.0, %v910
    %912 = vmatmul.f32.gmra.mxu0 %v520
    %v913 = vpop.f32.mrf.mxu0
    %v914 = vadd.f32 0.0, %v913
    %915 = vmatmul.f32.gmra.mxu0 %v521
    %v916 = vpop.f32.mrf.mxu0
    %v917 = vadd.f32 0.0, %v916
    %918 = vmatmul.f32.gmra.mxu0 %v522
    %v919 = vpop.f32.mrf.mxu0
    %v920 = vadd.f32 0.0, %v919
    %921 = vmatmul.f32.gmra.mxu0 %v523
    %v922 = vpop.f32.mrf.mxu0
    %v923 = vadd.f32 0.0, %v922
    %924 = vmatmul.f32.gmra.mxu0 %v524
    %v925 = vpop.f32.mrf.mxu0
    %v926 = vadd.f32 0.0, %v925
    %927 = vmatmul.f32.gmra.mxu0 %v525
    %v928 = vpop.f32.mrf.mxu0
    %v929 = vadd.f32 0.0, %v928
    %930 = vmatmul.f32.gmra.mxu0 %v526
    %v931 = vpop.f32.mrf.mxu0
    %v932 = vadd.f32 0.0, %v931
    %933 = vmatmul.f32.gmra.mxu0 %v527
    %v934 = vpop.f32.mrf.mxu0
    %v935 = vadd.f32 0.0, %v934
    %936 = vmatmul.f32.gmra.mxu0 %v528
    %v937 = vpop.f32.mrf.mxu0
    %v938 = vadd.f32 0.0, %v937
    %939 = vmatmul.f32.gmra.mxu0 %v529
    %v940 = vpop.f32.mrf.mxu0
    %v941 = vadd.f32 0.0, %v940
    %942 = vmatmul.f32.gmra.mxu0 %v530
    %v943 = vpop.f32.mrf.mxu0
    %v944 = vadd.f32 0.0, %v943
    %945 = vmatmul.f32.gmra.mxu0 %v531
    %v946 = vpop.f32.mrf.mxu0
    %v947 = vadd.f32 0.0, %v946
    %948 = vdwg.mxu0
    %v949 = vmul.f32 %v902, %v305
    %v950 = vmul.f32 %v905, %v308
    %v951 = vmul.f32 %v908, %v311
    %v952 = vmul.f32 %v911, %v314
    %v953 = vmul.f32 %v914, %v317
    %v954 = vmul.f32 %v917, %v320
    %v955 = vmul.f32 %v920, %v323
    %v956 = vmul.f32 %v923, %v326
    %v957 = vmul.f32 %v926, %v329
    %v958 = vmul.f32 %v929, %v332
    %v959 = vmul.f32 %v932, %v335
    %v960 = vmul.f32 %v935, %v338
    %v961 = vmul.f32 %v938, %v341
    %v962 = vmul.f32 %v941, %v344
    %v963 = vmul.f32 %v944, %v347
    %v964 = vmul.f32 %v947, %v350
    %v965 = vadd.f32 %v949, %v950
    %v966 = vadd.f32 %v965, %v951
    %v967 = vadd.f32 %v966, %v952
    %v968 = vadd.f32 %v967, %v953
    %v969 = vadd.f32 %v968, %v954
    %v970 = vadd.f32 %v969, %v955
    %v971 = vadd.f32 %v970, %v956
    %v972 = vadd.f32 %v971, %v957
    %v973 = vadd.f32 %v972, %v958
    %v974 = vadd.f32 %v973, %v959
    %v975 = vadd.f32 %v974, %v960
    %v976 = vadd.f32 %v975, %v961
    %v977 = vadd.f32 %v976, %v962
    %v978 = vadd.f32 %v977, %v963
    %v979 = vadd.f32 %v978, %v964
    %v980 = vld [vmem:[%s7] sm:$0x1]
    %v981 = vld [vmem:[%s7 + $0x1] sm:$0x1]
    %v982 = vld [vmem:[%s7 + $0x2] sm:$0x1]
    %v983 = vld [vmem:[%s7 + $0x3] sm:$0x1]
    %v988 = vperm.slane %v980, 0
    %v989 = vperm.slane %v981, 0
    %v990 = vperm.slane %v982, 0
    %v991 = vperm.slane %v983, 0
    %v996 = vadd.f32 %v691, %v988
    %v997 = vadd.f32 %v787, %v989
    %v998 = vadd.f32 %v883, %v990
    %v999 = vadd.f32 %v979, %v991
    %v1000 = vld [vmem:[#allocation11 + $0x1] sm:$0x1]
    %v1001 = vld [vmem:[#allocation11 + $0x2] sm:$0x1]
    %v1002 = vld [vmem:[#allocation11 + $0x3] sm:$0x1]
    %v1003 = vld [vmem:[#allocation11 + $0x4] sm:$0x1]
    %v1004 = vld [vmem:[#allocation11 + $0x5] sm:$0x1]
    %v1005 = vld [vmem:[#allocation11 + $0x6] sm:$0x1]
    %v1006 = vld [vmem:[#allocation11 + $0x7] sm:$0x1]
    %v1007 = vld [vmem:[#allocation13] sm:$0x1]
    %v1008 = vld [vmem:[#allocation13 + $0x1] sm:$0x1]
    %v1009 = vld [vmem:[#allocation13 + $0x2] sm:$0x1]
    %v1010 = vld [vmem:[#allocation13 + $0x3] sm:$0x1]
    %v1011 = vld [vmem:[#allocation13 + $0x4] sm:$0x1]
    %v1012 = vld [vmem:[#allocation13 + $0x5] sm:$0x1]
    %v1013 = vld [vmem:[#allocation13 + $0x6] sm:$0x1]
    %v1014 = vld [vmem:[#allocation13 + $0x7] sm:$0x1]
    %v1015 = vmul.f32 %v996, 0.3926991
    %v1016 = vmul.f32 %v997, 0.3926991
    %v1017 = vmul.f32 %v998, 0.3926991
    %v1018 = vmul.f32 %v999, 0.3926991
    %v1019 = vand.u32 2147483647, %v1015
    %vm1020 = vcmp.le.f32.partialorder %v1019, 0.7853982
    %vm1021 = vcmp.lt.s32.totalorder %v1015, 0
    %v1022 = vand.u32 %v1015, 2139095040
    %v1023 = vshrl.u32 %v1022, 23
    %v1024 = vsub.s32 %v1023, 127
    %v1025 = vand.u32 2147483647, %v1015
    %v1026 = vand.u32 %v1025, 8388607
    %v1027 = vor.u32 %v1026, 8388608
    %v1028 = vsub.s32 0, %v1027
    %v1029 = vadd.s32 %v1024, 1
    %vm1030 = vcmp.gt.s32.totalorder %v1029, 0
    %v1031 = vsel %vm1030, %v1029, 0
    %v1032 = vshrl.u32 %v1031, 5
    %v1033 = vand.u32 %v1031, 31
    %v1034 = vsub.s32 32, %v1033
    %v1035 = vshrl.u32 683565275, %v1034
    %v1036 = vshll.u32 683565275, %v1033
    %v1037 = vshrl.u32 2475754826, %v1034
    %v1038 = vor.u32 %v1036, %v1037
    %v1039 = vshll.u32 2475754826, %v1033
    %v1040 = vshrl.u32 2131351028, %v1034
    %v1041 = vor.u32 %v1039, %v1040
    %v1042 = vshll.u32 2131351028, %v1033
    %v1043 = vshrl.u32 2102212464, %v1034
    %v1044 = vor.u32 %v1042, %v1043
    %v1045 = vshll.u32 2102212464, %v1033
    %v1046 = vshrl.u32 920167782, %v1034
    %v1047 = vor.u32 %v1045, %v1046
    %v1048 = vshll.u32 920167782, %v1033
    %v1049 = vshrl.u32 1326507024, %v1034
    %v1050 = vor.u32 %v1048, %v1049
    %vm1051 = vcmp.lt.s32.totalorder %v1032, 1
    %vm1052 = vcmp.lt.s32.totalorder %v1032, 2
    %vm1053 = vcmp.lt.s32.totalorder %v1032, 3
    %vm1054 = vcmp.lt.s32.totalorder %v1032, 4
    %v1055 = vsel %vm1051, %v1035, %v1038
    %v1056 = vsel %vm1054, %v1044, 2102212464
    %v1057 = vsel %vm1053, %v1041, %v1056
    %v1058 = vsel %vm1052, %v1055, %v1057
    %v1059 = vsel %vm1051, %v1038, %v1041
    %v1060 = vsel %vm1054, %v1047, 920167782
    %v1061 = vsel %vm1053, %v1044, %v1060
    %v1062 = vsel %vm1052, %v1059, %v1061
    %v1063 = vsel %vm1051, %v1041, %v1044
    %v1064 = vsel %vm1054, %v1050, 1326507024
    %v1065 = vsel %vm1053, %v1047, %v1064
    %v1066 = vsel %vm1052, %v1063, %v1065
    %v1067 = vshll.u32 %v1027, 8
    %v1068 = vand.u32 %v1067, 65535
    %v1069 = vshrl.u32 %v1067, 16
    %v1070 = vand.u32 %v1066, 65535
    %v1071 = vshrl.u32 %v1066, 16
    %v1072 = vmul.u32 %v1068, %v1070
    %v1073 = vmul.u32 %v1068, %v1071
    %v1074 = vmul.u32 %v1069, %v1070
    %v1075 = vmul.u32 %v1069, %v1071
    %v1076 = vshll.u32 %v1073, 16
    %v1077 = vshrl.u32 %v1073, 16
    %v1078 = vshll.u32 %v1074, 16
    %v1079 = vshrl.u32 %v1074, 16
    %vm1080 = vc.u32 %v1072, %v1076
    %v1081 = vsel %vm1080, 1, 0
    %v1082 = vadd.s32 %v1072, %v1076
    %v1083 = vadd.s32 %v1075, %v1081
    %vm1084 = vc.u32 %v1082, %v1078
    %v1085 = vsel %vm1084, 1, 0
    %v1086 = vadd.s32 %v1082, %v1078
    %v1087 = vadd.s32 %v1083, %v1085
    %v1088 = vadd.s32 %v1087, %v1077
    %v1089 = vadd.s32 %v1088, %v1079
    %v1090 = vand.u32 %v1067, 65535
    %v1091 = vshrl.u32 %v1067, 16
    %v1092 = vand.u32 %v1062, 65535
    %v1093 = vshrl.u32 %v1062, 16
    %v1094 = vmul.u32 %v1090, %v1092
    %v1095 = vmul.u32 %v1090, %v1093
    %v1096 = vmul.u32 %v1091, %v1092
    %v1097 = vmul.u32 %v1091, %v1093
    %v1098 = vshll.u32 %v1095, 16
    %v1099 = vshrl.u32 %v1095, 16
    %v1100 = vshll.u32 %v1096, 16
    %v1101 = vshrl.u32 %v1096, 16
    %vm1102 = vc.u32 %v1094, %v1098
    %v1103 = vsel %vm1102, 1, 0
    %v1104 = vadd.s32 %v1094, %v1098
    %v1105 = vadd.s32 %v1097, %v1103
    %vm1106 = vc.u32 %v1104, %v1100
    %v1107 = vsel %vm1106, 1, 0
    %v1108 = vadd.s32 %v1104, %v1100
    %v1109 = vadd.s32 %v1105, %v1107
    %v1110 = vadd.s32 %v1109, %v1099
    %v1111 = vadd.s32 %v1110, %v1101
    %v1112 = vmul.u32 %v1067, %v1058
    %v1113 = vadd.s32 %v1089, %v1108
    %vm1114 = vc.u32 %v1089, %v1108
    %v1115 = vadd.s32 %v1111, 1
    %v1116 = vsel %vm1114, %v1115, %v1111
    %v1117 = vadd.s32 %v1112, %v1116
    %v1118 = vadd.s32 %v1117, 536870912
    %v1119 = vshrl.u32 %v1118, 30
    %v1120 = vshll.u32 %v1119, 30
    %v1121 = vsub.s32 %v1117, %v1120
    %vm1122 = vcmp.lt.s32.totalorder %v1121, 0
    %v1123 = vsub.s32 0, %v1121
    %v1124 = vsel %vm1122, %v1123, %v1121
    %v1125 = vclz %v1124
    %v1126 = vsub.s32 %v1125, 2
    %vm1127 = vcmp.gt.s32.totalorder 0, %v1126
    %v1128 = vsel %vm1127, 0, %v1126
    %v1129 = vsub.s32 32, %v1128
    %v1130 = vshll.u32 %v1121, %v1128
    %v1131 = vshrl.u32 %v1113, %v1129
    %v1132 = vor.u32 %v1130, %v1131
    %v1133 = vsub.s32 4294967266, %v1128
    %v1134 = vadd.s32 %v1133, 127
    %v1135 = vshll.u32 %v1134, 23
    %v1136 = vor.u32 4788187, %v1135
    %v1137 = vand.u32 2147483647, %v1136
    %v1139 = vcvt.s32.f32 %v1132
    %v1140 = vmul.f32 %v1139, %v1137
    %v1141 = vxor.u32 %v1140, 2147483648
    %v1142 = vsel %vm1021, %v1141, %v1140
    %v1143 = vsub.s32 4, %v1119
    %v1144 = vsel %vm1021, %v1143, %v1119
    %v1145 = vsel %vm1020, %v1015, %v1142
    %v1146 = vsel %vm1020, 0, %v1144
    %v1147 = vmul.f32 %v1145, %v1145
    %v1148 = vmul.f32 %v1147, -0.001358992
    %v1149 = vadd.f32 %v1148, 0.041655596
    %v1150 = vmul.f32 %v1147, %v1149
    %v1151 = vadd.f32 %v1150, -0.4999988
    %v1152 = vmul.f32 %v1147, %v1151
    %v1153 = vadd.f32 1.0, %v1152
    %v1154 = vmul.f32 %v1145, %v1145
    %v1155 = vmul.f32 %v1154, -0.00019511016
    %v1156 = vadd.f32 %v1155, 0.008332121
    %v1157 = vmul.f32 %v1154, %v1156
    %v1158 = vadd.f32 %v1157, -0.16666654
    %v1159 = vmul.f32 %v1154, %v1158
    %v1160 = vadd.f32 %v1159, 1.0
    %v1161 = vmul.f32 %v1160, %v1145
    %vm1162 = vweird.f32 %v1015
    %v1163 = vadd.s32 %v1146, 3
    %v1164 = vand.u32 %v1163, 3
    %vm1165 = vcmp.lt.s32.totalorder %v1164, 2
    %vm1166 = vcmp.eq.s32.totalorder %v1164, 0
    %v1167 = vxor.u32 %v1161, 2147483648
    %v1168 = vsel %vm1166, %v1153, %v1167
    %vm1169 = vcmp.eq.s32.totalorder %v1164, 2
    %v1170 = vxor.u32 %v1153, 2147483648
    %v1171 = vsel %vm1169, %v1170, %v1161
    %v1172 = vsel %vm1165, %v1168, %v1171
    %v1173 = vsel %vm1162, nan, %v1172
    %v1174 = vand.u32 2147483647, %v1016
    %vm1175 = vcmp.le.f32.partialorder %v1174, 0.7853982
    %vm1176 = vcmp.lt.s32.totalorder %v1016, 0
    %v1177 = vand.u32 %v1016, 2139095040
    %v1178 = vshrl.u32 %v1177, 23
    %v1179 = vsub.s32 %v1178, 127
    %v1180 = vand.u32 2147483647, %v1016
    %v1181 = vand.u32 %v1180, 8388607
    %v1182 = vor.u32 %v1181, 8388608
    %v1183 = vsub.s32 0, %v1182
    %v1184 = vadd.s32 %v1179, 1
    %vm1185 = vcmp.gt.s32.totalorder %v1184, 0
    %v1186 = vsel %vm1185, %v1184, 0
    %v1187 = vshrl.u32 %v1186, 5
    %v1188 = vand.u32 %v1186, 31
    %v1189 = vsub.s32 32, %v1188
    %v1190 = vshrl.u32 683565275, %v1189
    %v1191 = vshll.u32 683565275, %v1188
    %v1192 = vshrl.u32 2475754826, %v1189
    %v1193 = vor.u32 %v1191, %v1192
    %v1194 = vshll.u32 2475754826, %v1188
    %v1195 = vshrl.u32 2131351028, %v1189
    %v1196 = vor.u32 %v1194, %v1195
    %v1197 = vshll.u32 2131351028, %v1188
    %v1198 = vshrl.u32 2102212464, %v1189
    %v1199 = vor.u32 %v1197, %v1198
    %v1200 = vshll.u32 2102212464, %v1188
    %v1201 = vshrl.u32 920167782, %v1189
    %v1202 = vor.u32 %v1200, %v1201
    %v1203 = vshll.u32 920167782, %v1188
    %v1204 = vshrl.u32 1326507024, %v1189
    %v1205 = vor.u32 %v1203, %v1204
    %vm1206 = vcmp.lt.s32.totalorder %v1187, 1
    %vm1207 = vcmp.lt.s32.totalorder %v1187, 2
    %vm1208 = vcmp.lt.s32.totalorder %v1187, 3
    %vm1209 = vcmp.lt.s32.totalorder %v1187, 4
    %v1210 = vsel %vm1206, %v1190, %v1193
    %v1211 = vsel %vm1209, %v1199, 2102212464
    %v1212 = vsel %vm1208, %v1196, %v1211
    %v1213 = vsel %vm1207, %v1210, %v1212
    %v1214 = vsel %vm1206, %v1193, %v1196
    %v1215 = vsel %vm1209, %v1202, 920167782
    %v1216 = vsel %vm1208, %v1199, %v1215
    %v1217 = vsel %vm1207, %v1214, %v1216
    %v1218 = vsel %vm1206, %v1196, %v1199
    %v1219 = vsel %vm1209, %v1205, 1326507024
    %v1220 = vsel %vm1208, %v1202, %v1219
    %v1221 = vsel %vm1207, %v1218, %v1220
    %v1222 = vshll.u32 %v1182, 8
    %v1223 = vand.u32 %v1222, 65535
    %v1224 = vshrl.u32 %v1222, 16
    %v1225 = vand.u32 %v1221, 65535
    %v1226 = vshrl.u32 %v1221, 16
    %v1227 = vmul.u32 %v1223, %v1225
    %v1228 = vmul.u32 %v1223, %v1226
    %v1229 = vmul.u32 %v1224, %v1225
    %v1230 = vmul.u32 %v1224, %v1226
    %v1231 = vshll.u32 %v1228, 16
    %v1232 = vshrl.u32 %v1228, 16
    %v1233 = vshll.u32 %v1229, 16
    %v1234 = vshrl.u32 %v1229, 16
    %vm1235 = vc.u32 %v1227, %v1231
    %v1236 = vsel %vm1235, 1, 0
    %v1237 = vadd.s32 %v1227, %v1231
    %v1238 = vadd.s32 %v1230, %v1236
    %vm1239 = vc.u32 %v1237, %v1233
    %v1240 = vsel %vm1239, 1, 0
    %v1241 = vadd.s32 %v1237, %v1233
    %v1242 = vadd.s32 %v1238, %v1240
    %v1243 = vadd.s32 %v1242, %v1232
    %v1244 = vadd.s32 %v1243, %v1234
    %v1245 = vand.u32 %v1222, 65535
    %v1246 = vshrl.u32 %v1222, 16
    %v1247 = vand.u32 %v1217, 65535
    %v1248 = vshrl.u32 %v1217, 16
    %v1249 = vmul.u32 %v1245, %v1247
    %v1250 = vmul.u32 %v1245, %v1248
    %v1251 = vmul.u32 %v1246, %v1247
    %v1252 = vmul.u32 %v1246, %v1248
    %v1253 = vshll.u32 %v1250, 16
    %v1254 = vshrl.u32 %v1250, 16
    %v1255 = vshll.u32 %v1251, 16
    %v1256 = vshrl.u32 %v1251, 16
    %vm1257 = vc.u32 %v1249, %v1253
    %v1258 = vsel %vm1257, 1, 0
    %v1259 = vadd.s32 %v1249, %v1253
    %v1260 = vadd.s32 %v1252, %v1258
    %vm1261 = vc.u32 %v1259, %v1255
    %v1262 = vsel %vm1261, 1, 0
    %v1263 = vadd.s32 %v1259, %v1255
    %v1264 = vadd.s32 %v1260, %v1262
    %v1265 = vadd.s32 %v1264, %v1254
    %v1266 = vadd.s32 %v1265, %v1256
    %v1267 = vmul.u32 %v1222, %v1213
    %v1268 = vadd.s32 %v1244, %v1263
    %vm1269 = vc.u32 %v1244, %v1263
    %v1270 = vadd.s32 %v1266, 1
    %v1271 = vsel %vm1269, %v1270, %v1266
    %v1272 = vadd.s32 %v1267, %v1271
    %v1273 = vadd.s32 %v1272, 536870912
    %v1274 = vshrl.u32 %v1273, 30
    %v1275 = vshll.u32 %v1274, 30
    %v1276 = vsub.s32 %v1272, %v1275
    %vm1277 = vcmp.lt.s32.totalorder %v1276, 0
    %v1278 = vsub.s32 0, %v1276
    %v1279 = vsel %vm1277, %v1278, %v1276
    %v1280 = vclz %v1279
    %v1281 = vsub.s32 %v1280, 2
    %vm1282 = vcmp.gt.s32.totalorder 0, %v1281
    %v1283 = vsel %vm1282, 0, %v1281
    %v1284 = vsub.s32 32, %v1283
    %v1285 = vshll.u32 %v1276, %v1283
    %v1286 = vshrl.u32 %v1268, %v1284
    %v1287 = vor.u32 %v1285, %v1286
    %v1288 = vsub.s32 4294967266, %v1283
    %v1289 = vadd.s32 %v1288, 127
    %v1290 = vshll.u32 %v1289, 23
    %v1291 = vor.u32 4788187, %v1290
    %v1292 = vand.u32 2147483647, %v1291
    %v1294 = vcvt.s32.f32 %v1287
    %v1295 = vmul.f32 %v1294, %v1292
    %v1296 = vxor.u32 %v1295, 2147483648
    %v1297 = vsel %vm1176, %v1296, %v1295
    %v1298 = vsub.s32 4, %v1274
    %v1299 = vsel %vm1176, %v1298, %v1274
    %v1300 = vsel %vm1175, %v1016, %v1297
    %v1301 = vsel %vm1175, 0, %v1299
    %v1302 = vmul.f32 %v1300, %v1300
    %v1303 = vmul.f32 %v1302, -0.001358992
    %v1304 = vadd.f32 %v1303, 0.041655596
    %v1305 = vmul.f32 %v1302, %v1304
    %v1306 = vadd.f32 %v1305, -0.4999988
    %v1307 = vmul.f32 %v1302, %v1306
    %v1308 = vadd.f32 1.0, %v1307
    %v1309 = vmul.f32 %v1300, %v1300
    %v1310 = vmul.f32 %v1309, -0.00019511016
    %v1311 = vadd.f32 %v1310, 0.008332121
    %v1312 = vmul.f32 %v1309, %v1311
    %v1313 = vadd.f32 %v1312, -0.16666654
    %v1314 = vmul.f32 %v1309, %v1313
    %v1315 = vadd.f32 %v1314, 1.0
    %v1316 = vmul.f32 %v1315, %v1300
    %vm1317 = vweird.f32 %v1016
    %v1318 = vadd.s32 %v1301, 3
    %v1319 = vand.u32 %v1318, 3
    %vm1320 = vcmp.lt.s32.totalorder %v1319, 2
    %vm1321 = vcmp.eq.s32.totalorder %v1319, 0
    %v1322 = vxor.u32 %v1316, 2147483648
    %v1323 = vsel %vm1321, %v1308, %v1322
    %vm1324 = vcmp.eq.s32.totalorder %v1319, 2
    %v1325 = vxor.u32 %v1308, 2147483648
    %v1326 = vsel %vm1324, %v1325, %v1316
    %v1327 = vsel %vm1320, %v1323, %v1326
    %v1328 = vsel %vm1317, nan, %v1327
    %v1329 = vand.u32 2147483647, %v1017
    %vm1330 = vcmp.le.f32.partialorder %v1329, 0.7853982
    %vm1331 = vcmp.lt.s32.totalorder %v1017, 0
    %v1332 = vand.u32 %v1017, 2139095040
    %v1333 = vshrl.u32 %v1332, 23
    %v1334 = vsub.s32 %v1333, 127
    %v1335 = vand.u32 2147483647, %v1017
    %v1336 = vand.u32 %v1335, 8388607
    %v1337 = vor.u32 %v1336, 8388608
    %v1338 = vsub.s32 0, %v1337
    %v1339 = vadd.s32 %v1334, 1
    %vm1340 = vcmp.gt.s32.totalorder %v1339, 0
    %v1341 = vsel %vm1340, %v1339, 0
    %v1342 = vshrl.u32 %v1341, 5
    %v1343 = vand.u32 %v1341, 31
    %v1344 = vsub.s32 32, %v1343
    %v1345 = vshrl.u32 683565275, %v1344
    %v1346 = vshll.u32 683565275, %v1343
    %v1347 = vshrl.u32 2475754826, %v1344
    %v1348 = vor.u32 %v1346, %v1347
    %v1349 = vshll.u32 2475754826, %v1343
    %v1350 = vshrl.u32 2131351028, %v1344
    %v1351 = vor.u32 %v1349, %v1350
    %v1352 = vshll.u32 2131351028, %v1343
    %v1353 = vshrl.u32 2102212464, %v1344
    %v1354 = vor.u32 %v1352, %v1353
    %v1355 = vshll.u32 2102212464, %v1343
    %v1356 = vshrl.u32 920167782, %v1344
    %v1357 = vor.u32 %v1355, %v1356
    %v1358 = vshll.u32 920167782, %v1343
    %v1359 = vshrl.u32 1326507024, %v1344
    %v1360 = vor.u32 %v1358, %v1359
    %vm1361 = vcmp.lt.s32.totalorder %v1342, 1
    %vm1362 = vcmp.lt.s32.totalorder %v1342, 2
    %vm1363 = vcmp.lt.s32.totalorder %v1342, 3
    %vm1364 = vcmp.lt.s32.totalorder %v1342, 4
    %v1365 = vsel %vm1361, %v1345, %v1348
    %v1366 = vsel %vm1364, %v1354, 2102212464
    %v1367 = vsel %vm1363, %v1351, %v1366
    %v1368 = vsel %vm1362, %v1365, %v1367
    %v1369 = vsel %vm1361, %v1348, %v1351
    %v1370 = vsel %vm1364, %v1357, 920167782
    %v1371 = vsel %vm1363, %v1354, %v1370
    %v1372 = vsel %vm1362, %v1369, %v1371
    %v1373 = vsel %vm1361, %v1351, %v1354
    %v1374 = vsel %vm1364, %v1360, 1326507024
    %v1375 = vsel %vm1363, %v1357, %v1374
    %v1376 = vsel %vm1362, %v1373, %v1375
    %v1377 = vshll.u32 %v1337, 8
    %v1378 = vand.u32 %v1377, 65535
    %v1379 = vshrl.u32 %v1377, 16
    %v1380 = vand.u32 %v1376, 65535
    %v1381 = vshrl.u32 %v1376, 16
    %v1382 = vmul.u32 %v1378, %v1380
    %v1383 = vmul.u32 %v1378, %v1381
    %v1384 = vmul.u32 %v1379, %v1380
    %v1385 = vmul.u32 %v1379, %v1381
    %v1386 = vshll.u32 %v1383, 16
    %v1387 = vshrl.u32 %v1383, 16
    %v1388 = vshll.u32 %v1384, 16
    %v1389 = vshrl.u32 %v1384, 16
    %vm1390 = vc.u32 %v1382, %v1386
    %v1391 = vsel %vm1390, 1, 0
    %v1392 = vadd.s32 %v1382, %v1386
    %v1393 = vadd.s32 %v1385, %v1391
    %vm1394 = vc.u32 %v1392, %v1388
    %v1395 = vsel %vm1394, 1, 0
    %v1396 = vadd.s32 %v1392, %v1388
    %v1397 = vadd.s32 %v1393, %v1395
    %v1398 = vadd.s32 %v1397, %v1387
    %v1399 = vadd.s32 %v1398, %v1389
    %v1400 = vand.u32 %v1377, 65535
    %v1401 = vshrl.u32 %v1377, 16
    %v1402 = vand.u32 %v1372, 65535
    %v1403 = vshrl.u32 %v1372, 16
    %v1404 = vmul.u32 %v1400, %v1402
    %v1405 = vmul.u32 %v1400, %v1403
    %v1406 = vmul.u32 %v1401, %v1402
    %v1407 = vmul.u32 %v1401, %v1403
    %v1408 = vshll.u32 %v1405, 16
    %v1409 = vshrl.u32 %v1405, 16
    %v1410 = vshll.u32 %v1406, 16
    %v1411 = vshrl.u32 %v1406, 16
    %vm1412 = vc.u32 %v1404, %v1408
    %v1413 = vsel %vm1412, 1, 0
    %v1414 = vadd.s32 %v1404, %v1408
    %v1415 = vadd.s32 %v1407, %v1413
    %vm1416 = vc.u32 %v1414, %v1410
    %v1417 = vsel %vm1416, 1, 0
    %v1418 = vadd.s32 %v1414, %v1410
    %v1419 = vadd.s32 %v1415, %v1417
    %v1420 = vadd.s32 %v1419, %v1409
    %v1421 = vadd.s32 %v1420, %v1411
    %v1422 = vmul.u32 %v1377, %v1368
    %v1423 = vadd.s32 %v1399, %v1418
    %vm1424 = vc.u32 %v1399, %v1418
    %v1425 = vadd.s32 %v1421, 1
    %v1426 = vsel %vm1424, %v1425, %v1421
    %v1427 = vadd.s32 %v1422, %v1426
    %v1428 = vadd.s32 %v1427, 536870912
    %v1429 = vshrl.u32 %v1428, 30
    %v1430 = vshll.u32 %v1429, 30
    %v1431 = vsub.s32 %v1427, %v1430
    %vm1432 = vcmp.lt.s32.totalorder %v1431, 0
    %v1433 = vsub.s32 0, %v1431
    %v1434 = vsel %vm1432, %v1433, %v1431
    %v1435 = vclz %v1434
    %v1436 = vsub.s32 %v1435, 2
    %vm1437 = vcmp.gt.s32.totalorder 0, %v1436
    %v1438 = vsel %vm1437, 0, %v1436
    %v1439 = vsub.s32 32, %v1438
    %v1440 = vshll.u32 %v1431, %v1438
    %v1441 = vshrl.u32 %v1423, %v1439
    %v1442 = vor.u32 %v1440, %v1441
    %v1443 = vsub.s32 4294967266, %v1438
    %v1444 = vadd.s32 %v1443, 127
    %v1445 = vshll.u32 %v1444, 23
    %v1446 = vor.u32 4788187, %v1445
    %v1447 = vand.u32 2147483647, %v1446
    %v1449 = vcvt.s32.f32 %v1442
    %v1450 = vmul.f32 %v1449, %v1447
    %v1451 = vxor.u32 %v1450, 2147483648
    %v1452 = vsel %vm1331, %v1451, %v1450
    %v1453 = vsub.s32 4, %v1429
    %v1454 = vsel %vm1331, %v1453, %v1429
    %v1455 = vsel %vm1330, %v1017, %v1452
    %v1456 = vsel %vm1330, 0, %v1454
    %v1457 = vmul.f32 %v1455, %v1455
    %v1458 = vmul.f32 %v1457, -0.001358992
    %v1459 = vadd.f32 %v1458, 0.041655596
    %v1460 = vmul.f32 %v1457, %v1459
    %v1461 = vadd.f32 %v1460, -0.4999988
    %v1462 = vmul.f32 %v1457, %v1461
    %v1463 = vadd.f32 1.0, %v1462
    %v1464 = vmul.f32 %v1455, %v1455
    %v1465 = vmul.f32 %v1464, -0.00019511016
    %v1466 = vadd.f32 %v1465, 0.008332121
    %v1467 = vmul.f32 %v1464, %v1466
    %v1468 = vadd.f32 %v1467, -0.16666654
    %v1469 = vmul.f32 %v1464, %v1468
    %v1470 = vadd.f32 %v1469, 1.0
    %v1471 = vmul.f32 %v1470, %v1455
    %vm1472 = vweird.f32 %v1017
    %v1473 = vadd.s32 %v1456, 3
    %v1474 = vand.u32 %v1473, 3
    %vm1475 = vcmp.lt.s32.totalorder %v1474, 2
    %vm1476 = vcmp.eq.s32.totalorder %v1474, 0
    %v1477 = vxor.u32 %v1471, 2147483648
    %v1478 = vsel %vm1476, %v1463, %v1477
    %vm1479 = vcmp.eq.s32.totalorder %v1474, 2
    %v1480 = vxor.u32 %v1463, 2147483648
    %v1481 = vsel %vm1479, %v1480, %v1471
    %v1482 = vsel %vm1475, %v1478, %v1481
    %v1483 = vsel %vm1472, nan, %v1482
    %v1484 = vand.u32 2147483647, %v1018
    %vm1485 = vcmp.le.f32.partialorder %v1484, 0.7853982
    %vm1486 = vcmp.lt.s32.totalorder %v1018, 0
    %v1487 = vand.u32 %v1018, 2139095040
    %v1488 = vshrl.u32 %v1487, 23
    %v1489 = vsub.s32 %v1488, 127
    %v1490 = vand.u32 2147483647, %v1018
    %v1491 = vand.u32 %v1490, 8388607
    %v1492 = vor.u32 %v1491, 8388608
    %v1493 = vsub.s32 0, %v1492
    %v1494 = vadd.s32 %v1489, 1
    %vm1495 = vcmp.gt.s32.totalorder %v1494, 0
    %v1496 = vsel %vm1495, %v1494, 0
    %v1497 = vshrl.u32 %v1496, 5
    %v1498 = vand.u32 %v1496, 31
    %v1499 = vsub.s32 32, %v1498
    %v1500 = vshrl.u32 683565275, %v1499
    %v1501 = vshll.u32 683565275, %v1498
    %v1502 = vshrl.u32 2475754826, %v1499
    %v1503 = vor.u32 %v1501, %v1502
    %v1504 = vshll.u32 2475754826, %v1498
    %v1505 = vshrl.u32 2131351028, %v1499
    %v1506 = vor.u32 %v1504, %v1505
    %v1507 = vshll.u32 2131351028, %v1498
    %v1508 = vshrl.u32 2102212464, %v1499
    %v1509 = vor.u32 %v1507, %v1508
    %v1510 = vshll.u32 2102212464, %v1498
    %v1511 = vshrl.u32 920167782, %v1499
    %v1512 = vor.u32 %v1510, %v1511
    %v1513 = vshll.u32 920167782, %v1498
    %v1514 = vshrl.u32 1326507024, %v1499
    %v1515 = vor.u32 %v1513, %v1514
    %vm1516 = vcmp.lt.s32.totalorder %v1497, 1
    %vm1517 = vcmp.lt.s32.totalorder %v1497, 2
    %vm1518 = vcmp.lt.s32.totalorder %v1497, 3
    %vm1519 = vcmp.lt.s32.totalorder %v1497, 4
    %v1520 = vsel %vm1516, %v1500, %v1503
    %v1521 = vsel %vm1519, %v1509, 2102212464
    %v1522 = vsel %vm1518, %v1506, %v1521
    %v1523 = vsel %vm1517, %v1520, %v1522
    %v1524 = vsel %vm1516, %v1503, %v1506
    %v1525 = vsel %vm1519, %v1512, 920167782
    %v1526 = vsel %vm1518, %v1509, %v1525
    %v1527 = vsel %vm1517, %v1524, %v1526
    %v1528 = vsel %vm1516, %v1506, %v1509
    %v1529 = vsel %vm1519, %v1515, 1326507024
    %v1530 = vsel %vm1518, %v1512, %v1529
    %v1531 = vsel %vm1517, %v1528, %v1530
    %v1532 = vshll.u32 %v1492, 8
    %v1533 = vand.u32 %v1532, 65535
    %v1534 = vshrl.u32 %v1532, 16
    %v1535 = vand.u32 %v1531, 65535
    %v1536 = vshrl.u32 %v1531, 16
    %v1537 = vmul.u32 %v1533, %v1535
    %v1538 = vmul.u32 %v1533, %v1536
    %v1539 = vmul.u32 %v1534, %v1535
    %v1540 = vmul.u32 %v1534, %v1536
    %v1541 = vshll.u32 %v1538, 16
    %v1542 = vshrl.u32 %v1538, 16
    %v1543 = vshll.u32 %v1539, 16
    %v1544 = vshrl.u32 %v1539, 16
    %vm1545 = vc.u32 %v1537, %v1541
    %v1546 = vsel %vm1545, 1, 0
    %v1547 = vadd.s32 %v1537, %v1541
    %v1548 = vadd.s32 %v1540, %v1546
    %vm1549 = vc.u32 %v1547, %v1543
    %v1550 = vsel %vm1549, 1, 0
    %v1551 = vadd.s32 %v1547, %v1543
    %v1552 = vadd.s32 %v1548, %v1550
    %v1553 = vadd.s32 %v1552, %v1542
    %v1554 = vadd.s32 %v1553, %v1544
    %v1555 = vand.u32 %v1532, 65535
    %v1556 = vshrl.u32 %v1532, 16
    %v1557 = vand.u32 %v1527, 65535
    %v1558 = vshrl.u32 %v1527, 16
    %v1559 = vmul.u32 %v1555, %v1557
    %v1560 = vmul.u32 %v1555, %v1558
    %v1561 = vmul.u32 %v1556, %v1557
    %v1562 = vmul.u32 %v1556, %v1558
    %v1563 = vshll.u32 %v1560, 16
    %v1564 = vshrl.u32 %v1560, 16
    %v1565 = vshll.u32 %v1561, 16
    %v1566 = vshrl.u32 %v1561, 16
    %vm1567 = vc.u32 %v1559, %v1563
    %v1568 = vsel %vm1567, 1, 0
    %v1569 = vadd.s32 %v1559, %v1563
    %v1570 = vadd.s32 %v1562, %v1568
    %vm1571 = vc.u32 %v1569, %v1565
    %v1572 = vsel %vm1571, 1, 0
    %v1573 = vadd.s32 %v1569, %v1565
    %v1574 = vadd.s32 %v1570, %v1572
    %v1575 = vadd.s32 %v1574, %v1564
    %v1576 = vadd.s32 %v1575, %v1566
    %v1577 = vmul.u32 %v1532, %v1523
    %v1578 = vadd.s32 %v1554, %v1573
    %vm1579 = vc.u32 %v1554, %v1573
    %v1580 = vadd.s32 %v1576, 1
    %v1581 = vsel %vm1579, %v1580, %v1576
    %v1582 = vadd.s32 %v1577, %v1581
    %v1583 = vadd.s32 %v1582, 536870912
    %v1584 = vshrl.u32 %v1583, 30
    %v1585 = vshll.u32 %v1584, 30
    %v1586 = vsub.s32 %v1582, %v1585
    %vm1587 = vcmp.lt.s32.totalorder %v1586, 0
    %v1588 = vsub.s32 0, %v1586
    %v1589 = vsel %vm1587, %v1588, %v1586
    %v1590 = vclz %v1589
    %v1591 = vsub.s32 %v1590, 2
    %vm1592 = vcmp.gt.s32.totalorder 0, %v1591
    %v1593 = vsel %vm1592, 0, %v1591
    %v1594 = vsub.s32 32, %v1593
    %v1595 = vshll.u32 %v1586, %v1593
    %v1596 = vshrl.u32 %v1578, %v1594
    %v1597 = vor.u32 %v1595, %v1596
    %v1598 = vsub.s32 4294967266, %v1593
    %v1599 = vadd.s32 %v1598, 127
    %v1600 = vshll.u32 %v1599, 23
    %v1601 = vor.u32 4788187, %v1600
    %v1602 = vand.u32 2147483647, %v1601
    %v1604 = vcvt.s32.f32 %v1597
    %v1605 = vmul.f32 %v1604, %v1602
    %v1606 = vxor.u32 %v1605, 2147483648
    %v1607 = vsel %vm1486, %v1606, %v1605
    %v1608 = vsub.s32 4, %v1584
    %v1609 = vsel %vm1486, %v1608, %v1584
    %v1610 = vsel %vm1485, %v1018, %v1607
    %v1611 = vsel %vm1485, 0, %v1609
    %v1612 = vmul.f32 %v1610, %v1610
    %v1613 = vmul.f32 %v1612, -0.001358992
    %v1614 = vadd.f32 %v1613, 0.041655596
    %v1615 = vmul.f32 %v1612, %v1614
    %v1616 = vadd.f32 %v1615, -0.4999988
    %v1617 = vmul.f32 %v1612, %v1616
    %v1618 = vadd.f32 1.0, %v1617
    %v1619 = vmul.f32 %v1610, %v1610
    %v1620 = vmul.f32 %v1619, -0.00019511016
    %v1621 = vadd.f32 %v1620, 0.008332121
    %v1622 = vmul.f32 %v1619, %v1621
    %v1623 = vadd.f32 %v1622, -0.16666654
    %v1624 = vmul.f32 %v1619, %v1623
    %v1625 = vadd.f32 %v1624, 1.0
    %v1626 = vmul.f32 %v1625, %v1610
    %vm1627 = vweird.f32 %v1018
    %v1628 = vadd.s32 %v1611, 3
    %v1629 = vand.u32 %v1628, 3
    %vm1630 = vcmp.lt.s32.totalorder %v1629, 2
    %vm1631 = vcmp.eq.s32.totalorder %v1629, 0
    %v1632 = vxor.u32 %v1626, 2147483648
    %v1633 = vsel %vm1631, %v1618, %v1632
    %vm1634 = vcmp.eq.s32.totalorder %v1629, 2
    %v1635 = vxor.u32 %v1618, 2147483648
    %v1636 = vsel %vm1634, %v1635, %v1626
    %v1637 = vsel %vm1630, %v1633, %v1636
    %v1638 = vsel %vm1627, nan, %v1637
    %v1639 = vand.u32 2147483647, %v1015
    %vm1640 = vcmp.le.f32.partialorder %v1639, 0.7853982
    %vm1641 = vcmp.lt.s32.totalorder %v1015, 0
    %v1642 = vand.u32 %v1015, 2139095040
    %v1643 = vshrl.u32 %v1642, 23
    %v1644 = vsub.s32 %v1643, 127
    %v1645 = vand.u32 2147483647, %v1015
    %v1646 = vand.u32 %v1645, 8388607
    %v1647 = vor.u32 %v1646, 8388608
    %v1648 = vsub.s32 0, %v1647
    %v1649 = vadd.s32 %v1644, 1
    %vm1650 = vcmp.gt.s32.totalorder %v1649, 0
    %v1651 = vsel %vm1650, %v1649, 0
    %v1652 = vshrl.u32 %v1651, 5
    %v1653 = vand.u32 %v1651, 31
    %v1654 = vsub.s32 32, %v1653
    %v1655 = vshrl.u32 683565275, %v1654
    %v1656 = vshll.u32 683565275, %v1653
    %v1657 = vshrl.u32 2475754826, %v1654
    %v1658 = vor.u32 %v1656, %v1657
    %v1659 = vshll.u32 2475754826, %v1653
    %v1660 = vshrl.u32 2131351028, %v1654
    %v1661 = vor.u32 %v1659, %v1660
    %v1662 = vshll.u32 2131351028, %v1653
    %v1663 = vshrl.u32 2102212464, %v1654
    %v1664 = vor.u32 %v1662, %v1663
    %v1665 = vshll.u32 2102212464, %v1653
    %v1666 = vshrl.u32 920167782, %v1654
    %v1667 = vor.u32 %v1665, %v1666
    %v1668 = vshll.u32 920167782, %v1653
    %v1669 = vshrl.u32 1326507024, %v1654
    %v1670 = vor.u32 %v1668, %v1669
    %vm1671 = vcmp.lt.s32.totalorder %v1652, 1
    %vm1672 = vcmp.lt.s32.totalorder %v1652, 2
    %vm1673 = vcmp.lt.s32.totalorder %v1652, 3
    %vm1674 = vcmp.lt.s32.totalorder %v1652, 4
    %v1675 = vsel %vm1671, %v1655, %v1658
    %v1676 = vsel %vm1674, %v1664, 2102212464
    %v1677 = vsel %vm1673, %v1661, %v1676
    %v1678 = vsel %vm1672, %v1675, %v1677
    %v1679 = vsel %vm1671, %v1658, %v1661
    %v1680 = vsel %vm1674, %v1667, 920167782
    %v1681 = vsel %vm1673, %v1664, %v1680
    %v1682 = vsel %vm1672, %v1679, %v1681
    %v1683 = vsel %vm1671, %v1661, %v1664
    %v1684 = vsel %vm1674, %v1670, 1326507024
    %v1685 = vsel %vm1673, %v1667, %v1684
    %v1686 = vsel %vm1672, %v1683, %v1685
    %v1687 = vshll.u32 %v1647, 8
    %v1688 = vand.u32 %v1687, 65535
    %v1689 = vshrl.u32 %v1687, 16
    %v1690 = vand.u32 %v1686, 65535
    %v1691 = vshrl.u32 %v1686, 16
    %v1692 = vmul.u32 %v1688, %v1690
    %v1693 = vmul.u32 %v1688, %v1691
    %v1694 = vmul.u32 %v1689, %v1690
    %v1695 = vmul.u32 %v1689, %v1691
    %v1696 = vshll.u32 %v1693, 16
    %v1697 = vshrl.u32 %v1693, 16
    %v1698 = vshll.u32 %v1694, 16
    %v1699 = vshrl.u32 %v1694, 16
    %vm1700 = vc.u32 %v1692, %v1696
    %v1701 = vsel %vm1700, 1, 0
    %v1702 = vadd.s32 %v1692, %v1696
    %v1703 = vadd.s32 %v1695, %v1701
    %vm1704 = vc.u32 %v1702, %v1698
    %v1705 = vsel %vm1704, 1, 0
    %v1706 = vadd.s32 %v1702, %v1698
    %v1707 = vadd.s32 %v1703, %v1705
    %v1708 = vadd.s32 %v1707, %v1697
    %v1709 = vadd.s32 %v1708, %v1699
    %v1710 = vand.u32 %v1687, 65535
    %v1711 = vshrl.u32 %v1687, 16
    %v1712 = vand.u32 %v1682, 65535
    %v1713 = vshrl.u32 %v1682, 16
    %v1714 = vmul.u32 %v1710, %v1712
    %v1715 = vmul.u32 %v1710, %v1713
    %v1716 = vmul.u32 %v1711, %v1712
    %v1717 = vmul.u32 %v1711, %v1713
    %v1718 = vshll.u32 %v1715, 16
    %v1719 = vshrl.u32 %v1715, 16
    %v1720 = vshll.u32 %v1716, 16
    %v1721 = vshrl.u32 %v1716, 16
    %vm1722 = vc.u32 %v1714, %v1718
    %v1723 = vsel %vm1722, 1, 0
    %v1724 = vadd.s32 %v1714, %v1718
    %v1725 = vadd.s32 %v1717, %v1723
    %vm1726 = vc.u32 %v1724, %v1720
    %v1727 = vsel %vm1726, 1, 0
    %v1728 = vadd.s32 %v1724, %v1720
    %v1729 = vadd.s32 %v1725, %v1727
    %v1730 = vadd.s32 %v1729, %v1719
    %v1731 = vadd.s32 %v1730, %v1721
    %v1732 = vmul.u32 %v1687, %v1678
    %v1733 = vadd.s32 %v1709, %v1728
    %vm1734 = vc.u32 %v1709, %v1728
    %v1735 = vadd.s32 %v1731, 1
    %v1736 = vsel %vm1734, %v1735, %v1731
    %v1737 = vadd.s32 %v1732, %v1736
    %v1738 = vadd.s32 %v1737, 536870912
    %v1739 = vshrl.u32 %v1738, 30
    %v1740 = vshll.u32 %v1739, 30
    %v1741 = vsub.s32 %v1737, %v1740
    %vm1742 = vcmp.lt.s32.totalorder %v1741, 0
    %v1743 = vsub.s32 0, %v1741
    %v1744 = vsel %vm1742, %v1743, %v1741
    %v1745 = vclz %v1744
    %v1746 = vsub.s32 %v1745, 2
    %vm1747 = vcmp.gt.s32.totalorder 0, %v1746
    %v1748 = vsel %vm1747, 0, %v1746
    %v1749 = vsub.s32 32, %v1748
    %v1750 = vshll.u32 %v1741, %v1748
    %v1751 = vshrl.u32 %v1733, %v1749
    %v1752 = vor.u32 %v1750, %v1751
    %v1753 = vsub.s32 4294967266, %v1748
    %v1754 = vadd.s32 %v1753, 127
    %v1755 = vshll.u32 %v1754, 23
    %v1756 = vor.u32 4788187, %v1755
    %v1757 = vand.u32 2147483647, %v1756
    %v1759 = vcvt.s32.f32 %v1752
    %v1760 = vmul.f32 %v1759, %v1757
    %v1761 = vxor.u32 %v1760, 2147483648
    %v1762 = vsel %vm1641, %v1761, %v1760
    %v1763 = vsub.s32 4, %v1739
    %v1764 = vsel %vm1641, %v1763, %v1739
    %v1765 = vsel %vm1640, %v1015, %v1762
    %v1766 = vsel %vm1640, 0, %v1764
    %v1767 = vmul.f32 %v1765, %v1765
    %v1768 = vmul.f32 %v1767, -0.001358992
    %v1769 = vadd.f32 %v1768, 0.041655596
    %v1770 = vmul.f32 %v1767, %v1769
    %v1771 = vadd.f32 %v1770, -0.4999988
    %v1772 = vmul.f32 %v1767, %v1771
    %v1773 = vadd.f32 1.0, %v1772
    %v1774 = vmul.f32 %v1765, %v1765
    %v1775 = vmul.f32 %v1774, -0.00019511016
    %v1776 = vadd.f32 %v1775, 0.008332121
    %v1777 = vmul.f32 %v1774, %v1776
    %v1778 = vadd.f32 %v1777, -0.16666654
    %v1779 = vmul.f32 %v1774, %v1778
    %v1780 = vadd.f32 %v1779, 1.0
    %v1781 = vmul.f32 %v1780, %v1765
    %vm1782 = vweird.f32 %v1015
    %v1783 = vand.u32 %v1766, 3
    %vm1784 = vcmp.lt.s32.totalorder %v1783, 2
    %vm1785 = vcmp.eq.s32.totalorder %v1783, 0
    %v1786 = vxor.u32 %v1781, 2147483648
    %v1787 = vsel %vm1785, %v1773, %v1786
    %vm1788 = vcmp.eq.s32.totalorder %v1783, 2
    %v1789 = vxor.u32 %v1773, 2147483648
    %v1790 = vsel %vm1788, %v1789, %v1781
    %v1791 = vsel %vm1784, %v1787, %v1790
    %v1792 = vsel %vm1782, nan, %v1791
    %v1793 = vand.u32 2147483647, %v1016
    %vm1794 = vcmp.le.f32.partialorder %v1793, 0.7853982
    %vm1795 = vcmp.lt.s32.totalorder %v1016, 0
    %v1796 = vand.u32 %v1016, 2139095040
    %v1797 = vshrl.u32 %v1796, 23
    %v1798 = vsub.s32 %v1797, 127
    %v1799 = vand.u32 2147483647, %v1016
    %v1800 = vand.u32 %v1799, 8388607
    %v1801 = vor.u32 %v1800, 8388608
    %v1802 = vsub.s32 0, %v1801
    %v1803 = vadd.s32 %v1798, 1
    %vm1804 = vcmp.gt.s32.totalorder %v1803, 0
    %v1805 = vsel %vm1804, %v1803, 0
    %v1806 = vshrl.u32 %v1805, 5
    %v1807 = vand.u32 %v1805, 31
    %v1808 = vsub.s32 32, %v1807
    %v1809 = vshrl.u32 683565275, %v1808
    %v1810 = vshll.u32 683565275, %v1807
    %v1811 = vshrl.u32 2475754826, %v1808
    %v1812 = vor.u32 %v1810, %v1811
    %v1813 = vshll.u32 2475754826, %v1807
    %v1814 = vshrl.u32 2131351028, %v1808
    %v1815 = vor.u32 %v1813, %v1814
    %v1816 = vshll.u32 2131351028, %v1807
    %v1817 = vshrl.u32 2102212464, %v1808
    %v1818 = vor.u32 %v1816, %v1817
    %v1819 = vshll.u32 2102212464, %v1807
    %v1820 = vshrl.u32 920167782, %v1808
    %v1821 = vor.u32 %v1819, %v1820
    %v1822 = vshll.u32 920167782, %v1807
    %v1823 = vshrl.u32 1326507024, %v1808
    %v1824 = vor.u32 %v1822, %v1823
    %vm1825 = vcmp.lt.s32.totalorder %v1806, 1
    %vm1826 = vcmp.lt.s32.totalorder %v1806, 2
    %vm1827 = vcmp.lt.s32.totalorder %v1806, 3
    %vm1828 = vcmp.lt.s32.totalorder %v1806, 4
    %v1829 = vsel %vm1825, %v1809, %v1812
    %v1830 = vsel %vm1828, %v1818, 2102212464
    %v1831 = vsel %vm1827, %v1815, %v1830
    %v1832 = vsel %vm1826, %v1829, %v1831
    %v1833 = vsel %vm1825, %v1812, %v1815
    %v1834 = vsel %vm1828, %v1821, 920167782
    %v1835 = vsel %vm1827, %v1818, %v1834
    %v1836 = vsel %vm1826, %v1833, %v1835
    %v1837 = vsel %vm1825, %v1815, %v1818
    %v1838 = vsel %vm1828, %v1824, 1326507024
    %v1839 = vsel %vm1827, %v1821, %v1838
    %v1840 = vsel %vm1826, %v1837, %v1839
    %v1841 = vshll.u32 %v1801, 8
    %v1842 = vand.u32 %v1841, 65535
    %v1843 = vshrl.u32 %v1841, 16
    %v1844 = vand.u32 %v1840, 65535
    %v1845 = vshrl.u32 %v1840, 16
    %v1846 = vmul.u32 %v1842, %v1844
    %v1847 = vmul.u32 %v1842, %v1845
    %v1848 = vmul.u32 %v1843, %v1844
    %v1849 = vmul.u32 %v1843, %v1845
    %v1850 = vshll.u32 %v1847, 16
    %v1851 = vshrl.u32 %v1847, 16
    %v1852 = vshll.u32 %v1848, 16
    %v1853 = vshrl.u32 %v1848, 16
    %vm1854 = vc.u32 %v1846, %v1850
    %v1855 = vsel %vm1854, 1, 0
    %v1856 = vadd.s32 %v1846, %v1850
    %v1857 = vadd.s32 %v1849, %v1855
    %vm1858 = vc.u32 %v1856, %v1852
    %v1859 = vsel %vm1858, 1, 0
    %v1860 = vadd.s32 %v1856, %v1852
    %v1861 = vadd.s32 %v1857, %v1859
    %v1862 = vadd.s32 %v1861, %v1851
    %v1863 = vadd.s32 %v1862, %v1853
    %v1864 = vand.u32 %v1841, 65535
    %v1865 = vshrl.u32 %v1841, 16
    %v1866 = vand.u32 %v1836, 65535
    %v1867 = vshrl.u32 %v1836, 16
    %v1868 = vmul.u32 %v1864, %v1866
    %v1869 = vmul.u32 %v1864, %v1867
    %v1870 = vmul.u32 %v1865, %v1866
    %v1871 = vmul.u32 %v1865, %v1867
    %v1872 = vshll.u32 %v1869, 16
    %v1873 = vshrl.u32 %v1869, 16
    %v1874 = vshll.u32 %v1870, 16
    %v1875 = vshrl.u32 %v1870, 16
    %vm1876 = vc.u32 %v1868, %v1872
    %v1877 = vsel %vm1876, 1, 0
    %v1878 = vadd.s32 %v1868, %v1872
    %v1879 = vadd.s32 %v1871, %v1877
    %vm1880 = vc.u32 %v1878, %v1874
    %v1881 = vsel %vm1880, 1, 0
    %v1882 = vadd.s32 %v1878, %v1874
    %v1883 = vadd.s32 %v1879, %v1881
    %v1884 = vadd.s32 %v1883, %v1873
    %v1885 = vadd.s32 %v1884, %v1875
    %v1886 = vmul.u32 %v1841, %v1832
    %v1887 = vadd.s32 %v1863, %v1882
    %vm1888 = vc.u32 %v1863, %v1882
    %v1889 = vadd.s32 %v1885, 1
    %v1890 = vsel %vm1888, %v1889, %v1885
    %v1891 = vadd.s32 %v1886, %v1890
    %v1892 = vadd.s32 %v1891, 536870912
    %v1893 = vshrl.u32 %v1892, 30
    %v1894 = vshll.u32 %v1893, 30
    %v1895 = vsub.s32 %v1891, %v1894
    %vm1896 = vcmp.lt.s32.totalorder %v1895, 0
    %v1897 = vsub.s32 0, %v1895
    %v1898 = vsel %vm1896, %v1897, %v1895
    %v1899 = vclz %v1898
    %v1900 = vsub.s32 %v1899, 2
    %vm1901 = vcmp.gt.s32.totalorder 0, %v1900
    %v1902 = vsel %vm1901, 0, %v1900
    %v1903 = vsub.s32 32, %v1902
    %v1904 = vshll.u32 %v1895, %v1902
    %v1905 = vshrl.u32 %v1887, %v1903
    %v1906 = vor.u32 %v1904, %v1905
    %v1907 = vsub.s32 4294967266, %v1902
    %v1908 = vadd.s32 %v1907, 127
    %v1909 = vshll.u32 %v1908, 23
    %v1910 = vor.u32 4788187, %v1909
    %v1911 = vand.u32 2147483647, %v1910
    %v1913 = vcvt.s32.f32 %v1906
    %v1914 = vmul.f32 %v1913, %v1911
    %v1915 = vxor.u32 %v1914, 2147483648
    %v1916 = vsel %vm1795, %v1915, %v1914
    %v1917 = vsub.s32 4, %v1893
    %v1918 = vsel %vm1795, %v1917, %v1893
    %v1919 = vsel %vm1794, %v1016, %v1916
    %v1920 = vsel %vm1794, 0, %v1918
    %v1921 = vmul.f32 %v1919, %v1919
    %v1922 = vmul.f32 %v1921, -0.001358992
    %v1923 = vadd.f32 %v1922, 0.041655596
    %v1924 = vmul.f32 %v1921, %v1923
    %v1925 = vadd.f32 %v1924, -0.4999988
    %v1926 = vmul.f32 %v1921, %v1925
    %v1927 = vadd.f32 1.0, %v1926
    %v1928 = vmul.f32 %v1919, %v1919
    %v1929 = vmul.f32 %v1928, -0.00019511016
    %v1930 = vadd.f32 %v1929, 0.008332121
    %v1931 = vmul.f32 %v1928, %v1930
    %v1932 = vadd.f32 %v1931, -0.16666654
    %v1933 = vmul.f32 %v1928, %v1932
    %v1934 = vadd.f32 %v1933, 1.0
    %v1935 = vmul.f32 %v1934, %v1919
    %vm1936 = vweird.f32 %v1016
    %v1937 = vand.u32 %v1920, 3
    %vm1938 = vcmp.lt.s32.totalorder %v1937, 2
    %vm1939 = vcmp.eq.s32.totalorder %v1937, 0
    %v1940 = vxor.u32 %v1935, 2147483648
    %v1941 = vsel %vm1939, %v1927, %v1940
    %vm1942 = vcmp.eq.s32.totalorder %v1937, 2
    %v1943 = vxor.u32 %v1927, 2147483648
    %v1944 = vsel %vm1942, %v1943, %v1935
    %v1945 = vsel %vm1938, %v1941, %v1944
    %v1946 = vsel %vm1936, nan, %v1945
    %v1947 = vand.u32 2147483647, %v1017
    %vm1948 = vcmp.le.f32.partialorder %v1947, 0.7853982
    %vm1949 = vcmp.lt.s32.totalorder %v1017, 0
    %v1950 = vand.u32 %v1017, 2139095040
    %v1951 = vshrl.u32 %v1950, 23
    %v1952 = vsub.s32 %v1951, 127
    %v1953 = vand.u32 2147483647, %v1017
    %v1954 = vand.u32 %v1953, 8388607
    %v1955 = vor.u32 %v1954, 8388608
    %v1956 = vsub.s32 0, %v1955
    %v1957 = vadd.s32 %v1952, 1
    %vm1958 = vcmp.gt.s32.totalorder %v1957, 0
    %v1959 = vsel %vm1958, %v1957, 0
    %v1960 = vshrl.u32 %v1959, 5
    %v1961 = vand.u32 %v1959, 31
    %v1962 = vsub.s32 32, %v1961
    %v1963 = vshrl.u32 683565275, %v1962
    %v1964 = vshll.u32 683565275, %v1961
    %v1965 = vshrl.u32 2475754826, %v1962
    %v1966 = vor.u32 %v1964, %v1965
    %v1967 = vshll.u32 2475754826, %v1961
    %v1968 = vshrl.u32 2131351028, %v1962
    %v1969 = vor.u32 %v1967, %v1968
    %v1970 = vshll.u32 2131351028, %v1961
    %v1971 = vshrl.u32 2102212464, %v1962
    %v1972 = vor.u32 %v1970, %v1971
    %v1973 = vshll.u32 2102212464, %v1961
    %v1974 = vshrl.u32 920167782, %v1962
    %v1975 = vor.u32 %v1973, %v1974
    %v1976 = vshll.u32 920167782, %v1961
    %v1977 = vshrl.u32 1326507024, %v1962
    %v1978 = vor.u32 %v1976, %v1977
    %vm1979 = vcmp.lt.s32.totalorder %v1960, 1
    %vm1980 = vcmp.lt.s32.totalorder %v1960, 2
    %vm1981 = vcmp.lt.s32.totalorder %v1960, 3
    %vm1982 = vcmp.lt.s32.totalorder %v1960, 4
    %v1983 = vsel %vm1979, %v1963, %v1966
    %v1984 = vsel %vm1982, %v1972, 2102212464
    %v1985 = vsel %vm1981, %v1969, %v1984
    %v1986 = vsel %vm1980, %v1983, %v1985
    %v1987 = vsel %vm1979, %v1966, %v1969
    %v1988 = vsel %vm1982, %v1975, 920167782
    %v1989 = vsel %vm1981, %v1972, %v1988
    %v1990 = vsel %vm1980, %v1987, %v1989
    %v1991 = vsel %vm1979, %v1969, %v1972
    %v1992 = vsel %vm1982, %v1978, 1326507024
    %v1993 = vsel %vm1981, %v1975, %v1992
    %v1994 = vsel %vm1980, %v1991, %v1993
    %v1995 = vshll.u32 %v1955, 8
    %v1996 = vand.u32 %v1995, 65535
    %v1997 = vshrl.u32 %v1995, 16
    %v1998 = vand.u32 %v1994, 65535
    %v1999 = vshrl.u32 %v1994, 16
    %v2000 = vmul.u32 %v1996, %v1998
    %v2001 = vmul.u32 %v1996, %v1999
    %v2002 = vmul.u32 %v1997, %v1998
    %v2003 = vmul.u32 %v1997, %v1999
    %v2004 = vshll.u32 %v2001, 16
    %v2005 = vshrl.u32 %v2001, 16
    %v2006 = vshll.u32 %v2002, 16
    %v2007 = vshrl.u32 %v2002, 16
    %vm2008 = vc.u32 %v2000, %v2004
    %v2009 = vsel %vm2008, 1, 0
    %v2010 = vadd.s32 %v2000, %v2004
    %v2011 = vadd.s32 %v2003, %v2009
    %vm2012 = vc.u32 %v2010, %v2006
    %v2013 = vsel %vm2012, 1, 0
    %v2014 = vadd.s32 %v2010, %v2006
    %v2015 = vadd.s32 %v2011, %v2013
    %v2016 = vadd.s32 %v2015, %v2005
    %v2017 = vadd.s32 %v2016, %v2007
    %v2018 = vand.u32 %v1995, 65535
    %v2019 = vshrl.u32 %v1995, 16
    %v2020 = vand.u32 %v1990, 65535
    %v2021 = vshrl.u32 %v1990, 16
    %v2022 = vmul.u32 %v2018, %v2020
    %v2023 = vmul.u32 %v2018, %v2021
    %v2024 = vmul.u32 %v2019, %v2020
    %v2025 = vmul.u32 %v2019, %v2021
    %v2026 = vshll.u32 %v2023, 16
    %v2027 = vshrl.u32 %v2023, 16
    %v2028 = vshll.u32 %v2024, 16
    %v2029 = vshrl.u32 %v2024, 16
    %vm2030 = vc.u32 %v2022, %v2026
    %v2031 = vsel %vm2030, 1, 0
    %v2032 = vadd.s32 %v2022, %v2026
    %v2033 = vadd.s32 %v2025, %v2031
    %vm2034 = vc.u32 %v2032, %v2028
    %v2035 = vsel %vm2034, 1, 0
    %v2036 = vadd.s32 %v2032, %v2028
    %v2037 = vadd.s32 %v2033, %v2035
    %v2038 = vadd.s32 %v2037, %v2027
    %v2039 = vadd.s32 %v2038, %v2029
    %v2040 = vmul.u32 %v1995, %v1986
    %v2041 = vadd.s32 %v2017, %v2036
    %vm2042 = vc.u32 %v2017, %v2036
    %v2043 = vadd.s32 %v2039, 1
    %v2044 = vsel %vm2042, %v2043, %v2039
    %v2045 = vadd.s32 %v2040, %v2044
    %v2046 = vadd.s32 %v2045, 536870912
    %v2047 = vshrl.u32 %v2046, 30
    %v2048 = vshll.u32 %v2047, 30
    %v2049 = vsub.s32 %v2045, %v2048
    %vm2050 = vcmp.lt.s32.totalorder %v2049, 0
    %v2051 = vsub.s32 0, %v2049
    %v2052 = vsel %vm2050, %v2051, %v2049
    %v2053 = vclz %v2052
    %v2054 = vsub.s32 %v2053, 2
    %vm2055 = vcmp.gt.s32.totalorder 0, %v2054
    %v2056 = vsel %vm2055, 0, %v2054
    %v2057 = vsub.s32 32, %v2056
    %v2058 = vshll.u32 %v2049, %v2056
    %v2059 = vshrl.u32 %v2041, %v2057
    %v2060 = vor.u32 %v2058, %v2059
    %v2061 = vsub.s32 4294967266, %v2056
    %v2062 = vadd.s32 %v2061, 127
    %v2063 = vshll.u32 %v2062, 23
    %v2064 = vor.u32 4788187, %v2063
    %v2065 = vand.u32 2147483647, %v2064
    %v2067 = vcvt.s32.f32 %v2060
    %v2068 = vmul.f32 %v2067, %v2065
    %v2069 = vxor.u32 %v2068, 2147483648
    %v2070 = vsel %vm1949, %v2069, %v2068
    %v2071 = vsub.s32 4, %v2047
    %v2072 = vsel %vm1949, %v2071, %v2047
    %v2073 = vsel %vm1948, %v1017, %v2070
    %v2074 = vsel %vm1948, 0, %v2072
    %v2075 = vmul.f32 %v2073, %v2073
    %v2076 = vmul.f32 %v2075, -0.001358992
    %v2077 = vadd.f32 %v2076, 0.041655596
    %v2078 = vmul.f32 %v2075, %v2077
    %v2079 = vadd.f32 %v2078, -0.4999988
    %v2080 = vmul.f32 %v2075, %v2079
    %v2081 = vadd.f32 1.0, %v2080
    %v2082 = vmul.f32 %v2073, %v2073
    %v2083 = vmul.f32 %v2082, -0.00019511016
    %v2084 = vadd.f32 %v2083, 0.008332121
    %v2085 = vmul.f32 %v2082, %v2084
    %v2086 = vadd.f32 %v2085, -0.16666654
    %v2087 = vmul.f32 %v2082, %v2086
    %v2088 = vadd.f32 %v2087, 1.0
    %v2089 = vmul.f32 %v2088, %v2073
    %vm2090 = vweird.f32 %v1017
    %v2091 = vand.u32 %v2074, 3
    %vm2092 = vcmp.lt.s32.totalorder %v2091, 2
    %vm2093 = vcmp.eq.s32.totalorder %v2091, 0
    %v2094 = vxor.u32 %v2089, 2147483648
    %v2095 = vsel %vm2093, %v2081, %v2094
    %vm2096 = vcmp.eq.s32.totalorder %v2091, 2
    %v2097 = vxor.u32 %v2081, 2147483648
    %v2098 = vsel %vm2096, %v2097, %v2089
    %v2099 = vsel %vm2092, %v2095, %v2098
    %v2100 = vsel %vm2090, nan, %v2099
    %v2101 = vand.u32 2147483647, %v1018
    %vm2102 = vcmp.le.f32.partialorder %v2101, 0.7853982
    %vm2103 = vcmp.lt.s32.totalorder %v1018, 0
    %v2104 = vand.u32 %v1018, 2139095040
    %v2105 = vshrl.u32 %v2104, 23
    %v2106 = vsub.s32 %v2105, 127
    %v2107 = vand.u32 2147483647, %v1018
    %v2108 = vand.u32 %v2107, 8388607
    %v2109 = vor.u32 %v2108, 8388608
    %v2110 = vsub.s32 0, %v2109
    %v2111 = vadd.s32 %v2106, 1
    %vm2112 = vcmp.gt.s32.totalorder %v2111, 0
    %v2113 = vsel %vm2112, %v2111, 0
    %v2114 = vshrl.u32 %v2113, 5
    %v2115 = vand.u32 %v2113, 31
    %v2116 = vsub.s32 32, %v2115
    %v2117 = vshrl.u32 683565275, %v2116
    %v2118 = vshll.u32 683565275, %v2115
    %v2119 = vshrl.u32 2475754826, %v2116
    %v2120 = vor.u32 %v2118, %v2119
    %v2121 = vshll.u32 2475754826, %v2115
    %v2122 = vshrl.u32 2131351028, %v2116
    %v2123 = vor.u32 %v2121, %v2122
    %v2124 = vshll.u32 2131351028, %v2115
    %v2125 = vshrl.u32 2102212464, %v2116
    %v2126 = vor.u32 %v2124, %v2125
    %v2127 = vshll.u32 2102212464, %v2115
    %v2128 = vshrl.u32 920167782, %v2116
    %v2129 = vor.u32 %v2127, %v2128
    %v2130 = vshll.u32 920167782, %v2115
    %v2131 = vshrl.u32 1326507024, %v2116
    %v2132 = vor.u32 %v2130, %v2131
    %vm2133 = vcmp.lt.s32.totalorder %v2114, 1
    %vm2134 = vcmp.lt.s32.totalorder %v2114, 2
    %vm2135 = vcmp.lt.s32.totalorder %v2114, 3
    %vm2136 = vcmp.lt.s32.totalorder %v2114, 4
    %v2137 = vsel %vm2133, %v2117, %v2120
    %v2138 = vsel %vm2136, %v2126, 2102212464
    %v2139 = vsel %vm2135, %v2123, %v2138
    %v2140 = vsel %vm2134, %v2137, %v2139
    %v2141 = vsel %vm2133, %v2120, %v2123
    %v2142 = vsel %vm2136, %v2129, 920167782
    %v2143 = vsel %vm2135, %v2126, %v2142
    %v2144 = vsel %vm2134, %v2141, %v2143
    %v2145 = vsel %vm2133, %v2123, %v2126
    %v2146 = vsel %vm2136, %v2132, 1326507024
    %v2147 = vsel %vm2135, %v2129, %v2146
    %v2148 = vsel %vm2134, %v2145, %v2147
    %v2149 = vshll.u32 %v2109, 8
    %v2150 = vand.u32 %v2149, 65535
    %v2151 = vshrl.u32 %v2149, 16
    %v2152 = vand.u32 %v2148, 65535
    %v2153 = vshrl.u32 %v2148, 16
    %v2154 = vmul.u32 %v2150, %v2152
    %v2155 = vmul.u32 %v2150, %v2153
    %v2156 = vmul.u32 %v2151, %v2152
    %v2157 = vmul.u32 %v2151, %v2153
    %v2158 = vshll.u32 %v2155, 16
    %v2159 = vshrl.u32 %v2155, 16
    %v2160 = vshll.u32 %v2156, 16
    %v2161 = vshrl.u32 %v2156, 16
    %vm2162 = vc.u32 %v2154, %v2158
    %v2163 = vsel %vm2162, 1, 0
    %v2164 = vadd.s32 %v2154, %v2158
    %v2165 = vadd.s32 %v2157, %v2163
    %vm2166 = vc.u32 %v2164, %v2160
    %v2167 = vsel %vm2166, 1, 0
    %v2168 = vadd.s32 %v2164, %v2160
    %v2169 = vadd.s32 %v2165, %v2167
    %v2170 = vadd.s32 %v2169, %v2159
    %v2171 = vadd.s32 %v2170, %v2161
    %v2172 = vand.u32 %v2149, 65535
    %v2173 = vshrl.u32 %v2149, 16
    %v2174 = vand.u32 %v2144, 65535
    %v2175 = vshrl.u32 %v2144, 16
    %v2176 = vmul.u32 %v2172, %v2174
    %v2177 = vmul.u32 %v2172, %v2175
    %v2178 = vmul.u32 %v2173, %v2174
    %v2179 = vmul.u32 %v2173, %v2175
    %v2180 = vshll.u32 %v2177, 16
    %v2181 = vshrl.u32 %v2177, 16
    %v2182 = vshll.u32 %v2178, 16
    %v2183 = vshrl.u32 %v2178, 16
    %vm2184 = vc.u32 %v2176, %v2180
    %v2185 = vsel %vm2184, 1, 0
    %v2186 = vadd.s32 %v2176, %v2180
    %v2187 = vadd.s32 %v2179, %v2185
    %vm2188 = vc.u32 %v2186, %v2182
    %v2189 = vsel %vm2188, 1, 0
    %v2190 = vadd.s32 %v2186, %v2182
    %v2191 = vadd.s32 %v2187, %v2189
    %v2192 = vadd.s32 %v2191, %v2181
    %v2193 = vadd.s32 %v2192, %v2183
    %v2194 = vmul.u32 %v2149, %v2140
    %v2195 = vadd.s32 %v2171, %v2190
    %vm2196 = vc.u32 %v2171, %v2190
    %v2197 = vadd.s32 %v2193, 1
    %v2198 = vsel %vm2196, %v2197, %v2193
    %v2199 = vadd.s32 %v2194, %v2198
    %v2200 = vadd.s32 %v2199, 536870912
    %v2201 = vshrl.u32 %v2200, 30
    %v2202 = vshll.u32 %v2201, 30
    %v2203 = vsub.s32 %v2199, %v2202
    %vm2204 = vcmp.lt.s32.totalorder %v2203, 0
    %v2205 = vsub.s32 0, %v2203
    %v2206 = vsel %vm2204, %v2205, %v2203
    %v2207 = vclz %v2206
    %v2208 = vsub.s32 %v2207, 2
    %vm2209 = vcmp.gt.s32.totalorder 0, %v2208
    %v2210 = vsel %vm2209, 0, %v2208
    %v2211 = vsub.s32 32, %v2210
    %v2212 = vshll.u32 %v2203, %v2210
    %v2213 = vshrl.u32 %v2195, %v2211
    %v2214 = vor.u32 %v2212, %v2213
    %v2215 = vsub.s32 4294967266, %v2210
    %v2216 = vadd.s32 %v2215, 127
    %v2217 = vshll.u32 %v2216, 23
    %v2218 = vor.u32 4788187, %v2217
    %v2219 = vand.u32 2147483647, %v2218
    %v2221 = vcvt.s32.f32 %v2214
    %v2222 = vmul.f32 %v2221, %v2219
    %v2223 = vxor.u32 %v2222, 2147483648
    %v2224 = vsel %vm2103, %v2223, %v2222
    %v2225 = vsub.s32 4, %v2201
    %v2226 = vsel %vm2103, %v2225, %v2201
    %v2227 = vsel %vm2102, %v1018, %v2224
    %v2228 = vsel %vm2102, 0, %v2226
    %v2229 = vmul.f32 %v2227, %v2227
    %v2230 = vmul.f32 %v2229, -0.001358992
    %v2231 = vadd.f32 %v2230, 0.041655596
    %v2232 = vmul.f32 %v2229, %v2231
    %v2233 = vadd.f32 %v2232, -0.4999988
    %v2234 = vmul.f32 %v2229, %v2233
    %v2235 = vadd.f32 1.0, %v2234
    %v2236 = vmul.f32 %v2227, %v2227
    %v2237 = vmul.f32 %v2236, -0.00019511016
    %v2238 = vadd.f32 %v2237, 0.008332121
    %v2239 = vmul.f32 %v2236, %v2238
    %v2240 = vadd.f32 %v2239, -0.16666654
    %v2241 = vmul.f32 %v2236, %v2240
    %v2242 = vadd.f32 %v2241, 1.0
    %v2243 = vmul.f32 %v2242, %v2227
    %vm2244 = vweird.f32 %v1018
    %v2245 = vand.u32 %v2228, 3
    %vm2246 = vcmp.lt.s32.totalorder %v2245, 2
    %vm2247 = vcmp.eq.s32.totalorder %v2245, 0
    %v2248 = vxor.u32 %v2243, 2147483648
    %v2249 = vsel %vm2247, %v2235, %v2248
    %vm2250 = vcmp.eq.s32.totalorder %v2245, 2
    %v2251 = vxor.u32 %v2235, 2147483648
    %v2252 = vsel %vm2250, %v2251, %v2243
    %v2253 = vsel %vm2246, %v2249, %v2252
    %v2254 = vsel %vm2244, nan, %v2253
    %v2256 = vperm.slane %v1000, 0
    %v2258 = vmul.f32 %v1173, %v2256
    %v2259 = vmul.f32 %v1328, %v2256
    %v2260 = vmul.f32 %v1483, %v2256
    %v2261 = vmul.f32 %v1638, %v2256
    %v2263 = vperm.slane %v1007, 0
    %v2265 = vadd.f32 %v2263, %v2258
    %v2266 = vadd.f32 %v2263, %v2259
    %v2267 = vadd.f32 %v2263, %v2260
    %v2268 = vadd.f32 %v2263, %v2261
    %v2270 = vperm.slane %v1008, 0
    %v2272 = vmul.f32 %v1792, %v2270
    %v2273 = vmul.f32 %v1946, %v2270
    %v2274 = vmul.f32 %v2100, %v2270
    %v2275 = vmul.f32 %v2254, %v2270
    %v2276 = vadd.f32 %v2265, %v2272
    %v2277 = vadd.f32 %v2266, %v2273
    %v2278 = vadd.f32 %v2267, %v2274
    %v2279 = vadd.f32 %v2268, %v2275
    %v2280 = vmul.f32 %v1173, %v1792
    %v2281 = vmul.f32 %v1328, %v1946
    %v2282 = vmul.f32 %v1483, %v2100
    %v2283 = vmul.f32 %v1638, %v2254
    %v2284 = vadd.f32 %v2280, %v2280
    %v2285 = vadd.f32 %v2281, %v2281
    %v2286 = vadd.f32 %v2282, %v2282
    %v2287 = vadd.f32 %v2283, %v2283
    %v2288 = vmul.f32 %v1792, %v1792
    %v2289 = vmul.f32 %v1946, %v1946
    %v2290 = vmul.f32 %v2100, %v2100
    %v2291 = vmul.f32 %v2254, %v2254
    %v2292 = vmul.f32 %v1173, %v1173
    %v2293 = vmul.f32 %v1328, %v1328
    %v2294 = vmul.f32 %v1483, %v1483
    %v2295 = vmul.f32 %v1638, %v1638
    %v2296 = vsub.f32 %v2288, %v2292
    %v2297 = vsub.f32 %v2289, %v2293
    %v2298 = vsub.f32 %v2290, %v2294
    %v2299 = vsub.f32 %v2291, %v2295
    %v2301 = vperm.slane %v1001, 0
    %v2303 = vmul.f32 %v2284, %v2301
    %v2304 = vmul.f32 %v2285, %v2301
    %v2305 = vmul.f32 %v2286, %v2301
    %v2306 = vmul.f32 %v2287, %v2301
    %v2307 = vadd.f32 %v2276, %v2303
    %v2308 = vadd.f32 %v2277, %v2304
    %v2309 = vadd.f32 %v2278, %v2305
    %v2310 = vadd.f32 %v2279, %v2306
    %v2312 = vperm.slane %v1009, 0
    %v2314 = vmul.f32 %v2296, %v2312
    %v2315 = vmul.f32 %v2297, %v2312
    %v2316 = vmul.f32 %v2298, %v2312
    %v2317 = vmul.f32 %v2299, %v2312
    %v2318 = vadd.f32 %v2307, %v2314
    %v2319 = vadd.f32 %v2308, %v2315
    %v2320 = vadd.f32 %v2309, %v2316
    %v2321 = vadd.f32 %v2310, %v2317
    %v2322 = vmul.f32 %v2284, %v1792
    %v2323 = vmul.f32 %v2285, %v1946
    %v2324 = vmul.f32 %v2286, %v2100
    %v2325 = vmul.f32 %v2287, %v2254
    %v2326 = vmul.f32 %v2296, %v1173
    %v2327 = vmul.f32 %v2297, %v1328
    %v2328 = vmul.f32 %v2298, %v1483
    %v2329 = vmul.f32 %v2299, %v1638
    %v2330 = vadd.f32 %v2322, %v2326
    %v2331 = vadd.f32 %v2323, %v2327
    %v2332 = vadd.f32 %v2324, %v2328
    %v2333 = vadd.f32 %v2325, %v2329
    %v2334 = vmul.f32 %v2296, %v1792
    %v2335 = vmul.f32 %v2297, %v1946
    %v2336 = vmul.f32 %v2298, %v2100
    %v2337 = vmul.f32 %v2299, %v2254
    %v2338 = vmul.f32 %v2284, %v1173
    %v2339 = vmul.f32 %v2285, %v1328
    %v2340 = vmul.f32 %v2286, %v1483
    %v2341 = vmul.f32 %v2287, %v1638
    %v2342 = vsub.f32 %v2334, %v2338
    %v2343 = vsub.f32 %v2335, %v2339
    %v2344 = vsub.f32 %v2336, %v2340
    %v2345 = vsub.f32 %v2337, %v2341
    %v2347 = vperm.slane %v1002, 0
    %v2349 = vmul.f32 %v2330, %v2347
    %v2350 = vmul.f32 %v2331, %v2347
    %v2351 = vmul.f32 %v2332, %v2347
    %v2352 = vmul.f32 %v2333, %v2347
    %v2353 = vadd.f32 %v2318, %v2349
    %v2354 = vadd.f32 %v2319, %v2350
    %v2355 = vadd.f32 %v2320, %v2351
    %v2356 = vadd.f32 %v2321, %v2352
    %v2358 = vperm.slane %v1010, 0
    %v2360 = vmul.f32 %v2342, %v2358
    %v2361 = vmul.f32 %v2343, %v2358
    %v2362 = vmul.f32 %v2344, %v2358
    %v2363 = vmul.f32 %v2345, %v2358
    %v2364 = vadd.f32 %v2353, %v2360
    %v2365 = vadd.f32 %v2354, %v2361
    %v2366 = vadd.f32 %v2355, %v2362
    %v2367 = vadd.f32 %v2356, %v2363
    %v2368 = vmul.f32 %v2330, %v1792
    %v2369 = vmul.f32 %v2331, %v1946
    %v2370 = vmul.f32 %v2332, %v2100
    %v2371 = vmul.f32 %v2333, %v2254
    %v2372 = vmul.f32 %v2342, %v1173
    %v2373 = vmul.f32 %v2343, %v1328
    %v2374 = vmul.f32 %v2344, %v1483
    %v2375 = vmul.f32 %v2345, %v1638
    %v2376 = vadd.f32 %v2368, %v2372
    %v2377 = vadd.f32 %v2369, %v2373
    %v2378 = vadd.f32 %v2370, %v2374
    %v2379 = vadd.f32 %v2371, %v2375
    %v2380 = vmul.f32 %v2342, %v1792
    %v2381 = vmul.f32 %v2343, %v1946
    %v2382 = vmul.f32 %v2344, %v2100
    %v2383 = vmul.f32 %v2345, %v2254
    %v2384 = vmul.f32 %v2330, %v1173
    %v2385 = vmul.f32 %v2331, %v1328
    %v2386 = vmul.f32 %v2332, %v1483
    %v2387 = vmul.f32 %v2333, %v1638
    %v2388 = vsub.f32 %v2380, %v2384
    %v2389 = vsub.f32 %v2381, %v2385
    %v2390 = vsub.f32 %v2382, %v2386
    %v2391 = vsub.f32 %v2383, %v2387
    %v2393 = vperm.slane %v1003, 0
    %v2395 = vmul.f32 %v2376, %v2393
    %v2396 = vmul.f32 %v2377, %v2393
    %v2397 = vmul.f32 %v2378, %v2393
    %v2398 = vmul.f32 %v2379, %v2393
    %v2399 = vadd.f32 %v2364, %v2395
    %v2400 = vadd.f32 %v2365, %v2396
    %v2401 = vadd.f32 %v2366, %v2397
    %v2402 = vadd.f32 %v2367, %v2398
    %v2404 = vperm.slane %v1011, 0
    %v2406 = vmul.f32 %v2388, %v2404
    %v2407 = vmul.f32 %v2389, %v2404
    %v2408 = vmul.f32 %v2390, %v2404
    %v2409 = vmul.f32 %v2391, %v2404
    %v2410 = vadd.f32 %v2399, %v2406
    %v2411 = vadd.f32 %v2400, %v2407
    %v2412 = vadd.f32 %v2401, %v2408
    %v2413 = vadd.f32 %v2402, %v2409
    %v2414 = vmul.f32 %v2376, %v1792
    %v2415 = vmul.f32 %v2377, %v1946
    %v2416 = vmul.f32 %v2378, %v2100
    %v2417 = vmul.f32 %v2379, %v2254
    %v2418 = vmul.f32 %v2388, %v1173
    %v2419 = vmul.f32 %v2389, %v1328
    %v2420 = vmul.f32 %v2390, %v1483
    %v2421 = vmul.f32 %v2391, %v1638
    %v2422 = vadd.f32 %v2414, %v2418
    %v2423 = vadd.f32 %v2415, %v2419
    %v2424 = vadd.f32 %v2416, %v2420
    %v2425 = vadd.f32 %v2417, %v2421
    %v2426 = vmul.f32 %v2388, %v1792
    %v2427 = vmul.f32 %v2389, %v1946
    %v2428 = vmul.f32 %v2390, %v2100
    %v2429 = vmul.f32 %v2391, %v2254
    %v2430 = vmul.f32 %v2376, %v1173
    %v2431 = vmul.f32 %v2377, %v1328
    %v2432 = vmul.f32 %v2378, %v1483
    %v2433 = vmul.f32 %v2379, %v1638
    %v2434 = vsub.f32 %v2426, %v2430
    %v2435 = vsub.f32 %v2427, %v2431
    %v2436 = vsub.f32 %v2428, %v2432
    %v2437 = vsub.f32 %v2429, %v2433
    %v2439 = vperm.slane %v1004, 0
    %v2441 = vmul.f32 %v2422, %v2439
    %v2442 = vmul.f32 %v2423, %v2439
    %v2443 = vmul.f32 %v2424, %v2439
    %v2444 = vmul.f32 %v2425, %v2439
    %v2445 = vadd.f32 %v2410, %v2441
    %v2446 = vadd.f32 %v2411, %v2442
    %v2447 = vadd.f32 %v2412, %v2443
    %v2448 = vadd.f32 %v2413, %v2444
    %v2450 = vperm.slane %v1012, 0
    %v2452 = vmul.f32 %v2434, %v2450
    %v2453 = vmul.f32 %v2435, %v2450
    %v2454 = vmul.f32 %v2436, %v2450
    %v2455 = vmul.f32 %v2437, %v2450
    %v2456 = vadd.f32 %v2445, %v2452
    %v2457 = vadd.f32 %v2446, %v2453
    %v2458 = vadd.f32 %v2447, %v2454
    %v2459 = vadd.f32 %v2448, %v2455
    %v2460 = vmul.f32 %v2422, %v1792
    %v2461 = vmul.f32 %v2423, %v1946
    %v2462 = vmul.f32 %v2424, %v2100
    %v2463 = vmul.f32 %v2425, %v2254
    %v2464 = vmul.f32 %v2434, %v1173
    %v2465 = vmul.f32 %v2435, %v1328
    %v2466 = vmul.f32 %v2436, %v1483
    %v2467 = vmul.f32 %v2437, %v1638
    %v2468 = vadd.f32 %v2460, %v2464
    %v2469 = vadd.f32 %v2461, %v2465
    %v2470 = vadd.f32 %v2462, %v2466
    %v2471 = vadd.f32 %v2463, %v2467
    %v2472 = vmul.f32 %v2434, %v1792
    %v2473 = vmul.f32 %v2435, %v1946
    %v2474 = vmul.f32 %v2436, %v2100
    %v2475 = vmul.f32 %v2437, %v2254
    %v2476 = vmul.f32 %v2422, %v1173
    %v2477 = vmul.f32 %v2423, %v1328
    %v2478 = vmul.f32 %v2424, %v1483
    %v2479 = vmul.f32 %v2425, %v1638
    %v2480 = vsub.f32 %v2472, %v2476
    %v2481 = vsub.f32 %v2473, %v2477
    %v2482 = vsub.f32 %v2474, %v2478
    %v2483 = vsub.f32 %v2475, %v2479
    %v2485 = vperm.slane %v1005, 0
    %v2487 = vmul.f32 %v2468, %v2485
    %v2488 = vmul.f32 %v2469, %v2485
    %v2489 = vmul.f32 %v2470, %v2485
    %v2490 = vmul.f32 %v2471, %v2485
    %v2491 = vadd.f32 %v2456, %v2487
    %v2492 = vadd.f32 %v2457, %v2488
    %v2493 = vadd.f32 %v2458, %v2489
    %v2494 = vadd.f32 %v2459, %v2490
    %v2496 = vperm.slane %v1013, 0
    %v2498 = vmul.f32 %v2480, %v2496
    %v2499 = vmul.f32 %v2481, %v2496
    %v2500 = vmul.f32 %v2482, %v2496
    %v2501 = vmul.f32 %v2483, %v2496
    %v2502 = vadd.f32 %v2491, %v2498
    %v2503 = vadd.f32 %v2492, %v2499
    %v2504 = vadd.f32 %v2493, %v2500
    %v2505 = vadd.f32 %v2494, %v2501
    %v2506 = vmul.f32 %v2468, %v1792
    %v2507 = vmul.f32 %v2469, %v1946
    %v2508 = vmul.f32 %v2470, %v2100
    %v2509 = vmul.f32 %v2471, %v2254
    %v2510 = vmul.f32 %v2480, %v1173
    %v2511 = vmul.f32 %v2481, %v1328
    %v2512 = vmul.f32 %v2482, %v1483
    %v2513 = vmul.f32 %v2483, %v1638
    %v2514 = vadd.f32 %v2506, %v2510
    %v2515 = vadd.f32 %v2507, %v2511
    %v2516 = vadd.f32 %v2508, %v2512
    %v2517 = vadd.f32 %v2509, %v2513
    %v2518 = vmul.f32 %v2480, %v1792
    %v2519 = vmul.f32 %v2481, %v1946
    %v2520 = vmul.f32 %v2482, %v2100
    %v2521 = vmul.f32 %v2483, %v2254
    %v2522 = vmul.f32 %v2468, %v1173
    %v2523 = vmul.f32 %v2469, %v1328
    %v2524 = vmul.f32 %v2470, %v1483
    %v2525 = vmul.f32 %v2471, %v1638
    %v2526 = vsub.f32 %v2518, %v2522
    %v2527 = vsub.f32 %v2519, %v2523
    %v2528 = vsub.f32 %v2520, %v2524
    %v2529 = vsub.f32 %v2521, %v2525
    %v2531 = vperm.slane %v1006, 0
    %v2533 = vmul.f32 %v2514, %v2531
    %v2534 = vmul.f32 %v2515, %v2531
    %v2535 = vmul.f32 %v2516, %v2531
    %v2536 = vmul.f32 %v2517, %v2531
    %v2537 = vadd.f32 %v2502, %v2533
    %v2538 = vadd.f32 %v2503, %v2534
    %v2539 = vadd.f32 %v2504, %v2535
    %v2540 = vadd.f32 %v2505, %v2536
    %v2542 = vperm.slane %v1014, 0
    %v2544 = vmul.f32 %v2526, %v2542
    %v2545 = vmul.f32 %v2527, %v2542
    %v2546 = vmul.f32 %v2528, %v2542
    %v2547 = vmul.f32 %v2529, %v2542
    %v2548 = vadd.f32 %v2537, %v2544
    %v2549 = vadd.f32 %v2538, %v2545
    %v2550 = vadd.f32 %v2539, %v2546
    %v2551 = vadd.f32 %v2540, %v2547
    %v2552 = vadd.f32 %v996, %v2548
    %v2553 = vadd.f32 %v997, %v2549
    %v2554 = vadd.f32 %v998, %v2550
    %v2555 = vadd.f32 %v999, %v2551
    %v2556 = vmul.f32 %v390, %v2552
    %v2557 = vmul.f32 %v393, %v2552
    %v2558 = vmul.f32 %v396, %v2552
    %v2559 = vmul.f32 %v399, %v2552
    %v2560 = vmul.f32 %v402, %v2552
    %v2561 = vmul.f32 %v405, %v2552
    %v2562 = vmul.f32 %v408, %v2552
    %v2563 = vmul.f32 %v411, %v2552
    %v2564 = vmul.f32 %v414, %v2552
    %v2565 = vmul.f32 %v417, %v2552
    %v2566 = vmul.f32 %v420, %v2552
    %v2567 = vmul.f32 %v423, %v2552
    %v2568 = vmul.f32 %v426, %v2552
    %v2569 = vmul.f32 %v429, %v2552
    %v2570 = vmul.f32 %v432, %v2552
    %v2571 = vmul.f32 %v435, %v2552
    %v2572 = vmul.f32 %v390, %v2553
    %v2573 = vmul.f32 %v393, %v2553
    %v2574 = vmul.f32 %v396, %v2553
    %v2575 = vmul.f32 %v399, %v2553
    %v2576 = vmul.f32 %v402, %v2553
    %v2577 = vmul.f32 %v405, %v2553
    %v2578 = vmul.f32 %v408, %v2553
    %v2579 = vmul.f32 %v411, %v2553
    %v2580 = vmul.f32 %v414, %v2553
    %v2581 = vmul.f32 %v417, %v2553
    %v2582 = vmul.f32 %v420, %v2553
    %v2583 = vmul.f32 %v423, %v2553
    %v2584 = vmul.f32 %v426, %v2553
    %v2585 = vmul.f32 %v429, %v2553
    %v2586 = vmul.f32 %v432, %v2553
    %v2587 = vmul.f32 %v435, %v2553
    %v2588 = vmul.f32 %v390, %v2554
    %v2589 = vmul.f32 %v393, %v2554
    %v2590 = vmul.f32 %v396, %v2554
    %v2591 = vmul.f32 %v399, %v2554
    %v2592 = vmul.f32 %v402, %v2554
    %v2593 = vmul.f32 %v405, %v2554
    %v2594 = vmul.f32 %v408, %v2554
    %v2595 = vmul.f32 %v411, %v2554
    %v2596 = vmul.f32 %v414, %v2554
    %v2597 = vmul.f32 %v417, %v2554
    %v2598 = vmul.f32 %v420, %v2554
    %v2599 = vmul.f32 %v423, %v2554
    %v2600 = vmul.f32 %v426, %v2554
    %v2601 = vmul.f32 %v429, %v2554
    %v2602 = vmul.f32 %v432, %v2554
    %v2603 = vmul.f32 %v435, %v2554
    %v2604 = vmul.f32 %v390, %v2555
    %v2605 = vmul.f32 %v393, %v2555
    %v2606 = vmul.f32 %v396, %v2555
    %v2607 = vmul.f32 %v399, %v2555
    %v2608 = vmul.f32 %v402, %v2555
    %v2609 = vmul.f32 %v405, %v2555
    %v2610 = vmul.f32 %v408, %v2555
    %v2611 = vmul.f32 %v411, %v2555
    %v2612 = vmul.f32 %v414, %v2555
    %v2613 = vmul.f32 %v417, %v2555
    %v2614 = vmul.f32 %v420, %v2555
    %v2615 = vmul.f32 %v423, %v2555
    %v2616 = vmul.f32 %v426, %v2555
    %v2617 = vmul.f32 %v429, %v2555
    %v2618 = vmul.f32 %v432, %v2555
    %v2619 = vmul.f32 %v435, %v2555
    %v2620 = vld [vmem:[%s11] sm:$0xff]
    %v2621 = vld [vmem:[%s11 + $0x8] sm:$0xff]
    %v2622 = vld [vmem:[%s11 + $0x10] sm:$0xff]
    %v2623 = vld [vmem:[%s11 + $0x18] sm:$0xff]
    %v2624 = vld [vmem:[%s11 + $0x20] sm:$0xff]
    %v2625 = vld [vmem:[%s11 + $0x28] sm:$0xff]
    %v2626 = vld [vmem:[%s11 + $0x30] sm:$0xff]
    %v2627 = vld [vmem:[%s11 + $0x38] sm:$0xff]
    %v2628 = vld [vmem:[%s11 + $0x40] sm:$0xff]
    %v2629 = vld [vmem:[%s11 + $0x48] sm:$0xff]
    %v2630 = vld [vmem:[%s11 + $0x50] sm:$0xff]
    %v2631 = vld [vmem:[%s11 + $0x58] sm:$0xff]
    %v2632 = vld [vmem:[%s11 + $0x60] sm:$0xff]
    %v2633 = vld [vmem:[%s11 + $0x68] sm:$0xff]
    %v2634 = vld [vmem:[%s11 + $0x70] sm:$0xff]
    %v2635 = vld [vmem:[%s11 + $0x78] sm:$0xff]
    %2636 = vmatpush.msra.mxu0 %v2635
    %2637 = vmatpush.msra.mxu0 %v2634
    %2638 = vmatpush.msra.mxu0 %v2633
    %2639 = vmatpush.msra.mxu0 %v2632
    %2640 = vmatpush.msra.mxu0 %v2631
    %2641 = vmatpush.msra.mxu0 %v2630
    %2642 = vmatpush.msra.mxu0 %v2629
    %2643 = vmatpush.msra.mxu0 %v2628
    %2644 = vmatpush.msra.mxu0 %v2627
    %2645 = vmatpush.msra.mxu0 %v2626
    %2646 = vmatpush.msra.mxu0 %v2625
    %2647 = vmatpush.msra.mxu0 %v2624
    %2648 = vmatpush.msra.mxu0 %v2623
    %2649 = vmatpush.msra.mxu0 %v2622
    %2650 = vmatpush.msra.mxu0 %v2621
    %2651 = vmatpush.msra.mxu0 %v2620
    %2652 = vmatmul.f32.gmra.mxu0 %v2556
    %v2653 = vpop.f32.mrf.mxu0
    %v2654 = vadd.f32 0.0, %v2653
    %2655 = vmatmul.f32.gmra.mxu0 %v2557
    %v2656 = vpop.f32.mrf.mxu0
    %v2657 = vadd.f32 0.0, %v2656
    %2658 = vmatmul.f32.gmra.mxu0 %v2558
    %v2659 = vpop.f32.mrf.mxu0
    %v2660 = vadd.f32 0.0, %v2659
    %2661 = vmatmul.f32.gmra.mxu0 %v2559
    %v2662 = vpop.f32.mrf.mxu0
    %v2663 = vadd.f32 0.0, %v2662
    %2664 = vmatmul.f32.gmra.mxu0 %v2560
    %v2665 = vpop.f32.mrf.mxu0
    %v2666 = vadd.f32 0.0, %v2665
    %2667 = vmatmul.f32.gmra.mxu0 %v2561
    %v2668 = vpop.f32.mrf.mxu0
    %v2669 = vadd.f32 0.0, %v2668
    %2670 = vmatmul.f32.gmra.mxu0 %v2562
    %v2671 = vpop.f32.mrf.mxu0
    %v2672 = vadd.f32 0.0, %v2671
    %2673 = vmatmul.f32.gmra.mxu0 %v2563
    %v2674 = vpop.f32.mrf.mxu0
    %v2675 = vadd.f32 0.0, %v2674
    %2676 = vmatmul.f32.gmra.mxu0 %v2564
    %v2677 = vpop.f32.mrf.mxu0
    %v2678 = vadd.f32 0.0, %v2677
    %2679 = vmatmul.f32.gmra.mxu0 %v2565
    %v2680 = vpop.f32.mrf.mxu0
    %v2681 = vadd.f32 0.0, %v2680
    %2682 = vmatmul.f32.gmra.mxu0 %v2566
    %v2683 = vpop.f32.mrf.mxu0
    %v2684 = vadd.f32 0.0, %v2683
    %2685 = vmatmul.f32.gmra.mxu0 %v2567
    %v2686 = vpop.f32.mrf.mxu0
    %v2687 = vadd.f32 0.0, %v2686
    %2688 = vmatmul.f32.gmra.mxu0 %v2568
    %v2689 = vpop.f32.mrf.mxu0
    %v2690 = vadd.f32 0.0, %v2689
    %2691 = vmatmul.f32.gmra.mxu0 %v2569
    %v2692 = vpop.f32.mrf.mxu0
    %v2693 = vadd.f32 0.0, %v2692
    %2694 = vmatmul.f32.gmra.mxu0 %v2570
    %v2695 = vpop.f32.mrf.mxu0
    %v2696 = vadd.f32 0.0, %v2695
    %2697 = vmatmul.f32.gmra.mxu0 %v2571
    %v2698 = vpop.f32.mrf.mxu0
    %v2699 = vadd.f32 0.0, %v2698
    %2700 = vmatmul.f32.gmra.mxu0 %v2572
    %v2701 = vpop.f32.mrf.mxu0
    %v2702 = vadd.f32 0.0, %v2701
    %2703 = vmatmul.f32.gmra.mxu0 %v2573
    %v2704 = vpop.f32.mrf.mxu0
    %v2705 = vadd.f32 0.0, %v2704
    %2706 = vmatmul.f32.gmra.mxu0 %v2574
    %v2707 = vpop.f32.mrf.mxu0
    %v2708 = vadd.f32 0.0, %v2707
    %2709 = vmatmul.f32.gmra.mxu0 %v2575
    %v2710 = vpop.f32.mrf.mxu0
    %v2711 = vadd.f32 0.0, %v2710
    %2712 = vmatmul.f32.gmra.mxu0 %v2576
    %v2713 = vpop.f32.mrf.mxu0
    %v2714 = vadd.f32 0.0, %v2713
    %2715 = vmatmul.f32.gmra.mxu0 %v2577
    %v2716 = vpop.f32.mrf.mxu0
    %v2717 = vadd.f32 0.0, %v2716
    %2718 = vmatmul.f32.gmra.mxu0 %v2578
    %v2719 = vpop.f32.mrf.mxu0
    %v2720 = vadd.f32 0.0, %v2719
    %2721 = vmatmul.f32.gmra.mxu0 %v2579
    %v2722 = vpop.f32.mrf.mxu0
    %v2723 = vadd.f32 0.0, %v2722
    %2724 = vmatmul.f32.gmra.mxu0 %v2580
    %v2725 = vpop.f32.mrf.mxu0
    %v2726 = vadd.f32 0.0, %v2725
    %2727 = vmatmul.f32.gmra.mxu0 %v2581
    %v2728 = vpop.f32.mrf.mxu0
    %v2729 = vadd.f32 0.0, %v2728
    %2730 = vmatmul.f32.gmra.mxu0 %v2582
    %v2731 = vpop.f32.mrf.mxu0
    %v2732 = vadd.f32 0.0, %v2731
    %2733 = vmatmul.f32.gmra.mxu0 %v2583
    %v2734 = vpop.f32.mrf.mxu0
    %v2735 = vadd.f32 0.0, %v2734
    %2736 = vmatmul.f32.gmra.mxu0 %v2584
    %v2737 = vpop.f32.mrf.mxu0
    %v2738 = vadd.f32 0.0, %v2737
    %2739 = vmatmul.f32.gmra.mxu0 %v2585
    %v2740 = vpop.f32.mrf.mxu0
    %v2741 = vadd.f32 0.0, %v2740
    %2742 = vmatmul.f32.gmra.mxu0 %v2586
    %v2743 = vpop.f32.mrf.mxu0
    %v2744 = vadd.f32 0.0, %v2743
    %2745 = vmatmul.f32.gmra.mxu0 %v2587
    %v2746 = vpop.f32.mrf.mxu0
    %v2747 = vadd.f32 0.0, %v2746
    %2748 = vmatmul.f32.gmra.mxu0 %v2588
    %v2749 = vpop.f32.mrf.mxu0
    %v2750 = vadd.f32 0.0, %v2749
    %2751 = vmatmul.f32.gmra.mxu0 %v2589
    %v2752 = vpop.f32.mrf.mxu0
    %v2753 = vadd.f32 0.0, %v2752
    %2754 = vmatmul.f32.gmra.mxu0 %v2590
    %v2755 = vpop.f32.mrf.mxu0
    %v2756 = vadd.f32 0.0, %v2755
    %2757 = vmatmul.f32.gmra.mxu0 %v2591
    %v2758 = vpop.f32.mrf.mxu0
    %v2759 = vadd.f32 0.0, %v2758
    %2760 = vmatmul.f32.gmra.mxu0 %v2592
    %v2761 = vpop.f32.mrf.mxu0
    %v2762 = vadd.f32 0.0, %v2761
    %2763 = vmatmul.f32.gmra.mxu0 %v2593
    %v2764 = vpop.f32.mrf.mxu0
    %v2765 = vadd.f32 0.0, %v2764
    %2766 = vmatmul.f32.gmra.mxu0 %v2594
    %v2767 = vpop.f32.mrf.mxu0
    %v2768 = vadd.f32 0.0, %v2767
    %2769 = vmatmul.f32.gmra.mxu0 %v2595
    %v2770 = vpop.f32.mrf.mxu0
    %v2771 = vadd.f32 0.0, %v2770
    %2772 = vmatmul.f32.gmra.mxu0 %v2596
    %v2773 = vpop.f32.mrf.mxu0
    %v2774 = vadd.f32 0.0, %v2773
    %2775 = vmatmul.f32.gmra.mxu0 %v2597
    %v2776 = vpop.f32.mrf.mxu0
    %v2777 = vadd.f32 0.0, %v2776
    %2778 = vmatmul.f32.gmra.mxu0 %v2598
    %v2779 = vpop.f32.mrf.mxu0
    %v2780 = vadd.f32 0.0, %v2779
    %2781 = vmatmul.f32.gmra.mxu0 %v2599
    %v2782 = vpop.f32.mrf.mxu0
    %v2783 = vadd.f32 0.0, %v2782
    %2784 = vmatmul.f32.gmra.mxu0 %v2600
    %v2785 = vpop.f32.mrf.mxu0
    %v2786 = vadd.f32 0.0, %v2785
    %2787 = vmatmul.f32.gmra.mxu0 %v2601
    %v2788 = vpop.f32.mrf.mxu0
    %v2789 = vadd.f32 0.0, %v2788
    %2790 = vmatmul.f32.gmra.mxu0 %v2602
    %v2791 = vpop.f32.mrf.mxu0
    %v2792 = vadd.f32 0.0, %v2791
    %2793 = vmatmul.f32.gmra.mxu0 %v2603
    %v2794 = vpop.f32.mrf.mxu0
    %v2795 = vadd.f32 0.0, %v2794
    %2796 = vmatmul.f32.gmra.mxu0 %v2604
    %v2797 = vpop.f32.mrf.mxu0
    %v2798 = vadd.f32 0.0, %v2797
    %2799 = vmatmul.f32.gmra.mxu0 %v2605
    %v2800 = vpop.f32.mrf.mxu0
    %v2801 = vadd.f32 0.0, %v2800
    %2802 = vmatmul.f32.gmra.mxu0 %v2606
    %v2803 = vpop.f32.mrf.mxu0
    %v2804 = vadd.f32 0.0, %v2803
    %2805 = vmatmul.f32.gmra.mxu0 %v2607
    %v2806 = vpop.f32.mrf.mxu0
    %v2807 = vadd.f32 0.0, %v2806
    %2808 = vmatmul.f32.gmra.mxu0 %v2608
    %v2809 = vpop.f32.mrf.mxu0
    %v2810 = vadd.f32 0.0, %v2809
    %2811 = vmatmul.f32.gmra.mxu0 %v2609
    %v2812 = vpop.f32.mrf.mxu0
    %v2813 = vadd.f32 0.0, %v2812
    %2814 = vmatmul.f32.gmra.mxu0 %v2610
    %v2815 = vpop.f32.mrf.mxu0
    %v2816 = vadd.f32 0.0, %v2815
    %2817 = vmatmul.f32.gmra.mxu0 %v2611
    %v2818 = vpop.f32.mrf.mxu0
    %v2819 = vadd.f32 0.0, %v2818
    %2820 = vmatmul.f32.gmra.mxu0 %v2612
    %v2821 = vpop.f32.mrf.mxu0
    %v2822 = vadd.f32 0.0, %v2821
    %2823 = vmatmul.f32.gmra.mxu0 %v2613
    %v2824 = vpop.f32.mrf.mxu0
    %v2825 = vadd.f32 0.0, %v2824
    %2826 = vmatmul.f32.gmra.mxu0 %v2614
    %v2827 = vpop.f32.mrf.mxu0
    %v2828 = vadd.f32 0.0, %v2827
    %2829 = vmatmul.f32.gmra.mxu0 %v2615
    %v2830 = vpop.f32.mrf.mxu0
    %v2831 = vadd.f32 0.0, %v2830
    %2832 = vmatmul.f32.gmra.mxu0 %v2616
    %v2833 = vpop.f32.mrf.mxu0
    %v2834 = vadd.f32 0.0, %v2833
    %2835 = vmatmul.f32.gmra.mxu0 %v2617
    %v2836 = vpop.f32.mrf.mxu0
    %v2837 = vadd.f32 0.0, %v2836
    %2838 = vmatmul.f32.gmra.mxu0 %v2618
    %v2839 = vpop.f32.mrf.mxu0
    %v2840 = vadd.f32 0.0, %v2839
    %2841 = vmatmul.f32.gmra.mxu0 %v2619
    %v2842 = vpop.f32.mrf.mxu0
    %v2843 = vadd.f32 0.0, %v2842
    %2844 = vdwg.mxu0
    %vm2845 = vcmask 261120
    %v2846 = vsel %vm2845, %v2654, -inf
    %v2847 = vsel %vm2845, %v2702, -inf
    %v2848 = vmax.f32 %v2846, %v2847
    %v2849 = vsel %vm2845, %v2750, -inf
    %v2850 = vmax.f32 %v2848, %v2849
    %v2851 = vsel %vm2845, %v2798, -inf
    %v2852 = vmax.f32 %v2850, %v2851
    %v2853 = vsel %vm2845, %v2657, -inf
    %v2854 = vsel %vm2845, %v2705, -inf
    %v2855 = vmax.f32 %v2853, %v2854
    %v2856 = vsel %vm2845, %v2753, -inf
    %v2857 = vmax.f32 %v2855, %v2856
    %v2858 = vsel %vm2845, %v2801, -inf
    %v2859 = vmax.f32 %v2857, %v2858
    %v2860 = vsel %vm2845, %v2660, -inf
    %v2861 = vsel %vm2845, %v2708, -inf
    %v2862 = vmax.f32 %v2860, %v2861
    %v2863 = vsel %vm2845, %v2756, -inf
    %v2864 = vmax.f32 %v2862, %v2863
    %v2865 = vsel %vm2845, %v2804, -inf
    %v2866 = vmax.f32 %v2864, %v2865
    %v2867 = vsel %vm2845, %v2663, -inf
    %v2868 = vsel %vm2845, %v2711, -inf
    %v2869 = vmax.f32 %v2867, %v2868
    %v2870 = vsel %vm2845, %v2759, -inf
    %v2871 = vmax.f32 %v2869, %v2870
    %v2872 = vsel %vm2845, %v2807, -inf
    %v2873 = vmax.f32 %v2871, %v2872
    %v2874 = vsel %vm2845, %v2666, -inf
    %v2875 = vsel %vm2845, %v2714, -inf
    %v2876 = vmax.f32 %v2874, %v2875
    %v2877 = vsel %vm2845, %v2762, -inf
    %v2878 = vmax.f32 %v2876, %v2877
    %v2879 = vsel %vm2845, %v2810, -inf
    %v2880 = vmax.f32 %v2878, %v2879
    %v2881 = vsel %vm2845, %v2669, -inf
    %v2882 = vsel %vm2845, %v2717, -inf
    %v2883 = vmax.f32 %v2881, %v2882
    %v2884 = vsel %vm2845, %v2765, -inf
    %v2885 = vmax.f32 %v2883, %v2884
    %v2886 = vsel %vm2845, %v2813, -inf
    %v2887 = vmax.f32 %v2885, %v2886
    %v2888 = vsel %vm2845, %v2672, -inf
    %v2889 = vsel %vm2845, %v2720, -inf
    %v2890 = vmax.f32 %v2888, %v2889
    %v2891 = vsel %vm2845, %v2768, -inf
    %v2892 = vmax.f32 %v2890, %v2891
    %v2893 = vsel %vm2845, %v2816, -inf
    %v2894 = vmax.f32 %v2892, %v2893
    %v2895 = vsel %vm2845, %v2675, -inf
    %v2896 = vsel %vm2845, %v2723, -inf
    %v2897 = vmax.f32 %v2895, %v2896
    %v2898 = vsel %vm2845, %v2771, -inf
    %v2899 = vmax.f32 %v2897, %v2898
    %v2900 = vsel %vm2845, %v2819, -inf
    %v2901 = vmax.f32 %v2899, %v2900
    %v2902 = vsel %vm2845, %v2678, -inf
    %v2903 = vsel %vm2845, %v2726, -inf
    %v2904 = vmax.f32 %v2902, %v2903
    %v2905 = vsel %vm2845, %v2774, -inf
    %v2906 = vmax.f32 %v2904, %v2905
    %v2907 = vsel %vm2845, %v2822, -inf
    %v2908 = vmax.f32 %v2906, %v2907
    %v2909 = vsel %vm2845, %v2681, -inf
    %v2910 = vsel %vm2845, %v2729, -inf
    %v2911 = vmax.f32 %v2909, %v2910
    %v2912 = vsel %vm2845, %v2777, -inf
    %v2913 = vmax.f32 %v2911, %v2912
    %v2914 = vsel %vm2845, %v2825, -inf
    %v2915 = vmax.f32 %v2913, %v2914
    %v2916 = vsel %vm2845, %v2684, -inf
    %v2917 = vsel %vm2845, %v2732, -inf
    %v2918 = vmax.f32 %v2916, %v2917
    %v2919 = vsel %vm2845, %v2780, -inf
    %v2920 = vmax.f32 %v2918, %v2919
    %v2921 = vsel %vm2845, %v2828, -inf
    %v2922 = vmax.f32 %v2920, %v2921
    %v2923 = vsel %vm2845, %v2687, -inf
    %v2924 = vsel %vm2845, %v2735, -inf
    %v2925 = vmax.f32 %v2923, %v2924
    %v2926 = vsel %vm2845, %v2783, -inf
    %v2927 = vmax.f32 %v2925, %v2926
    %v2928 = vsel %vm2845, %v2831, -inf
    %v2929 = vmax.f32 %v2927, %v2928
    %v2930 = vsel %vm2845, %v2690, -inf
    %v2931 = vsel %vm2845, %v2738, -inf
    %v2932 = vmax.f32 %v2930, %v2931
    %v2933 = vsel %vm2845, %v2786, -inf
    %v2934 = vmax.f32 %v2932, %v2933
    %v2935 = vsel %vm2845, %v2834, -inf
    %v2936 = vmax.f32 %v2934, %v2935
    %v2937 = vsel %vm2845, %v2693, -inf
    %v2938 = vsel %vm2845, %v2741, -inf
    %v2939 = vmax.f32 %v2937, %v2938
    %v2940 = vsel %vm2845, %v2789, -inf
    %v2941 = vmax.f32 %v2939, %v2940
    %v2942 = vsel %vm2845, %v2837, -inf
    %v2943 = vmax.f32 %v2941, %v2942
    %v2944 = vsel %vm2845, %v2696, -inf
    %v2945 = vsel %vm2845, %v2744, -inf
    %v2946 = vmax.f32 %v2944, %v2945
    %v2947 = vsel %vm2845, %v2792, -inf
    %v2948 = vmax.f32 %v2946, %v2947
    %v2949 = vsel %vm2845, %v2840, -inf
    %v2950 = vmax.f32 %v2948, %v2949
    %v2951 = vsel %vm2845, %v2699, -inf
    %v2952 = vsel %vm2845, %v2747, -inf
    %v2953 = vmax.f32 %v2951, %v2952
    %v2954 = vsel %vm2845, %v2795, -inf
    %v2955 = vmax.f32 %v2953, %v2954
    %v2956 = vsel %vm2845, %v2843, -inf
    %v2957 = vmax.f32 %v2955, %v2956
    %v2958 = vsub.f32 %v2654, %v2852
    %v2959 = vsub.f32 %v2657, %v2859
    %v2960 = vsub.f32 %v2660, %v2866
    %v2961 = vsub.f32 %v2663, %v2873
    %v2962 = vsub.f32 %v2666, %v2880
    %v2963 = vsub.f32 %v2669, %v2887
    %v2964 = vsub.f32 %v2672, %v2894
    %v2965 = vsub.f32 %v2675, %v2901
    %v2966 = vsub.f32 %v2678, %v2908
    %v2967 = vsub.f32 %v2681, %v2915
    %v2968 = vsub.f32 %v2684, %v2922
    %v2969 = vsub.f32 %v2687, %v2929
    %v2970 = vsub.f32 %v2690, %v2936
    %v2971 = vsub.f32 %v2693, %v2943
    %v2972 = vsub.f32 %v2696, %v2950
    %v2973 = vsub.f32 %v2699, %v2957
    %v2974 = vsub.f32 %v2702, %v2852
    %v2975 = vsub.f32 %v2705, %v2859
    %v2976 = vsub.f32 %v2708, %v2866
    %v2977 = vsub.f32 %v2711, %v2873
    %v2978 = vsub.f32 %v2714, %v2880
    %v2979 = vsub.f32 %v2717, %v2887
    %v2980 = vsub.f32 %v2720, %v2894
    %v2981 = vsub.f32 %v2723, %v2901
    %v2982 = vsub.f32 %v2726, %v2908
    %v2983 = vsub.f32 %v2729, %v2915
    %v2984 = vsub.f32 %v2732, %v2922
    %v2985 = vsub.f32 %v2735, %v2929
    %v2986 = vsub.f32 %v2738, %v2936
    %v2987 = vsub.f32 %v2741, %v2943
    %v2988 = vsub.f32 %v2744, %v2950
    %v2989 = vsub.f32 %v2747, %v2957
    %v2990 = vsub.f32 %v2750, %v2852
    %v2991 = vsub.f32 %v2753, %v2859
    %v2992 = vsub.f32 %v2756, %v2866
    %v2993 = vsub.f32 %v2759, %v2873
    %v2994 = vsub.f32 %v2762, %v2880
    %v2995 = vsub.f32 %v2765, %v2887
    %v2996 = vsub.f32 %v2768, %v2894
    %v2997 = vsub.f32 %v2771, %v2901
    %v2998 = vsub.f32 %v2774, %v2908
    %v2999 = vsub.f32 %v2777, %v2915
    %v3000 = vsub.f32 %v2780, %v2922
    %v3001 = vsub.f32 %v2783, %v2929
    %v3002 = vsub.f32 %v2786, %v2936
    %v3003 = vsub.f32 %v2789, %v2943
    %v3004 = vsub.f32 %v2792, %v2950
    %v3005 = vsub.f32 %v2795, %v2957
    %v3006 = vsub.f32 %v2798, %v2852
    %v3007 = vsub.f32 %v2801, %v2859
    %v3008 = vsub.f32 %v2804, %v2866
    %v3009 = vsub.f32 %v2807, %v2873
    %v3010 = vsub.f32 %v2810, %v2880
    %v3011 = vsub.f32 %v2813, %v2887
    %v3012 = vsub.f32 %v2816, %v2894
    %v3013 = vsub.f32 %v2819, %v2901
    %v3014 = vsub.f32 %v2822, %v2908
    %v3015 = vsub.f32 %v2825, %v2915
    %v3016 = vsub.f32 %v2828, %v2922
    %v3017 = vsub.f32 %v2831, %v2929
    %v3018 = vsub.f32 %v2834, %v2936
    %v3019 = vsub.f32 %v2837, %v2943
    %v3020 = vsub.f32 %v2840, %v2950
    %v3021 = vsub.f32 %v2843, %v2957
    %v3022 = vmul.f32 %v2958, 1.442695
    %v3023 = vpow.pop %v3022
    %v3024 = vmul.f32 %v2959, 1.442695
    %v3025 = vpow.pop %v3024
    %v3026 = vmul.f32 %v2960, 1.442695
    %v3027 = vpow.pop %v3026
    %v3028 = vmul.f32 %v2961, 1.442695
    %v3029 = vpow.pop %v3028
    %v3030 = vmul.f32 %v2962, 1.442695
    %v3031 = vpow.pop %v3030
    %v3032 = vmul.f32 %v2963, 1.442695
    %v3033 = vpow.pop %v3032
    %v3034 = vmul.f32 %v2964, 1.442695
    %v3035 = vpow.pop %v3034
    %v3036 = vmul.f32 %v2965, 1.442695
    %v3037 = vpow.pop %v3036
    %v3038 = vmul.f32 %v2966, 1.442695
    %v3039 = vpow.pop %v3038
    %v3040 = vmul.f32 %v2967, 1.442695
    %v3041 = vpow.pop %v3040
    %v3042 = vmul.f32 %v2968, 1.442695
    %v3043 = vpow.pop %v3042
    %v3044 = vmul.f32 %v2969, 1.442695
    %v3045 = vpow.pop %v3044
    %v3046 = vmul.f32 %v2970, 1.442695
    %v3047 = vpow.pop %v3046
    %v3048 = vmul.f32 %v2971, 1.442695
    %v3049 = vpow.pop %v3048
    %v3050 = vmul.f32 %v2972, 1.442695
    %v3051 = vpow.pop %v3050
    %v3052 = vmul.f32 %v2973, 1.442695
    %v3053 = vpow.pop %v3052
    %v3054 = vmul.f32 %v2974, 1.442695
    %v3055 = vpow.pop %v3054
    %v3056 = vmul.f32 %v2975, 1.442695
    %v3057 = vpow.pop %v3056
    %v3058 = vmul.f32 %v2976, 1.442695
    %v3059 = vpow.pop %v3058
    %v3060 = vmul.f32 %v2977, 1.442695
    %v3061 = vpow.pop %v3060
    %v3062 = vmul.f32 %v2978, 1.442695
    %v3063 = vpow.pop %v3062
    %v3064 = vmul.f32 %v2979, 1.442695
    %v3065 = vpow.pop %v3064
    %v3066 = vmul.f32 %v2980, 1.442695
    %v3067 = vpow.pop %v3066
    %v3068 = vmul.f32 %v2981, 1.442695
    %v3069 = vpow.pop %v3068
    %v3070 = vmul.f32 %v2982, 1.442695
    %v3071 = vpow.pop %v3070
    %v3072 = vmul.f32 %v2983, 1.442695
    %v3073 = vpow.pop %v3072
    %v3074 = vmul.f32 %v2984, 1.442695
    %v3075 = vpow.pop %v3074
    %v3076 = vmul.f32 %v2985, 1.442695
    %v3077 = vpow.pop %v3076
    %v3078 = vmul.f32 %v2986, 1.442695
    %v3079 = vpow.pop %v3078
    %v3080 = vmul.f32 %v2987, 1.442695
    %v3081 = vpow.pop %v3080
    %v3082 = vmul.f32 %v2988, 1.442695
    %v3083 = vpow.pop %v3082
    %v3084 = vmul.f32 %v2989, 1.442695
    %v3085 = vpow.pop %v3084
    %v3086 = vmul.f32 %v2990, 1.442695
    %v3087 = vpow.pop %v3086
    %v3088 = vmul.f32 %v2991, 1.442695
    %v3089 = vpow.pop %v3088
    %v3090 = vmul.f32 %v2992, 1.442695
    %v3091 = vpow.pop %v3090
    %v3092 = vmul.f32 %v2993, 1.442695
    %v3093 = vpow.pop %v3092
    %v3094 = vmul.f32 %v2994, 1.442695
    %v3095 = vpow.pop %v3094
    %v3096 = vmul.f32 %v2995, 1.442695
    %v3097 = vpow.pop %v3096
    %v3098 = vmul.f32 %v2996, 1.442695
    %v3099 = vpow.pop %v3098
    %v3100 = vmul.f32 %v2997, 1.442695
    %v3101 = vpow.pop %v3100
    %v3102 = vmul.f32 %v2998, 1.442695
    %v3103 = vpow.pop %v3102
    %v3104 = vmul.f32 %v2999, 1.442695
    %v3105 = vpow.pop %v3104
    %v3106 = vmul.f32 %v3000, 1.442695
    %v3107 = vpow.pop %v3106
    %v3108 = vmul.f32 %v3001, 1.442695
    %v3109 = vpow.pop %v3108
    %v3110 = vmul.f32 %v3002, 1.442695
    %v3111 = vpow.pop %v3110
    %v3112 = vmul.f32 %v3003, 1.442695
    %v3113 = vpow.pop %v3112
    %v3114 = vmul.f32 %v3004, 1.442695
    %v3115 = vpow.pop %v3114
    %v3116 = vmul.f32 %v3005, 1.442695
    %v3117 = vpow.pop %v3116
    %v3118 = vmul.f32 %v3006, 1.442695
    %v3119 = vpow.pop %v3118
    %v3120 = vmul.f32 %v3007, 1.442695
    %v3121 = vpow.pop %v3120
    %v3122 = vmul.f32 %v3008, 1.442695
    %v3123 = vpow.pop %v3122
    %v3124 = vmul.f32 %v3009, 1.442695
    %v3125 = vpow.pop %v3124
    %v3126 = vmul.f32 %v3010, 1.442695
    %v3127 = vpow.pop %v3126
    %v3128 = vmul.f32 %v3011, 1.442695
    %v3129 = vpow.pop %v3128
    %v3130 = vmul.f32 %v3012, 1.442695
    %v3131 = vpow.pop %v3130
    %v3132 = vmul.f32 %v3013, 1.442695
    %v3133 = vpow.pop %v3132
    %v3134 = vmul.f32 %v3014, 1.442695
    %v3135 = vpow.pop %v3134
    %v3136 = vmul.f32 %v3015, 1.442695
    %v3137 = vpow.pop %v3136
    %v3138 = vmul.f32 %v3016, 1.442695
    %v3139 = vpow.pop %v3138
    %v3140 = vmul.f32 %v3017, 1.442695
    %v3141 = vpow.pop %v3140
    %v3142 = vmul.f32 %v3018, 1.442695
    %v3143 = vpow.pop %v3142
    %v3144 = vmul.f32 %v3019, 1.442695
    %v3145 = vpow.pop %v3144
    %v3146 = vmul.f32 %v3020, 1.442695
    %v3147 = vpow.pop %v3146
    %v3148 = vmul.f32 %v3021, 1.442695
    %v3149 = vpow.pop %v3148
    %v3150 = vsel %vm2845, %v3023, 0.0
    %v3151 = vsel %vm2845, %v3055, 0.0
    %v3152 = vadd.f32 %v3150, %v3151
    %v3153 = vsel %vm2845, %v3087, 0.0
    %v3154 = vadd.f32 %v3152, %v3153
    %v3155 = vsel %vm2845, %v3119, 0.0
    %v3156 = vadd.f32 %v3154, %v3155
    %v3157 = vsel %vm2845, %v3025, 0.0
    %v3158 = vsel %vm2845, %v3057, 0.0
    %v3159 = vadd.f32 %v3157, %v3158
    %v3160 = vsel %vm2845, %v3089, 0.0
    %v3161 = vadd.f32 %v3159, %v3160
    %v3162 = vsel %vm2845, %v3121, 0.0
    %v3163 = vadd.f32 %v3161, %v3162
    %v3164 = vsel %vm2845, %v3027, 0.0
    %v3165 = vsel %vm2845, %v3059, 0.0
    %v3166 = vadd.f32 %v3164, %v3165
    %v3167 = vsel %vm2845, %v3091, 0.0
    %v3168 = vadd.f32 %v3166, %v3167
    %v3169 = vsel %vm2845, %v3123, 0.0
    %v3170 = vadd.f32 %v3168, %v3169
    %v3171 = vsel %vm2845, %v3029, 0.0
    %v3172 = vsel %vm2845, %v3061, 0.0
    %v3173 = vadd.f32 %v3171, %v3172
    %v3174 = vsel %vm2845, %v3093, 0.0
    %v3175 = vadd.f32 %v3173, %v3174
    %v3176 = vsel %vm2845, %v3125, 0.0
    %v3177 = vadd.f32 %v3175, %v3176
    %v3178 = vsel %vm2845, %v3031, 0.0
    %v3179 = vsel %vm2845, %v3063, 0.0
    %v3180 = vadd.f32 %v3178, %v3179
    %v3181 = vsel %vm2845, %v3095, 0.0
    %v3182 = vadd.f32 %v3180, %v3181
    %v3183 = vsel %vm2845, %v3127, 0.0
    %v3184 = vadd.f32 %v3182, %v3183
    %v3185 = vsel %vm2845, %v3033, 0.0
    %v3186 = vsel %vm2845, %v3065, 0.0
    %v3187 = vadd.f32 %v3185, %v3186
    %v3188 = vsel %vm2845, %v3097, 0.0
    %v3189 = vadd.f32 %v3187, %v3188
    %v3190 = vsel %vm2845, %v3129, 0.0
    %v3191 = vadd.f32 %v3189, %v3190
    %v3192 = vsel %vm2845, %v3035, 0.0
    %v3193 = vsel %vm2845, %v3067, 0.0
    %v3194 = vadd.f32 %v3192, %v3193
    %v3195 = vsel %vm2845, %v3099, 0.0
    %v3196 = vadd.f32 %v3194, %v3195
    %v3197 = vsel %vm2845, %v3131, 0.0
    %v3198 = vadd.f32 %v3196, %v3197
    %v3199 = vsel %vm2845, %v3037, 0.0
    %v3200 = vsel %vm2845, %v3069, 0.0
    %v3201 = vadd.f32 %v3199, %v3200
    %v3202 = vsel %vm2845, %v3101, 0.0
    %v3203 = vadd.f32 %v3201, %v3202
    %v3204 = vsel %vm2845, %v3133, 0.0
    %v3205 = vadd.f32 %v3203, %v3204
    %v3206 = vsel %vm2845, %v3039, 0.0
    %v3207 = vsel %vm2845, %v3071, 0.0
    %v3208 = vadd.f32 %v3206, %v3207
    %v3209 = vsel %vm2845, %v3103, 0.0
    %v3210 = vadd.f32 %v3208, %v3209
    %v3211 = vsel %vm2845, %v3135, 0.0
    %v3212 = vadd.f32 %v3210, %v3211
    %v3213 = vsel %vm2845, %v3041, 0.0
    %v3214 = vsel %vm2845, %v3073, 0.0
    %v3215 = vadd.f32 %v3213, %v3214
    %v3216 = vsel %vm2845, %v3105, 0.0
    %v3217 = vadd.f32 %v3215, %v3216
    %v3218 = vsel %vm2845, %v3137, 0.0
    %v3219 = vadd.f32 %v3217, %v3218
    %v3220 = vsel %vm2845, %v3043, 0.0
    %v3221 = vsel %vm2845, %v3075, 0.0
    %v3222 = vadd.f32 %v3220, %v3221
    %v3223 = vsel %vm2845, %v3107, 0.0
    %v3224 = vadd.f32 %v3222, %v3223
    %v3225 = vsel %vm2845, %v3139, 0.0
    %v3226 = vadd.f32 %v3224, %v3225
    %v3227 = vsel %vm2845, %v3045, 0.0
    %v3228 = vsel %vm2845, %v3077, 0.0
    %v3229 = vadd.f32 %v3227, %v3228
    %v3230 = vsel %vm2845, %v3109, 0.0
    %v3231 = vadd.f32 %v3229, %v3230
    %v3232 = vsel %vm2845, %v3141, 0.0
    %v3233 = vadd.f32 %v3231, %v3232
    %v3234 = vsel %vm2845, %v3047, 0.0
    %v3235 = vsel %vm2845, %v3079, 0.0
    %v3236 = vadd.f32 %v3234, %v3235
    %v3237 = vsel %vm2845, %v3111, 0.0
    %v3238 = vadd.f32 %v3236, %v3237
    %v3239 = vsel %vm2845, %v3143, 0.0
    %v3240 = vadd.f32 %v3238, %v3239
    %v3241 = vsel %vm2845, %v3049, 0.0
    %v3242 = vsel %vm2845, %v3081, 0.0
    %v3243 = vadd.f32 %v3241, %v3242
    %v3244 = vsel %vm2845, %v3113, 0.0
    %v3245 = vadd.f32 %v3243, %v3244
    %v3246 = vsel %vm2845, %v3145, 0.0
    %v3247 = vadd.f32 %v3245, %v3246
    %v3248 = vsel %vm2845, %v3051, 0.0
    %v3249 = vsel %vm2845, %v3083, 0.0
    %v3250 = vadd.f32 %v3248, %v3249
    %v3251 = vsel %vm2845, %v3115, 0.0
    %v3252 = vadd.f32 %v3250, %v3251
    %v3253 = vsel %vm2845, %v3147, 0.0
    %v3254 = vadd.f32 %v3252, %v3253
    %v3255 = vsel %vm2845, %v3053, 0.0
    %v3256 = vsel %vm2845, %v3085, 0.0
    %v3257 = vadd.f32 %v3255, %v3256
    %v3258 = vsel %vm2845, %v3117, 0.0
    %v3259 = vadd.f32 %v3257, %v3258
    %v3260 = vsel %vm2845, %v3149, 0.0
    %v3261 = vadd.f32 %v3259, %v3260
    %v3262 = vrcp.pop %v3156
    %v3263 = vrcp.pop %v3163
    %v3264 = vrcp.pop %v3170
    %v3265 = vrcp.pop %v3177
    %v3266 = vrcp.pop %v3184
    %v3267 = vrcp.pop %v3191
    %v3268 = vrcp.pop %v3198
    %v3269 = vrcp.pop %v3205
    %v3270 = vrcp.pop %v3212
    %v3271 = vrcp.pop %v3219
    %v3272 = vrcp.pop %v3226
    %v3273 = vrcp.pop %v3233
    %v3274 = vrcp.pop %v3240
    %v3275 = vrcp.pop %v3247
    %v3276 = vrcp.pop %v3254
    %v3277 = vrcp.pop %v3261
    %v3278 = vmul.f32 %v3023, %v3262
    %v3279 = vmul.f32 %v3025, %v3263
    %v3280 = vmul.f32 %v3027, %v3264
    %v3281 = vmul.f32 %v3029, %v3265
    %v3282 = vmul.f32 %v3031, %v3266
    %v3283 = vmul.f32 %v3033, %v3267
    %v3284 = vmul.f32 %v3035, %v3268
    %v3285 = vmul.f32 %v3037, %v3269
    %v3286 = vmul.f32 %v3039, %v3270
    %v3287 = vmul.f32 %v3041, %v3271
    %v3288 = vmul.f32 %v3043, %v3272
    %v3289 = vmul.f32 %v3045, %v3273
    %v3290 = vmul.f32 %v3047, %v3274
    %v3291 = vmul.f32 %v3049, %v3275
    %v3292 = vmul.f32 %v3051, %v3276
    %v3293 = vmul.f32 %v3053, %v3277
    %v3294 = vmul.f32 %v3055, %v3262
    %v3295 = vmul.f32 %v3057, %v3263
    %v3296 = vmul.f32 %v3059, %v3264
    %v3297 = vmul.f32 %v3061, %v3265
    %v3298 = vmul.f32 %v3063, %v3266
    %v3299 = vmul.f32 %v3065, %v3267
    %v3300 = vmul.f32 %v3067, %v3268
    %v3301 = vmul.f32 %v3069, %v3269
    %v3302 = vmul.f32 %v3071, %v3270
    %v3303 = vmul.f32 %v3073, %v3271
    %v3304 = vmul.f32 %v3075, %v3272
    %v3305 = vmul.f32 %v3077, %v3273
    %v3306 = vmul.f32 %v3079, %v3274
    %v3307 = vmul.f32 %v3081, %v3275
    %v3308 = vmul.f32 %v3083, %v3276
    %v3309 = vmul.f32 %v3085, %v3277
    %v3310 = vmul.f32 %v3087, %v3262
    %v3311 = vmul.f32 %v3089, %v3263
    %v3312 = vmul.f32 %v3091, %v3264
    %v3313 = vmul.f32 %v3093, %v3265
    %v3314 = vmul.f32 %v3095, %v3266
    %v3315 = vmul.f32 %v3097, %v3267
    %v3316 = vmul.f32 %v3099, %v3268
    %v3317 = vmul.f32 %v3101, %v3269
    %v3318 = vmul.f32 %v3103, %v3270
    %v3319 = vmul.f32 %v3105, %v3271
    %v3320 = vmul.f32 %v3107, %v3272
    %v3321 = vmul.f32 %v3109, %v3273
    %v3322 = vmul.f32 %v3111, %v3274
    %v3323 = vmul.f32 %v3113, %v3275
    %v3324 = vmul.f32 %v3115, %v3276
    %v3325 = vmul.f32 %v3117, %v3277
    %v3326 = vmul.f32 %v3119, %v3262
    %v3327 = vmul.f32 %v3121, %v3263
    %v3328 = vmul.f32 %v3123, %v3264
    %v3329 = vmul.f32 %v3125, %v3265
    %v3330 = vmul.f32 %v3127, %v3266
    %v3331 = vmul.f32 %v3129, %v3267
    %v3332 = vmul.f32 %v3131, %v3268
    %v3333 = vmul.f32 %v3133, %v3269
    %v3334 = vmul.f32 %v3135, %v3270
    %v3335 = vmul.f32 %v3137, %v3271
    %v3336 = vmul.f32 %v3139, %v3272
    %v3337 = vmul.f32 %v3141, %v3273
    %v3338 = vmul.f32 %v3143, %v3274
    %v3339 = vmul.f32 %v3145, %v3275
    %v3340 = vmul.f32 %v3147, %v3276
    %v3341 = vmul.f32 %v3149, %v3277
    %v3342 = vld [vmem:[%s12] sm:$0xff]
    %v3343 = vld [vmem:[%s12 + $0x8] sm:$0xff]
    %v3344 = vld [vmem:[%s12 + $0x10] sm:$0xff]
    %v3345 = vld [vmem:[%s12 + $0x18] sm:$0xff]
    %v3347 = vsel %vm2845, %v3278, 0
    %v3350 = vsel %vm2845, %v3279, 0
    %v3353 = vsel %vm2845, %v3280, 0
    %v3356 = vsel %vm2845, %v3281, 0
    %v3359 = vsel %vm2845, %v3282, 0
    %v3362 = vsel %vm2845, %v3283, 0
    %v3365 = vsel %vm2845, %v3284, 0
    %v3368 = vsel %vm2845, %v3285, 0
    %v3371 = vsel %vm2845, %v3286, 0
    %v3374 = vsel %vm2845, %v3287, 0
    %v3377 = vsel %vm2845, %v3288, 0
    %v3380 = vsel %vm2845, %v3289, 0
    %v3383 = vsel %vm2845, %v3290, 0
    %v3386 = vsel %vm2845, %v3291, 0
    %v3389 = vsel %vm2845, %v3292, 0
    %v3392 = vsel %vm2845, %v3293, 0
    %v3395 = vsel %vm2845, %v3294, 0
    %v3398 = vsel %vm2845, %v3295, 0
    %v3401 = vsel %vm2845, %v3296, 0
    %v3404 = vsel %vm2845, %v3297, 0
    %v3407 = vsel %vm2845, %v3298, 0
    %v3410 = vsel %vm2845, %v3299, 0
    %v3413 = vsel %vm2845, %v3300, 0
    %v3416 = vsel %vm2845, %v3301, 0
    %v3419 = vsel %vm2845, %v3302, 0
    %v3422 = vsel %vm2845, %v3303, 0
    %v3425 = vsel %vm2845, %v3304, 0
    %v3428 = vsel %vm2845, %v3305, 0
    %v3431 = vsel %vm2845, %v3306, 0
    %v3434 = vsel %vm2845, %v3307, 0
    %v3437 = vsel %vm2845, %v3308, 0
    %v3440 = vsel %vm2845, %v3309, 0
    %v3443 = vsel %vm2845, %v3310, 0
    %v3446 = vsel %vm2845, %v3311, 0
    %v3449 = vsel %vm2845, %v3312, 0
    %v3452 = vsel %vm2845, %v3313, 0
    %v3455 = vsel %vm2845, %v3314, 0
    %v3458 = vsel %vm2845, %v3315, 0
    %v3461 = vsel %vm2845, %v3316, 0
    %v3464 = vsel %vm2845, %v3317, 0
    %v3467 = vsel %vm2845, %v3318, 0
    %v3470 = vsel %vm2845, %v3319, 0
    %v3473 = vsel %vm2845, %v3320, 0
    %v3476 = vsel %vm2845, %v3321, 0
    %v3479 = vsel %vm2845, %v3322, 0
    %v3482 = vsel %vm2845, %v3323, 0
    %v3485 = vsel %vm2845, %v3324, 0
    %v3488 = vsel %vm2845, %v3325, 0
    %v3491 = vsel %vm2845, %v3326, 0
    %v3494 = vsel %vm2845, %v3327, 0
    %v3497 = vsel %vm2845, %v3328, 0
    %v3500 = vsel %vm2845, %v3329, 0
    %v3503 = vsel %vm2845, %v3330, 0
    %v3506 = vsel %vm2845, %v3331, 0
    %v3509 = vsel %vm2845, %v3332, 0
    %v3512 = vsel %vm2845, %v3333, 0
    %v3515 = vsel %vm2845, %v3334, 0
    %v3518 = vsel %vm2845, %v3335, 0
    %v3521 = vsel %vm2845, %v3336, 0
    %v3524 = vsel %vm2845, %v3337, 0
    %v3527 = vsel %vm2845, %v3338, 0
    %v3530 = vsel %vm2845, %v3339, 0
    %v3533 = vsel %vm2845, %v3340, 0
    %v3536 = vsel %vm2845, %v3341, 0
    %3538 = vmatpush.msra.mxu0 0.0
    %3539 = vmatpush.msra.mxu0 0.0
    %3540 = vmatpush.msra.mxu0 0.0
    %3541 = vmatpush.msra.mxu0 0.0
    %3542 = vmatpush.msra.mxu0 0.0
    %3543 = vmatpush.msra.mxu0 0.0
    %3544 = vmatpush.msra.mxu0 0.0
    %3545 = vmatpush.msra.mxu0 0.0
    %3546 = vmatpush.msra.mxu0 0.0
    %3547 = vmatpush.msra.mxu0 0.0
    %3548 = vmatpush.msra.mxu0 0.0
    %3549 = vmatpush.msra.mxu0 0.0
    %3550 = vmatpush.msra.mxu0 %v3345
    %3551 = vmatpush.msra.mxu0 %v3344
    %3552 = vmatpush.msra.mxu0 %v3343
    %3553 = vmatpush.msra.mxu0 %v3342
    %3554 = vmatmul.f32.gmra.mxu0 %v3347
    %v3555 = vpop.f32.mrf.mxu0
    %v3556 = vadd.f32 0.0, %v3555
    %3557 = vmatmul.f32.gmra.mxu0 %v3350
    %v3558 = vpop.f32.mrf.mxu0
    %v3559 = vadd.f32 0.0, %v3558
    %3560 = vmatmul.f32.gmra.mxu0 %v3353
    %v3561 = vpop.f32.mrf.mxu0
    %v3562 = vadd.f32 0.0, %v3561
    %3563 = vmatmul.f32.gmra.mxu0 %v3356
    %v3564 = vpop.f32.mrf.mxu0
    %v3565 = vadd.f32 0.0, %v3564
    %3566 = vmatmul.f32.gmra.mxu0 %v3359
    %v3567 = vpop.f32.mrf.mxu0
    %v3568 = vadd.f32 0.0, %v3567
    %3569 = vmatmul.f32.gmra.mxu0 %v3362
    %v3570 = vpop.f32.mrf.mxu0
    %v3571 = vadd.f32 0.0, %v3570
    %3572 = vmatmul.f32.gmra.mxu0 %v3365
    %v3573 = vpop.f32.mrf.mxu0
    %v3574 = vadd.f32 0.0, %v3573
    %3575 = vmatmul.f32.gmra.mxu0 %v3368
    %v3576 = vpop.f32.mrf.mxu0
    %v3577 = vadd.f32 0.0, %v3576
    %3578 = vmatmul.f32.gmra.mxu0 %v3371
    %v3579 = vpop.f32.mrf.mxu0
    %v3580 = vadd.f32 0.0, %v3579
    %3581 = vmatmul.f32.gmra.mxu0 %v3374
    %v3582 = vpop.f32.mrf.mxu0
    %v3583 = vadd.f32 0.0, %v3582
    %3584 = vmatmul.f32.gmra.mxu0 %v3377
    %v3585 = vpop.f32.mrf.mxu0
    %v3586 = vadd.f32 0.0, %v3585
    %3587 = vmatmul.f32.gmra.mxu0 %v3380
    %v3588 = vpop.f32.mrf.mxu0
    %v3589 = vadd.f32 0.0, %v3588
    %3590 = vmatmul.f32.gmra.mxu0 %v3383
    %v3591 = vpop.f32.mrf.mxu0
    %v3592 = vadd.f32 0.0, %v3591
    %3593 = vmatmul.f32.gmra.mxu0 %v3386
    %v3594 = vpop.f32.mrf.mxu0
    %v3595 = vadd.f32 0.0, %v3594
    %3596 = vmatmul.f32.gmra.mxu0 %v3389
    %v3597 = vpop.f32.mrf.mxu0
    %v3598 = vadd.f32 0.0, %v3597
    %3599 = vmatmul.f32.gmra.mxu0 %v3392
    %v3600 = vpop.f32.mrf.mxu0
    %v3601 = vadd.f32 0.0, %v3600
    %3602 = vmatmul.f32.gmra.mxu0 %v3395
    %v3603 = vpop.f32.mrf.mxu0
    %v3604 = vadd.f32 0.0, %v3603
    %3605 = vmatmul.f32.gmra.mxu0 %v3398
    %v3606 = vpop.f32.mrf.mxu0
    %v3607 = vadd.f32 0.0, %v3606
    %3608 = vmatmul.f32.gmra.mxu0 %v3401
    %v3609 = vpop.f32.mrf.mxu0
    %v3610 = vadd.f32 0.0, %v3609
    %3611 = vmatmul.f32.gmra.mxu0 %v3404
    %v3612 = vpop.f32.mrf.mxu0
    %v3613 = vadd.f32 0.0, %v3612
    %3614 = vmatmul.f32.gmra.mxu0 %v3407
    %v3615 = vpop.f32.mrf.mxu0
    %v3616 = vadd.f32 0.0, %v3615
    %3617 = vmatmul.f32.gmra.mxu0 %v3410
    %v3618 = vpop.f32.mrf.mxu0
    %v3619 = vadd.f32 0.0, %v3618
    %3620 = vmatmul.f32.gmra.mxu0 %v3413
    %v3621 = vpop.f32.mrf.mxu0
    %v3622 = vadd.f32 0.0, %v3621
    %3623 = vmatmul.f32.gmra.mxu0 %v3416
    %v3624 = vpop.f32.mrf.mxu0
    %v3625 = vadd.f32 0.0, %v3624
    %3626 = vmatmul.f32.gmra.mxu0 %v3419
    %v3627 = vpop.f32.mrf.mxu0
    %v3628 = vadd.f32 0.0, %v3627
    %3629 = vmatmul.f32.gmra.mxu0 %v3422
    %v3630 = vpop.f32.mrf.mxu0
    %v3631 = vadd.f32 0.0, %v3630
    %3632 = vmatmul.f32.gmra.mxu0 %v3425
    %v3633 = vpop.f32.mrf.mxu0
    %v3634 = vadd.f32 0.0, %v3633
    %3635 = vmatmul.f32.gmra.mxu0 %v3428
    %v3636 = vpop.f32.mrf.mxu0
    %v3637 = vadd.f32 0.0, %v3636
    %3638 = vmatmul.f32.gmra.mxu0 %v3431
    %v3639 = vpop.f32.mrf.mxu0
    %v3640 = vadd.f32 0.0, %v3639
    %3641 = vmatmul.f32.gmra.mxu0 %v3434
    %v3642 = vpop.f32.mrf.mxu0
    %v3643 = vadd.f32 0.0, %v3642
    %3644 = vmatmul.f32.gmra.mxu0 %v3437
    %v3645 = vpop.f32.mrf.mxu0
    %v3646 = vadd.f32 0.0, %v3645
    %3647 = vmatmul.f32.gmra.mxu0 %v3440
    %v3648 = vpop.f32.mrf.mxu0
    %v3649 = vadd.f32 0.0, %v3648
    %3650 = vmatmul.f32.gmra.mxu0 %v3443
    %v3651 = vpop.f32.mrf.mxu0
    %v3652 = vadd.f32 0.0, %v3651
    %3653 = vmatmul.f32.gmra.mxu0 %v3446
    %v3654 = vpop.f32.mrf.mxu0
    %v3655 = vadd.f32 0.0, %v3654
    %3656 = vmatmul.f32.gmra.mxu0 %v3449
    %v3657 = vpop.f32.mrf.mxu0
    %v3658 = vadd.f32 0.0, %v3657
    %3659 = vmatmul.f32.gmra.mxu0 %v3452
    %v3660 = vpop.f32.mrf.mxu0
    %v3661 = vadd.f32 0.0, %v3660
    %3662 = vmatmul.f32.gmra.mxu0 %v3455
    %v3663 = vpop.f32.mrf.mxu0
    %v3664 = vadd.f32 0.0, %v3663
    %3665 = vmatmul.f32.gmra.mxu0 %v3458
    %v3666 = vpop.f32.mrf.mxu0
    %v3667 = vadd.f32 0.0, %v3666
    %3668 = vmatmul.f32.gmra.mxu0 %v3461
    %v3669 = vpop.f32.mrf.mxu0
    %v3670 = vadd.f32 0.0, %v3669
    %3671 = vmatmul.f32.gmra.mxu0 %v3464
    %v3672 = vpop.f32.mrf.mxu0
    %v3673 = vadd.f32 0.0, %v3672
    %3674 = vmatmul.f32.gmra.mxu0 %v3467
    %v3675 = vpop.f32.mrf.mxu0
    %v3676 = vadd.f32 0.0, %v3675
    %3677 = vmatmul.f32.gmra.mxu0 %v3470
    %v3678 = vpop.f32.mrf.mxu0
    %v3679 = vadd.f32 0.0, %v3678
    %3680 = vmatmul.f32.gmra.mxu0 %v3473
    %v3681 = vpop.f32.mrf.mxu0
    %v3682 = vadd.f32 0.0, %v3681
    %3683 = vmatmul.f32.gmra.mxu0 %v3476
    %v3684 = vpop.f32.mrf.mxu0
    %v3685 = vadd.f32 0.0, %v3684
    %3686 = vmatmul.f32.gmra.mxu0 %v3479
    %v3687 = vpop.f32.mrf.mxu0
    %v3688 = vadd.f32 0.0, %v3687
    %3689 = vmatmul.f32.gmra.mxu0 %v3482
    %v3690 = vpop.f32.mrf.mxu0
    %v3691 = vadd.f32 0.0, %v3690
    %3692 = vmatmul.f32.gmra.mxu0 %v3485
    %v3693 = vpop.f32.mrf.mxu0
    %v3694 = vadd.f32 0.0, %v3693
    %3695 = vmatmul.f32.gmra.mxu0 %v3488
    %v3696 = vpop.f32.mrf.mxu0
    %v3697 = vadd.f32 0.0, %v3696
    %3698 = vmatmul.f32.gmra.mxu0 %v3491
    %v3699 = vpop.f32.mrf.mxu0
    %v3700 = vadd.f32 0.0, %v3699
    %3701 = vmatmul.f32.gmra.mxu0 %v3494
    %v3702 = vpop.f32.mrf.mxu0
    %v3703 = vadd.f32 0.0, %v3702
    %3704 = vmatmul.f32.gmra.mxu0 %v3497
    %v3705 = vpop.f32.mrf.mxu0
    %v3706 = vadd.f32 0.0, %v3705
    %3707 = vmatmul.f32.gmra.mxu0 %v3500
    %v3708 = vpop.f32.mrf.mxu0
    %v3709 = vadd.f32 0.0, %v3708
    %3710 = vmatmul.f32.gmra.mxu0 %v3503
    %v3711 = vpop.f32.mrf.mxu0
    %v3712 = vadd.f32 0.0, %v3711
    %3713 = vmatmul.f32.gmra.mxu0 %v3506
    %v3714 = vpop.f32.mrf.mxu0
    %v3715 = vadd.f32 0.0, %v3714
    %3716 = vmatmul.f32.gmra.mxu0 %v3509
    %v3717 = vpop.f32.mrf.mxu0
    %v3718 = vadd.f32 0.0, %v3717
    %3719 = vmatmul.f32.gmra.mxu0 %v3512
    %v3720 = vpop.f32.mrf.mxu0
    %v3721 = vadd.f32 0.0, %v3720
    %3722 = vmatmul.f32.gmra.mxu0 %v3515
    %v3723 = vpop.f32.mrf.mxu0
    %v3724 = vadd.f32 0.0, %v3723
    %3725 = vmatmul.f32.gmra.mxu0 %v3518
    %v3726 = vpop.f32.mrf.mxu0
    %v3727 = vadd.f32 0.0, %v3726
    %3728 = vmatmul.f32.gmra.mxu0 %v3521
    %v3729 = vpop.f32.mrf.mxu0
    %v3730 = vadd.f32 0.0, %v3729
    %3731 = vmatmul.f32.gmra.mxu0 %v3524
    %v3732 = vpop.f32.mrf.mxu0
    %v3733 = vadd.f32 0.0, %v3732
    %3734 = vmatmul.f32.gmra.mxu0 %v3527
    %v3735 = vpop.f32.mrf.mxu0
    %v3736 = vadd.f32 0.0, %v3735
    %3737 = vmatmul.f32.gmra.mxu0 %v3530
    %v3738 = vpop.f32.mrf.mxu0
    %v3739 = vadd.f32 0.0, %v3738
    %3740 = vmatmul.f32.gmra.mxu0 %v3533
    %v3741 = vpop.f32.mrf.mxu0
    %v3742 = vadd.f32 0.0, %v3741
    %3743 = vmatmul.f32.gmra.mxu0 %v3536
    %v3744 = vpop.f32.mrf.mxu0
    %v3745 = vadd.f32 0.0, %v3744
    %3746 = vdwg.mxu0
    %v3747 = vmul.f32 %v3556, %v2552
    %v3748 = vmul.f32 %v3559, %v2552
    %v3749 = vmul.f32 %v3562, %v2552
    %v3750 = vmul.f32 %v3565, %v2552
    %v3751 = vmul.f32 %v3568, %v2552
    %v3752 = vmul.f32 %v3571, %v2552
    %v3753 = vmul.f32 %v3574, %v2552
    %v3754 = vmul.f32 %v3577, %v2552
    %v3755 = vmul.f32 %v3580, %v2552
    %v3756 = vmul.f32 %v3583, %v2552
    %v3757 = vmul.f32 %v3586, %v2552
    %v3758 = vmul.f32 %v3589, %v2552
    %v3759 = vmul.f32 %v3592, %v2552
    %v3760 = vmul.f32 %v3595, %v2552
    %v3761 = vmul.f32 %v3598, %v2552
    %v3762 = vmul.f32 %v3601, %v2552
    %v3763 = vmul.f32 %v3604, %v2553
    %v3764 = vmul.f32 %v3607, %v2553
    %v3765 = vmul.f32 %v3610, %v2553
    %v3766 = vmul.f32 %v3613, %v2553
    %v3767 = vmul.f32 %v3616, %v2553
    %v3768 = vmul.f32 %v3619, %v2553
    %v3769 = vmul.f32 %v3622, %v2553
    %v3770 = vmul.f32 %v3625, %v2553
    %v3771 = vmul.f32 %v3628, %v2553
    %v3772 = vmul.f32 %v3631, %v2553
    %v3773 = vmul.f32 %v3634, %v2553
    %v3774 = vmul.f32 %v3637, %v2553
    %v3775 = vmul.f32 %v3640, %v2553
    %v3776 = vmul.f32 %v3643, %v2553
    %v3777 = vmul.f32 %v3646, %v2553
    %v3778 = vmul.f32 %v3649, %v2553
    %v3779 = vmul.f32 %v3652, %v2554
    %v3780 = vmul.f32 %v3655, %v2554
    %v3781 = vmul.f32 %v3658, %v2554
    %v3782 = vmul.f32 %v3661, %v2554
    %v3783 = vmul.f32 %v3664, %v2554
    %v3784 = vmul.f32 %v3667, %v2554
    %v3785 = vmul.f32 %v3670, %v2554
    %v3786 = vmul.f32 %v3673, %v2554
    %v3787 = vmul.f32 %v3676, %v2554
    %v3788 = vmul.f32 %v3679, %v2554
    %v3789 = vmul.f32 %v3682, %v2554
    %v3790 = vmul.f32 %v3685, %v2554
    %v3791 = vmul.f32 %v3688, %v2554
    %v3792 = vmul.f32 %v3691, %v2554
    %v3793 = vmul.f32 %v3694, %v2554
    %v3794 = vmul.f32 %v3697, %v2554
    %v3795 = vmul.f32 %v3700, %v2555
    %v3796 = vmul.f32 %v3703, %v2555
    %v3797 = vmul.f32 %v3706, %v2555
    %v3798 = vmul.f32 %v3709, %v2555
    %v3799 = vmul.f32 %v3712, %v2555
    %v3800 = vmul.f32 %v3715, %v2555
    %v3801 = vmul.f32 %v3718, %v2555
    %v3802 = vmul.f32 %v3721, %v2555
    %v3803 = vmul.f32 %v3724, %v2555
    %v3804 = vmul.f32 %v3727, %v2555
    %v3805 = vmul.f32 %v3730, %v2555
    %v3806 = vmul.f32 %v3733, %v2555
    %v3807 = vmul.f32 %v3736, %v2555
    %v3808 = vmul.f32 %v3739, %v2555
    %v3809 = vmul.f32 %v3742, %v2555
    %v3810 = vmul.f32 %v3745, %v2555
    %v3811 = vadd.f32 %v3747, %v3763
    %v3812 = vadd.f32 %v3811, %v3779
    %v3813 = vadd.f32 %v3812, %v3795
    %v3814 = vadd.f32 %v3748, %v3764
    %v3815 = vadd.f32 %v3814, %v3780
    %v3816 = vadd.f32 %v3815, %v3796
    %v3817 = vadd.f32 %v3749, %v3765
    %v3818 = vadd.f32 %v3817, %v3781
    %v3819 = vadd.f32 %v3818, %v3797
    %v3820 = vadd.f32 %v3750, %v3766
    %v3821 = vadd.f32 %v3820, %v3782
    %v3822 = vadd.f32 %v3821, %v3798
    %v3823 = vadd.f32 %v3751, %v3767
    %v3824 = vadd.f32 %v3823, %v3783
    %v3825 = vadd.f32 %v3824, %v3799
    %v3826 = vadd.f32 %v3752, %v3768
    %v3827 = vadd.f32 %v3826, %v3784
    %v3828 = vadd.f32 %v3827, %v3800
    %v3829 = vadd.f32 %v3753, %v3769
    %v3830 = vadd.f32 %v3829, %v3785
    %v3831 = vadd.f32 %v3830, %v3801
    %v3832 = vadd.f32 %v3754, %v3770
    %v3833 = vadd.f32 %v3832, %v3786
    %v3834 = vadd.f32 %v3833, %v3802
    %v3835 = vadd.f32 %v3755, %v3771
    %v3836 = vadd.f32 %v3835, %v3787
    %v3837 = vadd.f32 %v3836, %v3803
    %v3838 = vadd.f32 %v3756, %v3772
    %v3839 = vadd.f32 %v3838, %v3788
    %v3840 = vadd.f32 %v3839, %v3804
    %v3841 = vadd.f32 %v3757, %v3773
    %v3842 = vadd.f32 %v3841, %v3789
    %v3843 = vadd.f32 %v3842, %v3805
    %v3844 = vadd.f32 %v3758, %v3774
    %v3845 = vadd.f32 %v3844, %v3790
    %v3846 = vadd.f32 %v3845, %v3806
    %v3847 = vadd.f32 %v3759, %v3775
    %v3848 = vadd.f32 %v3847, %v3791
    %v3849 = vadd.f32 %v3848, %v3807
    %v3850 = vadd.f32 %v3760, %v3776
    %v3851 = vadd.f32 %v3850, %v3792
    %v3852 = vadd.f32 %v3851, %v3808
    %v3853 = vadd.f32 %v3761, %v3777
    %v3854 = vadd.f32 %v3853, %v3793
    %v3855 = vadd.f32 %v3854, %v3809
    %v3856 = vadd.f32 %v3762, %v3778
    %v3857 = vadd.f32 %v3856, %v3794
    %v3858 = vadd.f32 %v3857, %v3810
    %v3859 = vadd.f32 %v166, %v3813
    %v3860 = vadd.f32 %v167, %v3816
    %v3861 = vadd.f32 %v168, %v3819
    %v3862 = vadd.f32 %v169, %v3822
    %v3863 = vadd.f32 %v170, %v3825
    %v3864 = vadd.f32 %v171, %v3828
    %v3865 = vadd.f32 %v172, %v3831
    %v3866 = vadd.f32 %v173, %v3834
    %v3867 = vadd.f32 %v174, %v3837
    %v3868 = vadd.f32 %v175, %v3840
    %v3869 = vadd.f32 %v176, %v3843
    %v3870 = vadd.f32 %v177, %v3846
    %v3871 = vadd.f32 %v178, %v3849
    %v3872 = vadd.f32 %v179, %v3852
    %v3873 = vadd.f32 %v180, %v3855
    %v3874 = vadd.f32 %v181, %v3858
    %3875 = vst [vmem:[#allocation16] sm:$0xff] %v3859
    %3876 = vst [vmem:[#allocation16 + $0x8] sm:$0xff] %v3860
    %3877 = vst [vmem:[#allocation16 + $0x10] sm:$0xff] %v3861
    %3878 = vst [vmem:[#allocation16 + $0x18] sm:$0xff] %v3862
    %3879 = vst [vmem:[#allocation16 + $0x20] sm:$0xff] %v3863
    %3880 = vst [vmem:[#allocation16 + $0x28] sm:$0xff] %v3864
    %3881 = vst [vmem:[#allocation16 + $0x30] sm:$0xff] %v3865
    %3882 = vst [vmem:[#allocation16 + $0x38] sm:$0xff] %v3866
    %3883 = vst [vmem:[#allocation16 + $0x40] sm:$0xff] %v3867
    %3884 = vst [vmem:[#allocation16 + $0x48] sm:$0xff] %v3868
    %3885 = vst [vmem:[#allocation16 + $0x50] sm:$0xff] %v3869
    %3886 = vst [vmem:[#allocation16 + $0x58] sm:$0xff] %v3870
    %3887 = vst [vmem:[#allocation16 + $0x60] sm:$0xff] %v3871
    %3888 = vst [vmem:[#allocation16 + $0x68] sm:$0xff] %v3872
    %3889 = vst [vmem:[#allocation16 + $0x70] sm:$0xff] %v3873
    %3890 = vst [vmem:[#allocation16 + $0x78] sm:$0xff] %v3874
    // Predicated region
    $region86: #{tpu_custom_call.1} parent=1 // pred_check
      _
    $region87: #{tpu_custom_call.1} parent=1 // pred_check_branch
      %3892 = sbr.rel (0) target = $region89
    $region88: #{tpu_custom_call.1} parent=1 // pred_region
      %3894 = vsyncadd [#allocation4], 0
      %s3895 = sshll.u32 [#allocation16], 4
      %s3896 = int_to_ptr.vmem [resolvable:$true] %s3895
      %s3897 = sshll.u32 %s13, 4
      %s3898 = int_to_ptr.hbm [resolvable:$true] %s3897
      %3903 = dma.vmem_to_hbm [thread:$0]  %s3896, 2048, %s3898, [#allocation4], 128, 128, 8
    $region89: #{tpu_custom_call.1} parent=1 // pred_fallthru
      _
    // Predicated region
    $region90: #{tpu_custom_call.1} parent=1 // pred_check
      _
    $region91: #{tpu_custom_call.1} parent=1 // pred_check_branch
      %3905 = sbr.rel (0) target = $region93
    $region92: #{tpu_custom_call.1} parent=1 // pred_region
      %3907 = dma.done [#allocation4], 2048
    $region93: #{tpu_custom_call.1} parent=1 // pred_fallthru
      _
    %3908 = vsyncpa [#allocation3], 1
    %3909 = vsyncpa [#allocation6], 1
    %3910 = vsyncpa [#allocation9], 1
    %3911 = vsyncpa [#allocation12], 1
    %3912 = vsyncpa [#allocation15], 1
    %3913 = vsyncpa [#allocation4], 1

</llo_original>
